<compile_context>
chip_gen: v7x
topology: tpu7x:2x2x1
jax: 0.10.0
libtpu: 0.0.40
codegen_flags: <defaults>
</compile_context>

<pallas_src>
import jax
import jax.numpy as jnp
from jax.experimental import pallas as pl
from jax.experimental.pallas import tpu as pltpu


# ----------------------------------------------------------------------------
# Fused kernel: one grid step == one sample.
# ----------------------------------------------------------------------------
def _tta_fused_kernel(x_ref, live_ref, spoof_ref,
                      w_fe_ref, b_fe_ref, w_l4_ref, b_l4_ref,
                      w_cls_ref, b_cls_ref,
                      out_ref,
                      feat_ref, l4_ref):
    hw, cin = x_ref.shape[1], x_ref.shape[2]
    c_fe = w_fe_ref.shape[1]
    c_l4 = w_l4_ref.shape[1]
    h, w = live_ref.shape[1], live_ref.shape[2]

    # ---- FE (1x1 conv + ReLU).  K = cin (=4) is far too shallow for the MXU,
    #      so run it as `cin` unrolled broadcast-FMA outer products on the VPU.
    x = x_ref[0]                                   # [HW, Cin]   f32
    w_fe = w_fe_ref[...]                           # [Cin, C_FE] f32
    acc = jnp.zeros((hw, c_fe), jnp.float32)
    for ci in range(cin):                          # static unroll (cin == 4)
        acc = acc + x[:, ci:ci + 1] * w_fe[ci:ci + 1, :]
    feat = jnp.maximum(acc + b_fe_ref[...], 0.0)
    feat_ref[...] = feat.astype(jnp.bfloat16)      # stays in VMEM (bf16)

    # ---- layer4 (1x1 conv + ReLU): [HW, 256] @ [256, 512] on the MXU,
    #      bf16 inputs / f32 accumulation, f32 epilogue.
    l4_ref[...] = jnp.maximum(
        jnp.dot(feat_ref[...], w_l4_ref[...],
                preferred_element_type=jnp.float32) + b_l4_ref[...], 0.0)
    l4 = l4_ref[...]                               # [HW, C_L4] f32

    # ---- avgpool over spatial + classifier + softmax[:, 1]  (lane-dense,
    #      classifier weight zero-padded to 128 output lanes).
    pooled = jnp.sum(l4, axis=0, keepdims=True) * (1.0 / hw)            # [1, C_L4]
    logits = jnp.dot(pooled.astype(jnp.bfloat16), w_cls_ref[...],
                     preferred_element_type=jnp.float32) + b_cls_ref[...]  # [1, 128]
    lane = jax.lax.broadcasted_iota(jnp.int32, (1, 128), 1)
    l0 = jnp.sum(jnp.where(lane == 0, logits, 0.0), axis=1, keepdims=True)  # [1, 1]
    l1 = jnp.sum(jnp.where(lane == 1, logits, 0.0), axis=1, keepdims=True)  # [1, 1]
    # softmax over 2 classes, class-1 prob == 1 / (1 + exp(l0 - l1))
    score = 1.0 / (1.0 + jnp.exp(l0 - l1))                                  # [1, 1]

    # ---- l4_map = channel mean, viewed as [H, W].  The reshape only splits
    #      the major (sublane) axis (256 -> 16x16); lane dim is unchanged.
    l4_map = jnp.sum(l4.reshape(h, w, c_l4), axis=2) * (1.0 / c_l4)         # [H, W]

    def norm01(a):  # NormalizeData_torch: min/max over the whole per-sample map
        amin = jnp.min(jnp.min(a, axis=1, keepdims=True), axis=0, keepdims=True)
        amax = jnp.max(jnp.max(a, axis=1, keepdims=True), axis=0, keepdims=True)
        return (a - amin) / (amax - amin + 1e-8)

    a_map = norm01(l4_map)
    live = norm01(live_ref[0])
    spoof = norm01(spoof_ref[0])

    def cos_rows_mean(u, v):
        # nn.CosineSimilarity(dim=1) on a per-sample [H, W] map reduces over W
        # (dim 1 of the 2-D map), then torch.mean over the H rows.
        num = jnp.sum(u * v, axis=1, keepdims=True)                  # [H, 1]
        nu = jnp.sqrt(jnp.sum(u * u, axis=1, keepdims=True))
        nv = jnp.sqrt(jnp.sum(v * v, axis=1, keepdims=True))
        cos = num / jnp.maximum(nu * nv, 1e-8)
        return jnp.sum(cos, axis=0, keepdims=True) * (1.0 / u.shape[0])  # [1, 1]

    diff = cos_rows_mean(a_map, live) - cos_rows_mean(a_map, spoof)  # [1, 1]
    label = jnp.where(diff < 0.0, 0.0, 1.0)                          # [1, 1]

    # ---- pack score / diff / pseudo_label into one lane-dense 128-wide row.
    row = jnp.where(lane == 0, score,
          jnp.where(lane == 1, diff,
          jnp.where(lane == 2, label, 0.0)))                         # [1, 128]
    out_ref[...] = row.reshape(out_ref.shape)


# ----------------------------------------------------------------------------
# Wrapper: full TTA inference compute path (single fused pallas_call).
# ----------------------------------------------------------------------------
def tta_forward(x_nchw, live_cam, spoof_cam, params):
    B, Cin, H, W = x_nchw.shape
    HW = H * W
    # channels-last flattened layout for the 1x1-conv hot path
    x_bhwc = jnp.transpose(x_nchw, (0, 2, 3, 1)).reshape(B, HW, Cin)

    c_fe = params["w_fe"].shape[1]
    c_l4 = params["w_l4"].shape[1]
    n_cls = params["w_cls"].shape[1]
    NPAD = 128  # lane-dense classifier / output width

    # bf16 weights for the MXU matmuls; biases stay f32 (f32 epilogue).
    w_l4_bf = params["w_l4"].astype(jnp.bfloat16)
    w_cls_p = jnp.zeros((c_l4, NPAD), jnp.bfloat16).at[:, :n_cls].set(
        params["w_cls"].astype(jnp.bfloat16))
    b_cls_p = jnp.zeros((1, NPAD), jnp.float32).at[:, :n_cls].set(params["b_cls"])

    packed = pl.pallas_call(
        _tta_fused_kernel,
        out_shape=jax.ShapeDtypeStruct((B, 1, NPAD), jnp.float32),
        grid=(B,),
        in_specs=[
            pl.BlockSpec((1, HW, Cin), lambda b: (b, 0, 0)),   # x (per-sample)
            pl.BlockSpec((1, H, W), lambda b: (b, 0, 0)),      # live_cam
            pl.BlockSpec((1, H, W), lambda b: (b, 0, 0)),      # spoof_cam
            pl.BlockSpec((Cin, c_fe), lambda b: (0, 0)),       # w_fe
            pl.BlockSpec((1, c_fe), lambda b: (0, 0)),         # b_fe
            pl.BlockSpec((c_fe, c_l4), lambda b: (0, 0)),      # w_l4 (bf16)
            pl.BlockSpec((1, c_l4), lambda b: (0, 0)),         # b_l4
            pl.BlockSpec((c_l4, NPAD), lambda b: (0, 0)),      # w_cls (padded, bf16)
            pl.BlockSpec((1, NPAD), lambda b: (0, 0)),         # b_cls (padded)
        ],
        out_specs=pl.BlockSpec((1, 1, NPAD), lambda b: (b, 0, 0)),
        scratch_shapes=[
            pltpu.VMEM((HW, c_fe), jnp.bfloat16),   # feat (FE output), VMEM-resident
            pltpu.VMEM((HW, c_l4), jnp.float32),    # layer4 output, VMEM-resident
        ],
        compiler_params=pltpu.CompilerParams(
            dimension_semantics=("parallel",)),
    )(x_bhwc, live_cam, spoof_cam,
      params["w_fe"], params["b_fe"], w_l4_bf, params["b_l4"],
      w_cls_p, b_cls_p)

    score = packed[:, 0, 0]
    diff = packed[:, 0, 1]
    pseudo_label = packed[:, 0, 2].astype(jnp.int32)
    return score, diff, pseudo_label


def init_params(key, cin=4, c_fe=256, c_l4=512, n_cls=2):
    k0, k1, k2, k3, k4, k5 = jax.random.split(key, 6)
    return {
        "w_fe": 0.1 * jax.random.normal(k0, (cin, c_fe), jnp.float32),
        "b_fe": 0.01 * jax.random.normal(k1, (1, c_fe), jnp.float32),
        "w_l4": 0.05 * jax.random.normal(k2, (c_fe, c_l4), jnp.float32),
        "b_l4": 0.01 * jax.random.normal(k3, (1, c_l4), jnp.float32),
        "w_cls": 0.05 * jax.random.normal(k4, (c_l4, n_cls), jnp.float32),
        "b_cls": 0.01 * jax.random.normal(k5, (1, n_cls), jnp.float32),
    }


if __name__ == "__main__":
    key = jax.random.PRNGKey(0)
    kx, kl, ks, kp = jax.random.split(key, 4)

    B, Cin, H, W = 2, 4, 16, 16
    x = jax.random.normal(kx, (B, Cin, H, W), jnp.float32)       # NCHW, as PyTorch
    live_cam = jax.random.uniform(kl, (B, H, W), jnp.float32)
    spoof_cam = jax.random.uniform(ks, (B, H, W), jnp.float32)
    params = init_params(kp, cin=Cin)

    score, diff, pseudo_label = tta_forward(x, live_cam, spoof_cam, params)
    jax.block_until_ready((score, diff, pseudo_label))
    print("KERNEL_OK")
</pallas_src>

<mosaic_0001>
module attributes {stable_mosaic.version = 11 : i64} {
  func.func @_tta_fused_kernel(%arg0: i32, %arg1: memref<1x256x4xf32, #tpu.memory_space<vmem>>, %arg2: memref<1x16x16xf32, #tpu.memory_space<vmem>>, %arg3: memref<1x16x16xf32, #tpu.memory_space<vmem>>, %arg4: memref<4x256xf32, #tpu.memory_space<vmem>>, %arg5: memref<1x256xf32, #tpu.memory_space<vmem>>, %arg6: memref<256x512xbf16, #tpu.memory_space<vmem>>, %arg7: memref<1x512xf32, #tpu.memory_space<vmem>>, %arg8: memref<512x128xbf16, #tpu.memory_space<vmem>>, %arg9: memref<1x128xf32, #tpu.memory_space<vmem>>, %arg10: memref<1x1x128xf32, #tpu.memory_space<vmem>>, %arg11: memref<256x256xbf16, #tpu.memory_space<vmem>>, %arg12: memref<256x512xf32, #tpu.memory_space<vmem>>) attributes {dimension_semantics = [#tpu.dimension_semantics<parallel>], iteration_bounds = array<i64: 2>, scalar_prefetch = 0 : i64, scratch_operands = 2 : i64, tpu.core_type = #tpu.core_type<tc>, window_params = [{transform_indices = @transform_0, window_bounds = array<i64: 1, 256, 4>}, {transform_indices = @transform_1, window_bounds = array<i64: 1, 16, 16>}, {transform_indices = @transform_2, window_bounds = array<i64: 1, 16, 16>}, {pipeline_mode = #tpu.pipeline_mode<synchronous>, transform_indices = @transform_3, window_bounds = array<i64: 4, 256>}, {pipeline_mode = #tpu.pipeline_mode<synchronous>, transform_indices = @transform_4, window_bounds = array<i64: 1, 256>}, {pipeline_mode = #tpu.pipeline_mode<synchronous>, transform_indices = @transform_5, window_bounds = array<i64: 256, 512>}, {pipeline_mode = #tpu.pipeline_mode<synchronous>, transform_indices = @transform_6, window_bounds = array<i64: 1, 512>}, {pipeline_mode = #tpu.pipeline_mode<synchronous>, transform_indices = @transform_7, window_bounds = array<i64: 512, 128>}, {pipeline_mode = #tpu.pipeline_mode<synchronous>, transform_indices = @transform_8, window_bounds = array<i64: 1, 128>}, {transform_indices = @transform_9, window_bounds = array<i64: 1, 1, 128>}]} {
    %c0 = arith.constant 0 : index
    %c0_0 = arith.constant 0 : index
    %c0_1 = arith.constant 0 : index
    %0 = vector.load %arg1[%c0, %c0_0, %c0_1] : memref<1x256x4xf32, #tpu.memory_space<vmem>>, vector<1x256x4xf32>
    %1 = vector.shape_cast %0 : vector<1x256x4xf32> to vector<256x4xf32>
    %c0_2 = arith.constant 0 : index
    %c0_3 = arith.constant 0 : index
    %2 = vector.load %arg4[%c0_2, %c0_3] : memref<4x256xf32, #tpu.memory_space<vmem>>, vector<4x256xf32>
    %cst = arith.constant 0.000000e+00 : f32
    %3 = vector.broadcast %cst : f32 to vector<256x256xf32>
    %4 = vector.extract_strided_slice %1 {offsets = [0, 0], sizes = [256, 1], strides = [1, 1]} : vector<256x4xf32> to vector<256x1xf32>
    %5 = vector.extract_strided_slice %2 {offsets = [0, 0], sizes = [1, 256], strides = [1, 1]} : vector<4x256xf32> to vector<1x256xf32>
    %6 = vector.broadcast %4 : vector<256x1xf32> to vector<256x256xf32>
    %7 = vector.broadcast %5 : vector<1x256xf32> to vector<256x256xf32>
    %8 = arith.mulf %6, %7 : vector<256x256xf32>
    %9 = arith.addf %3, %8 : vector<256x256xf32>
    %10 = vector.extract_strided_slice %1 {offsets = [0, 1], sizes = [256, 1], strides = [1, 1]} : vector<256x4xf32> to vector<256x1xf32>
    %11 = vector.extract_strided_slice %2 {offsets = [1, 0], sizes = [1, 256], strides = [1, 1]} : vector<4x256xf32> to vector<1x256xf32>
    %12 = vector.broadcast %10 : vector<256x1xf32> to vector<256x256xf32>
    %13 = vector.broadcast %11 : vector<1x256xf32> to vector<256x256xf32>
    %14 = arith.mulf %12, %13 : vector<256x256xf32>
    %15 = arith.addf %9, %14 : vector<256x256xf32>
    %16 = vector.extract_strided_slice %1 {offsets = [0, 2], sizes = [256, 1], strides = [1, 1]} : vector<256x4xf32> to vector<256x1xf32>
    %17 = vector.extract_strided_slice %2 {offsets = [2, 0], sizes = [1, 256], strides = [1, 1]} : vector<4x256xf32> to vector<1x256xf32>
    %18 = vector.broadcast %16 : vector<256x1xf32> to vector<256x256xf32>
    %19 = vector.broadcast %17 : vector<1x256xf32> to vector<256x256xf32>
    %20 = arith.mulf %18, %19 : vector<256x256xf32>
    %21 = arith.addf %15, %20 : vector<256x256xf32>
    %22 = vector.extract_strided_slice %1 {offsets = [0, 3], sizes = [256, 1], strides = [1, 1]} : vector<256x4xf32> to vector<256x1xf32>
    %23 = vector.extract_strided_slice %2 {offsets = [3, 0], sizes = [1, 256], strides = [1, 1]} : vector<4x256xf32> to vector<1x256xf32>
    %24 = vector.broadcast %22 : vector<256x1xf32> to vector<256x256xf32>
    %25 = vector.broadcast %23 : vector<1x256xf32> to vector<256x256xf32>
    %26 = arith.mulf %24, %25 : vector<256x256xf32>
    %27 = arith.addf %21, %26 : vector<256x256xf32>
    %c0_4 = arith.constant 0 : index
    %c0_5 = arith.constant 0 : index
    %28 = vector.load %arg5[%c0_4, %c0_5] : memref<1x256xf32, #tpu.memory_space<vmem>>, vector<1x256xf32>
    %29 = vector.broadcast %28 : vector<1x256xf32> to vector<256x256xf32>
    %30 = arith.addf %27, %29 : vector<256x256xf32>
    %cst_6 = arith.constant 0.000000e+00 : f32
    %31 = vector.broadcast %cst_6 : f32 to vector<256x256xf32>
    %32 = arith.maximumf %30, %31 : vector<256x256xf32>
    %33 = arith.truncf %32 : vector<256x256xf32> to vector<256x256xbf16>
    %c0_7 = arith.constant 0 : index
    %c0_8 = arith.constant 0 : index
    %34 = vector.load %arg11[%c0_7, %c0_8] : memref<256x256xbf16, #tpu.memory_space<vmem>>, vector<256x256xbf16>
    tpu.vector_store %arg11[%c0_7, %c0_8], %33 {strides = array<i32>} : memref<256x256xbf16, #tpu.memory_space<vmem>>, vector<256x256xbf16>,
    %c0_9 = arith.constant 0 : index
    %c0_10 = arith.constant 0 : index
    %35 = vector.load %arg11[%c0_9, %c0_10] : memref<256x256xbf16, #tpu.memory_space<vmem>>, vector<256x256xbf16>
    %c0_11 = arith.constant 0 : index
    %c0_12 = arith.constant 0 : index
    %36 = vector.load %arg6[%c0_11, %c0_12] : memref<256x512xbf16, #tpu.memory_space<vmem>>, vector<256x512xbf16>
    %cst_13 = arith.constant dense<0.000000e+00> : vector<256x512xf32>
    %37 = tpu.matmul %35, %36, %cst_13 {dimension_numbers = #tpu.dot_dimension_numbers<[1], [0], [0], [1], [0, 0, 1, 1], [], []>} : vector<256x256xbf16>, vector<256x512xbf16>, vector<256x512xf32> -> vector<256x512xf32>
    %c0_14 = arith.constant 0 : index
    %c0_15 = arith.constant 0 : index
    %38 = vector.load %arg7[%c0_14, %c0_15] : memref<1x512xf32, #tpu.memory_space<vmem>>, vector<1x512xf32>
    %39 = vector.broadcast %38 : vector<1x512xf32> to vector<256x512xf32>
    %40 = arith.addf %37, %39 : vector<256x512xf32>
    %cst_16 = arith.constant 0.000000e+00 : f32
    %41 = vector.broadcast %cst_16 : f32 to vector<256x512xf32>
    %42 = arith.maximumf %40, %41 : vector<256x512xf32>
    %c0_17 = arith.constant 0 : index
    %c0_18 = arith.constant 0 : index
    %43 = vector.load %arg12[%c0_17, %c0_18] : memref<256x512xf32, #tpu.memory_space<vmem>>, vector<256x512xf32>
    tpu.vector_store %arg12[%c0_17, %c0_18], %42 {strides = array<i32>} : memref<256x512xf32, #tpu.memory_space<vmem>>, vector<256x512xf32>,
    %c0_19 = arith.constant 0 : index
    %c0_20 = arith.constant 0 : index
    %44 = vector.load %arg12[%c0_19, %c0_20] : memref<256x512xf32, #tpu.memory_space<vmem>>, vector<256x512xf32>
    %cst_21 = arith.constant dense<0.000000e+00> : vector<512xf32>
    %45 = vector.multi_reduction <add>, %44, %cst_21 [0] : vector<256x512xf32> to vector<512xf32>
    %46 = vector.shape_cast %45 : vector<512xf32> to vector<1x512xf32>
    %cst_22 = arith.constant 3.906250e-03 : f32
    %47 = vector.broadcast %cst_22 : f32 to vector<1x512xf32>
    %48 = arith.mulf %46, %47 : vector<1x512xf32>
    %49 = arith.truncf %48 : vector<1x512xf32> to vector<1x512xbf16>
    %c0_23 = arith.constant 0 : index
    %c0_24 = arith.constant 0 : index
    %50 = vector.load %arg8[%c0_23, %c0_24] : memref<512x128xbf16, #tpu.memory_space<vmem>>, vector<512x128xbf16>
    %cst_25 = arith.constant dense<0.000000e+00> : vector<1x128xf32>
    %51 = tpu.matmul %49, %50, %cst_25 {dimension_numbers = #tpu.dot_dimension_numbers<[1], [0], [0], [1], [0, 0, 1, 1], [], []>} : vector<1x512xbf16>, vector<512x128xbf16>, vector<1x128xf32> -> vector<1x128xf32>
    %c0_26 = arith.constant 0 : index
    %c0_27 = arith.constant 0 : index
    %52 = vector.load %arg9[%c0_26, %c0_27] : memref<1x128xf32, #tpu.memory_space<vmem>>, vector<1x128xf32>
    %53 = arith.addf %51, %52 : vector<1x128xf32>
    %54 = tpu.iota {dimensions = array<i32: 1>} : vector<1x128xi32>
    %c0_i32 = arith.constant 0 : i32
    %55 = vector.broadcast %c0_i32 : i32 to vector<1x128xi32>
    %56 = arith.cmpi eq, %54, %55 : vector<1x128xi32>
    %cst_28 = arith.constant 0.000000e+00 : f32
    %57 = vector.broadcast %cst_28 : f32 to vector<1x128xf32>
    %58 = arith.select %56, %53, %57 : vector<1x128xi1>, vector<1x128xf32>
    %cst_29 = arith.constant dense<0.000000e+00> : vector<1xf32>
    %59 = vector.multi_reduction <add>, %58, %cst_29 [1] : vector<1x128xf32> to vector<1xf32>
    %60 = vector.shape_cast %59 : vector<1xf32> to vector<1x1xf32>
    %c1_i32 = arith.constant 1 : i32
    %61 = vector.broadcast %c1_i32 : i32 to vector<1x128xi32>
    %62 = arith.cmpi eq, %54, %61 : vector<1x128xi32>
    %cst_30 = arith.constant 0.000000e+00 : f32
    %63 = vector.broadcast %cst_30 : f32 to vector<1x128xf32>
    %64 = arith.select %62, %53, %63 : vector<1x128xi1>, vector<1x128xf32>
    %cst_31 = arith.constant dense<0.000000e+00> : vector<1xf32>
    %65 = vector.multi_reduction <add>, %64, %cst_31 [1] : vector<1x128xf32> to vector<1xf32>
    %66 = vector.shape_cast %65 : vector<1xf32> to vector<1x1xf32>
    %67 = arith.subf %60, %66 : vector<1x1xf32>
    %68 = math.exp %67 : vector<1x1xf32>
    %cst_32 = arith.constant 1.000000e+00 : f32
    %69 = vector.broadcast %cst_32 : f32 to vector<1x1xf32>
    %70 = arith.addf %69, %68 : vector<1x1xf32>
    %cst_33 = arith.constant 1.000000e+00 : f32
    %71 = vector.broadcast %cst_33 : f32 to vector<1x1xf32>
    %72 = arith.divf %71, %70 : vector<1x1xf32>
    %73 = vector.shape_cast %44 : vector<256x512xf32> to vector<16x16x512xf32>
    %cst_34 = arith.constant dense<0.000000e+00> : vector<16x16xf32>
    %74 = vector.multi_reduction <add>, %73, %cst_34 [2] : vector<16x16x512xf32> to vector<16x16xf32>
    %cst_35 = arith.constant 0.001953125 : f32
    %75 = vector.broadcast %cst_35 : f32 to vector<16x16xf32>
    %76 = arith.mulf %74, %75 : vector<16x16xf32>
    %cst_36 = arith.constant dense<0x7F800000> : vector<16xf32>
    %77 = vector.multi_reduction <minimumf>, %76, %cst_36 [1] : vector<16x16xf32> to vector<16xf32>
    %78 = vector.shape_cast %77 : vector<16xf32> to vector<16x1xf32>
    %cst_37 = arith.constant dense<0x7F800000> : vector<1xf32>
    %79 = vector.multi_reduction <minimumf>, %78, %cst_37 [0] : vector<16x1xf32> to vector<1xf32>
    %80 = vector.shape_cast %79 : vector<1xf32> to vector<1x1xf32>
    %cst_38 = arith.constant dense<0xFF800000> : vector<16xf32>
    %81 = vector.multi_reduction <maximumf>, %76, %cst_38 [1] : vector<16x16xf32> to vector<16xf32>
    %82 = vector.shape_cast %81 : vector<16xf32> to vector<16x1xf32>
    %cst_39 = arith.constant dense<0xFF800000> : vector<1xf32>
    %83 = vector.multi_reduction <maximumf>, %82, %cst_39 [0] : vector<16x1xf32> to vector<1xf32>
    %84 = vector.shape_cast %83 : vector<1xf32> to vector<1x1xf32>
    %85 = vector.broadcast %80 : vector<1x1xf32> to vector<16x16xf32>
    %86 = arith.subf %76, %85 : vector<16x16xf32>
    %87 = arith.subf %84, %80 : vector<1x1xf32>
    %cst_40 = arith.constant 9.99999993E-9 : f32
    %88 = vector.broadcast %cst_40 : f32 to vector<1x1xf32>
    %89 = arith.addf %87, %88 : vector<1x1xf32>
    %90 = vector.broadcast %89 : vector<1x1xf32> to vector<16x16xf32>
    %91 = arith.divf %86, %90 : vector<16x16xf32>
    %c0_41 = arith.constant 0 : index
    %c0_42 = arith.constant 0 : index
    %c0_43 = arith.constant 0 : index
    %92 = vector.load %arg2[%c0_41, %c0_42, %c0_43] : memref<1x16x16xf32, #tpu.memory_space<vmem>>, vector<1x16x16xf32>
    %93 = vector.shape_cast %92 : vector<1x16x16xf32> to vector<16x16xf32>
    %cst_44 = arith.constant dense<0x7F800000> : vector<16xf32>
    %94 = vector.multi_reduction <minimumf>, %93, %cst_44 [1] : vector<16x16xf32> to vector<16xf32>
    %95 = vector.shape_cast %94 : vector<16xf32> to vector<16x1xf32>
    %cst_45 = arith.constant dense<0x7F800000> : vector<1xf32>
    %96 = vector.multi_reduction <minimumf>, %95, %cst_45 [0] : vector<16x1xf32> to vector<1xf32>
    %97 = vector.shape_cast %96 : vector<1xf32> to vector<1x1xf32>
    %cst_46 = arith.constant dense<0xFF800000> : vector<16xf32>
    %98 = vector.multi_reduction <maximumf>, %93, %cst_46 [1] : vector<16x16xf32> to vector<16xf32>
    %99 = vector.shape_cast %98 : vector<16xf32> to vector<16x1xf32>
    %cst_47 = arith.constant dense<0xFF800000> : vector<1xf32>
    %100 = vector.multi_reduction <maximumf>, %99, %cst_47 [0] : vector<16x1xf32> to vector<1xf32>
    %101 = vector.shape_cast %100 : vector<1xf32> to vector<1x1xf32>
    %102 = vector.broadcast %97 : vector<1x1xf32> to vector<16x16xf32>
    %103 = arith.subf %93, %102 : vector<16x16xf32>
    %104 = arith.subf %101, %97 : vector<1x1xf32>
    %cst_48 = arith.constant 9.99999993E-9 : f32
    %105 = vector.broadcast %cst_48 : f32 to vector<1x1xf32>
    %106 = arith.addf %104, %105 : vector<1x1xf32>
    %107 = vector.broadcast %106 : vector<1x1xf32> to vector<16x16xf32>
    %108 = arith.divf %103, %107 : vector<16x16xf32>
    %c0_49 = arith.constant 0 : index
    %c0_50 = arith.constant 0 : index
    %c0_51 = arith.constant 0 : index
    %109 = vector.load %arg3[%c0_49, %c0_50, %c0_51] : memref<1x16x16xf32, #tpu.memory_space<vmem>>, vector<1x16x16xf32>
    %110 = vector.shape_cast %109 : vector<1x16x16xf32> to vector<16x16xf32>
    %cst_52 = arith.constant dense<0x7F800000> : vector<16xf32>
    %111 = vector.multi_reduction <minimumf>, %110, %cst_52 [1] : vector<16x16xf32> to vector<16xf32>
    %112 = vector.shape_cast %111 : vector<16xf32> to vector<16x1xf32>
    %cst_53 = arith.constant dense<0x7F800000> : vector<1xf32>
    %113 = vector.multi_reduction <minimumf>, %112, %cst_53 [0] : vector<16x1xf32> to vector<1xf32>
    %114 = vector.shape_cast %113 : vector<1xf32> to vector<1x1xf32>
    %cst_54 = arith.constant dense<0xFF800000> : vector<16xf32>
    %115 = vector.multi_reduction <maximumf>, %110, %cst_54 [1] : vector<16x16xf32> to vector<16xf32>
    %116 = vector.shape_cast %115 : vector<16xf32> to vector<16x1xf32>
    %cst_55 = arith.constant dense<0xFF800000> : vector<1xf32>
    %117 = vector.multi_reduction <maximumf>, %116, %cst_55 [0] : vector<16x1xf32> to vector<1xf32>
    %118 = vector.shape_cast %117 : vector<1xf32> to vector<1x1xf32>
    %119 = vector.broadcast %114 : vector<1x1xf32> to vector<16x16xf32>
    %120 = arith.subf %110, %119 : vector<16x16xf32>
    %121 = arith.subf %118, %114 : vector<1x1xf32>
    %cst_56 = arith.constant 9.99999993E-9 : f32
    %122 = vector.broadcast %cst_56 : f32 to vector<1x1xf32>
    %123 = arith.addf %121, %122 : vector<1x1xf32>
    %124 = vector.broadcast %123 : vector<1x1xf32> to vector<16x16xf32>
    %125 = arith.divf %120, %124 : vector<16x16xf32>
    %126 = arith.mulf %91, %108 : vector<16x16xf32>
    %cst_57 = arith.constant dense<0.000000e+00> : vector<16xf32>
    %127 = vector.multi_reduction <add>, %126, %cst_57 [1] : vector<16x16xf32> to vector<16xf32>
    %128 = vector.shape_cast %127 : vector<16xf32> to vector<16x1xf32>
    %129 = arith.mulf %91, %91 : vector<16x16xf32>
    %cst_58 = arith.constant dense<0.000000e+00> : vector<16xf32>
    %130 = vector.multi_reduction <add>, %129, %cst_58 [1] : vector<16x16xf32> to vector<16xf32>
    %131 = vector.shape_cast %130 : vector<16xf32> to vector<16x1xf32>
    %132 = math.sqrt %131 : vector<16x1xf32>
    %133 = arith.mulf %108, %108 : vector<16x16xf32>
    %cst_59 = arith.constant dense<0.000000e+00> : vector<16xf32>
    %134 = vector.multi_reduction <add>, %133, %cst_59 [1] : vector<16x16xf32> to vector<16xf32>
    %135 = vector.shape_cast %134 : vector<16xf32> to vector<16x1xf32>
    %136 = math.sqrt %135 : vector<16x1xf32>
    %137 = arith.mulf %132, %136 : vector<16x1xf32>
    %cst_60 = arith.constant 9.99999993E-9 : f32
    %138 = vector.broadcast %cst_60 : f32 to vector<16x1xf32>
    %139 = arith.maximumf %137, %138 : vector<16x1xf32>
    %140 = arith.divf %128, %139 : vector<16x1xf32>
    %cst_61 = arith.constant dense<0.000000e+00> : vector<1xf32>
    %141 = vector.multi_reduction <add>, %140, %cst_61 [0] : vector<16x1xf32> to vector<1xf32>
    %142 = vector.shape_cast %141 : vector<1xf32> to vector<1x1xf32>
    %cst_62 = arith.constant 6.250000e-02 : f32
    %143 = vector.broadcast %cst_62 : f32 to vector<1x1xf32>
    %144 = arith.mulf %142, %143 : vector<1x1xf32>
    %145 = arith.mulf %91, %125 : vector<16x16xf32>
    %cst_63 = arith.constant dense<0.000000e+00> : vector<16xf32>
    %146 = vector.multi_reduction <add>, %145, %cst_63 [1] : vector<16x16xf32> to vector<16xf32>
    %147 = vector.shape_cast %146 : vector<16xf32> to vector<16x1xf32>
    %148 = arith.mulf %91, %91 : vector<16x16xf32>
    %cst_64 = arith.constant dense<0.000000e+00> : vector<16xf32>
    %149 = vector.multi_reduction <add>, %148, %cst_64 [1] : vector<16x16xf32> to vector<16xf32>
    %150 = vector.shape_cast %149 : vector<16xf32> to vector<16x1xf32>
    %151 = math.sqrt %150 : vector<16x1xf32>
    %152 = arith.mulf %125, %125 : vector<16x16xf32>
    %cst_65 = arith.constant dense<0.000000e+00> : vector<16xf32>
    %153 = vector.multi_reduction <add>, %152, %cst_65 [1] : vector<16x16xf32> to vector<16xf32>
    %154 = vector.shape_cast %153 : vector<16xf32> to vector<16x1xf32>
    %155 = math.sqrt %154 : vector<16x1xf32>
    %156 = arith.mulf %151, %155 : vector<16x1xf32>
    %cst_66 = arith.constant 9.99999993E-9 : f32
    %157 = vector.broadcast %cst_66 : f32 to vector<16x1xf32>
    %158 = arith.maximumf %156, %157 : vector<16x1xf32>
    %159 = arith.divf %147, %158 : vector<16x1xf32>
    %cst_67 = arith.constant dense<0.000000e+00> : vector<1xf32>
    %160 = vector.multi_reduction <add>, %159, %cst_67 [0] : vector<16x1xf32> to vector<1xf32>
    %161 = vector.shape_cast %160 : vector<1xf32> to vector<1x1xf32>
    %cst_68 = arith.constant 6.250000e-02 : f32
    %162 = vector.broadcast %cst_68 : f32 to vector<1x1xf32>
    %163 = arith.mulf %161, %162 : vector<1x1xf32>
    %164 = arith.subf %144, %163 : vector<1x1xf32>
    %cst_69 = arith.constant 0.000000e+00 : f32
    %165 = vector.broadcast %cst_69 : f32 to vector<1x1xf32>
    %166 = arith.cmpf olt, %164, %165 : vector<1x1xf32>
    %cst_70 = arith.constant 0.000000e+00 : f32
    %cst_71 = arith.constant 1.000000e+00 : f32
    %167 = vector.broadcast %cst_70 : f32 to vector<1x1xf32>
    %168 = vector.broadcast %cst_71 : f32 to vector<1x1xf32>
    %169 = arith.select %166, %167, %168 : vector<1x1xi1>, vector<1x1xf32>
    %c0_i32_72 = arith.constant 0 : i32
    %170 = vector.broadcast %c0_i32_72 : i32 to vector<1x128xi32>
    %171 = arith.cmpi eq, %54, %170 : vector<1x128xi32>
    %c1_i32_73 = arith.constant 1 : i32
    %172 = vector.broadcast %c1_i32_73 : i32 to vector<1x128xi32>
    %173 = arith.cmpi eq, %54, %172 : vector<1x128xi32>
    %c2_i32 = arith.constant 2 : i32
    %174 = vector.broadcast %c2_i32 : i32 to vector<1x128xi32>
    %175 = arith.cmpi eq, %54, %174 : vector<1x128xi32>
    %cst_74 = arith.constant 0.000000e+00 : f32
    %176 = vector.shape_cast %169 : vector<1x1xf32> to vector<1x1xf32>
    %177 = vector.broadcast %176 : vector<1x1xf32> to vector<1x128xf32>
    %178 = vector.broadcast %cst_74 : f32 to vector<1x128xf32>
    %179 = arith.select %175, %177, %178 : vector<1x128xi1>, vector<1x128xf32>
    %180 = vector.shape_cast %164 : vector<1x1xf32> to vector<1x1xf32>
    %181 = vector.broadcast %180 : vector<1x1xf32> to vector<1x128xf32>
    %182 = arith.select %173, %181, %179 : vector<1x128xi1>, vector<1x128xf32>
    %183 = vector.shape_cast %72 : vector<1x1xf32> to vector<1x1xf32>
    %184 = vector.broadcast %183 : vector<1x1xf32> to vector<1x128xf32>
    %185 = arith.select %171, %184, %182 : vector<1x128xi1>, vector<1x128xf32>
    %186 = vector.shape_cast %185 : vector<1x128xf32> to vector<1x1x128xf32>
    %c0_75 = arith.constant 0 : index
    %c0_76 = arith.constant 0 : index
    %c0_77 = arith.constant 0 : index
    %187 = vector.load %arg10[%c0_75, %c0_76, %c0_77] : memref<1x1x128xf32, #tpu.memory_space<vmem>>, vector<1x1x128xf32>
    tpu.vector_store %arg10[%c0_75, %c0_76, %c0_77], %186 {strides = array<i32>} : memref<1x1x128xf32, #tpu.memory_space<vmem>>, vector<1x1x128xf32>,
    return
  }
  func.func @transform_0(%arg0: i32) -> (i32, i32, i32) {
    %c0_i32 = arith.constant 0 : i32
    %c0_i32_0 = arith.constant 0 : i32
    %c0_i32_1 = arith.constant 0 : i32
    return %arg0, %c0_i32, %c0_i32_0 : i32, i32, i32
  }
  func.func @transform_1(%arg0: i32) -> (i32, i32, i32) {
    %c0_i32 = arith.constant 0 : i32
    %c0_i32_0 = arith.constant 0 : i32
    %c0_i32_1 = arith.constant 0 : i32
    return %arg0, %c0_i32, %c0_i32_0 : i32, i32, i32
  }
  func.func @transform_2(%arg0: i32) -> (i32, i32, i32) {
    %c0_i32 = arith.constant 0 : i32
    %c0_i32_0 = arith.constant 0 : i32
    %c0_i32_1 = arith.constant 0 : i32
    return %arg0, %c0_i32, %c0_i32_0 : i32, i32, i32
  }
  func.func @transform_3(%arg0: i32) -> (i32, i32) {
    %c0_i32 = arith.constant 0 : i32
    %c0_i32_0 = arith.constant 0 : i32
    %c0_i32_1 = arith.constant 0 : i32
    return %c0_i32, %c0_i32_0 : i32, i32
  }
  func.func @transform_4(%arg0: i32) -> (i32, i32) {
    %c0_i32 = arith.constant 0 : i32
    %c0_i32_0 = arith.constant 0 : i32
    %c0_i32_1 = arith.constant 0 : i32
    return %c0_i32, %c0_i32_0 : i32, i32
  }
  func.func @transform_5(%arg0: i32) -> (i32, i32) {
    %c0_i32 = arith.constant 0 : i32
    %c0_i32_0 = arith.constant 0 : i32
    %c0_i32_1 = arith.constant 0 : i32
    return %c0_i32, %c0_i32_0 : i32, i32
  }
  func.func @transform_6(%arg0: i32) -> (i32, i32) {
    %c0_i32 = arith.constant 0 : i32
    %c0_i32_0 = arith.constant 0 : i32
    %c0_i32_1 = arith.constant 0 : i32
    return %c0_i32, %c0_i32_0 : i32, i32
  }
  func.func @transform_7(%arg0: i32) -> (i32, i32) {
    %c0_i32 = arith.constant 0 : i32
    %c0_i32_0 = arith.constant 0 : i32
    %c0_i32_1 = arith.constant 0 : i32
    return %c0_i32, %c0_i32_0 : i32, i32
  }
  func.func @transform_8(%arg0: i32) -> (i32, i32) {
    %c0_i32 = arith.constant 0 : i32
    %c0_i32_0 = arith.constant 0 : i32
    %c0_i32_1 = arith.constant 0 : i32
    return %c0_i32, %c0_i32_0 : i32, i32
  }
  func.func @transform_9(%arg0: i32) -> (i32, i32, i32) {
    %c0_i32 = arith.constant 0 : i32
    %c0_i32_0 = arith.constant 0 : i32
    %c0_i32_1 = arith.constant 0 : i32
    return %arg0, %c0_i32, %c0_i32_0 : i32, i32, i32
  }
}

</mosaic_0001>

<llo_original>
// kernel: tpu_custom_call.1
$region0: #{tpu_custom_call.1}
  #allocation0 [shape = 'u32[]', space=smem, size = 0x4, offset = 0x4, fixed_abs, tag = 'smem constant byte address 0x4 - core index']
  #allocation1 [shape = 'u32[144,128]{1,0:T(1,128)}', space=vmem, size = 0x12000, scoped, tag = 'internal scratch']
  #allocation2 [shape = 'bf16[256,256]{1,0:T(16,128)(2,1)}', space=vmem, size = 0x20000, scoped, tag = 'scratch operand']
  #allocation3 [shape = 'f32[256,512]{1,0:T(8,128)}', space=vmem, size = 0x80000, scoped, tag = 'scratch operand']
  %s0 = inlined_call_operand.vmem [shape: f32[2,256,4], index: 0, kind: input, shape index: {}]
  %s1 = inlined_call_operand.vmem [shape: f32[2,16,16], index: 1, kind: input, shape index: {}]
  %s2 = inlined_call_operand.hbm [shape: f32[2,16,16], index: 2, kind: input, shape index: {}]
  %s3 = inlined_call_operand.hbm [shape: f32[4,256], index: 3, kind: input, shape index: {}]
  %s4 = inlined_call_operand.vmem [shape: f32[1,256], index: 4, kind: input, shape index: {}]
  %s5 = inlined_call_operand.vmem [shape: bf16[256,512], index: 5, kind: input, shape index: {}]
  %s6 = inlined_call_operand.vmem [shape: f32[1,512], index: 6, kind: input, shape index: {}]
  %s7 = inlined_call_operand.hbm [shape: bf16[512,128], index: 7, kind: input, shape index: {}]
  %s8 = inlined_call_operand.vmem [shape: f32[1,128], index: 8, kind: input, shape index: {}]
  %s9 = inlined_call_operand.hbm [shape: f32[2,1,128], index: 9, kind: output, shape index: {}]
  %s10 = sld [smem:[#allocation0]]
  $region81: #{tpu_custom_call.1} parent=0
    _
  %s12 = ssub.s32 1, %s10
  %s13 = scalar_select 0, %s12, %s10
  $region1: #{tpu_custom_call.1} parent=0
    #allocation4 [shape = 'u8[16384]{0}', space=vmem, size = 0x4000, scoped, tag = 'input window, operand 2']
    #allocation5 [shape = 's32[2]{0}', space=sflag, size = 0x8, scoped, tag = 'scoped memory for tpu_custom_call.1']
    #allocation6 [shape = 's32[2]{0}', space=sflag, size = 0x8, scoped, tag = 'scoped memory for tpu_custom_call.1']
    #allocation7 [shape = 'u8[4096]{0}', space=vmem, size = 0x1000, scoped, tag = 'input window, operand 3, single buffered']
    #allocation8 [shape = 's32[1]{0}', space=sflag, size = 0x4, scoped, tag = 'scoped memory for tpu_custom_call.1']
    #allocation9 [shape = 'u8[131072]{0}', space=vmem, size = 0x20000, scoped, tag = 'input window, operand 7, single buffered']
    #allocation10 [shape = 'u8[1024]{0}', space=vmem, size = 0x400, scoped, tag = 'output window, operand 0']
    %14 = vsyncpa [#allocation5], 0
    %s15 = scalar_lea.sflag [#allocation5], 1
    %16 = vsyncpa %s15, 0
    %17 = vsyncpa [#allocation8], 0
    %18 = vsyncpa [#allocation6], 0
    %s19 = scalar_lea.sflag [#allocation6], 1
    %20 = vsyncpa %s19, 0
    loop: start=0, step=1, limit=4
    $region2: #{tpu_custom_call.1} parent=1 // loop_pre_header
      _
    $region3: #{tpu_custom_call.1} parent=1 // loop_header
      %s22 = sphi 0, %s26
      %p23 = scmp.ge.s32.totalorder %s22, 4
      %s32 = sphi 0, %s34
      %s35 = sphi 0, %s32
      %s36 = sphi 0, %s35
      %s52 = sphi 0, %s36
      %s58 = sphi 0, %s60
      %s61 = sphi 0, %s58
      %s62 = sphi 0, %s61
      %s78 = sphi 0, %s62
      %s84 = sphi 0, %s86
      %s87 = sphi 0, %s84
      %s88 = sphi 0, %s87
      %s104 = sphi 0, %s88
      %s108 = sphi 0, %s108
      %s110 = sphi 0, %s108
      %s111 = sphi 0, %s110
      %s125 = sphi 0, %s111
      %s129 = sphi 0, %s129
      %s131 = sphi 0, %s129
      %s132 = sphi 0, %s131
      %s146 = sphi 0, %s132
      %s150 = sphi 0, %s150
      %s152 = sphi 0, %s150
      %s153 = sphi 0, %s152
      %s167 = sphi 0, %s153
      %s171 = sphi 0, %s171
      %s173 = sphi 0, %s171
      %s174 = sphi 0, %s173
      %s188 = sphi 0, %s174
      %s192 = sphi 0, %s192
      %s194 = sphi 0, %s192
      %s195 = sphi 0, %s194
      %s209 = sphi 0, %s195
      %s213 = sphi 0, %s213
      %s215 = sphi 0, %s213
      %s216 = sphi 0, %s215
      %s230 = sphi 0, %s216
      %s236 = sphi 0, %s238
      %s239 = sphi 0, %s236
      %s240 = sphi 0, %s239
      %s256 = sphi 0, %s240
    $region4: #{tpu_custom_call.1} parent=1 // loop_header_branch
      %25 = sbr.rel (%p23) target = $region8
    $region5: #{tpu_custom_call.1} parent=1 // loop_body
      %s27 = ssub.s32 %s22, 1
      %s28 = ssub.s32 %s22, 2
      %s29 = sadd.s32 %s22, 1
      %s30 = ssub.s32 %s22, %s29
      %p31 = scmp.eq.s32.totalorder %s30, 0
      %s33 = sadd.s32 %s32, 1
      %s34 = scalar_select %p31, %s32, %s33
      %p37 = pneg %p31
      %p38 = scmp.eq.s32.totalorder %s22, 1
      %p39 = por %p37, %p38
      %p40 = scmp.ne.s32.totalorder %s32, %s35
      %p41 = scmp.eq.s32.totalorder %s22, 0
      %p42 = por %p40, %p41
      %p43 = scmp.ne.s32.totalorder %s32, %s35
      %p44 = scmp.eq.s32.totalorder %s27, 1
      %p45 = por %p43, %p44
      %p46 = scmp.ne.s32.totalorder %s35, %s36
      %p47 = scmp.eq.s32.totalorder %s27, 0
      %p48 = por %p46, %p47
      %p49 = scmp.ne.s32.totalorder %s35, %s36
      %p50 = scmp.eq.s32.totalorder %s28, 1
      %p51 = por %p49, %p50
      %p53 = scmp.ne.s32.totalorder %s36, %s52
      %p54 = scmp.eq.s32.totalorder %s28, 0
      %p55 = por %p53, %p54
      %s56 = ssub.s32 %s22, %s29
      %p57 = scmp.eq.s32.totalorder %s56, 0
      %s59 = sadd.s32 %s58, 1
      %s60 = scalar_select %p57, %s58, %s59
      %p63 = pneg %p57
      %p64 = scmp.eq.s32.totalorder %s22, 1
      %p65 = por %p63, %p64
      %p66 = scmp.ne.s32.totalorder %s58, %s61
      %p67 = scmp.eq.s32.totalorder %s22, 0
      %p68 = por %p66, %p67
      %p69 = scmp.ne.s32.totalorder %s58, %s61
      %p70 = scmp.eq.s32.totalorder %s27, 1
      %p71 = por %p69, %p70
      %p72 = scmp.ne.s32.totalorder %s61, %s62
      %p73 = scmp.eq.s32.totalorder %s27, 0
      %p74 = por %p72, %p73
      %p75 = scmp.ne.s32.totalorder %s61, %s62
      %p76 = scmp.eq.s32.totalorder %s28, 1
      %p77 = por %p75, %p76
      %p79 = scmp.ne.s32.totalorder %s62, %s78
      %p80 = scmp.eq.s32.totalorder %s28, 0
      %p81 = por %p79, %p80
      %s82 = ssub.s32 %s22, %s29
      %p83 = scmp.eq.s32.totalorder %s82, 0
      %s85 = sadd.s32 %s84, 1
      %s86 = scalar_select %p83, %s84, %s85
      %p89 = pneg %p83
      %p90 = scmp.eq.s32.totalorder %s22, 1
      %p91 = por %p89, %p90
      %p92 = scmp.ne.s32.totalorder %s84, %s87
      %p93 = scmp.eq.s32.totalorder %s22, 0
      %p94 = por %p92, %p93
      %p95 = scmp.ne.s32.totalorder %s84, %s87
      %p96 = scmp.eq.s32.totalorder %s27, 1
      %p97 = por %p95, %p96
      %p98 = scmp.ne.s32.totalorder %s87, %s88
      %p99 = scmp.eq.s32.totalorder %s27, 0
      %p100 = por %p98, %p99
      %p101 = scmp.ne.s32.totalorder %s87, %s88
      %p102 = scmp.eq.s32.totalorder %s28, 1
      %p103 = por %p101, %p102
      %p105 = scmp.ne.s32.totalorder %s88, %s104
      %p106 = scmp.eq.s32.totalorder %s28, 0
      %p107 = por %p105, %p106
      %s109 = sadd.s32 %s108, 1
      %p112 = scmp.eq.s32.totalorder %s22, 1
      %p113 = scmp.ne.s32.totalorder %s108, %s110
      %p114 = scmp.eq.s32.totalorder %s22, 0
      %p115 = por %p113, %p114
      %p116 = scmp.ne.s32.totalorder %s108, %s110
      %p117 = scmp.eq.s32.totalorder %s27, 1
      %p118 = por %p116, %p117
      %p119 = scmp.ne.s32.totalorder %s110, %s111
      %p120 = scmp.eq.s32.totalorder %s27, 0
      %p121 = por %p119, %p120
      %p122 = scmp.ne.s32.totalorder %s110, %s111
      %p123 = scmp.eq.s32.totalorder %s28, 1
      %p124 = por %p122, %p123
      %p126 = scmp.ne.s32.totalorder %s111, %s125
      %p127 = scmp.eq.s32.totalorder %s28, 0
      %p128 = por %p126, %p127
      %s130 = sadd.s32 %s129, 1
      %p133 = scmp.eq.s32.totalorder %s22, 1
      %p134 = scmp.ne.s32.totalorder %s129, %s131
      %p135 = scmp.eq.s32.totalorder %s22, 0
      %p136 = por %p134, %p135
      %p137 = scmp.ne.s32.totalorder %s129, %s131
      %p138 = scmp.eq.s32.totalorder %s27, 1
      %p139 = por %p137, %p138
      %p140 = scmp.ne.s32.totalorder %s131, %s132
      %p141 = scmp.eq.s32.totalorder %s27, 0
      %p142 = por %p140, %p141
      %p143 = scmp.ne.s32.totalorder %s131, %s132
      %p144 = scmp.eq.s32.totalorder %s28, 1
      %p145 = por %p143, %p144
      %p147 = scmp.ne.s32.totalorder %s132, %s146
      %p148 = scmp.eq.s32.totalorder %s28, 0
      %p149 = por %p147, %p148
      %s151 = sadd.s32 %s150, 1
      %p154 = scmp.eq.s32.totalorder %s22, 1
      %p155 = scmp.ne.s32.totalorder %s150, %s152
      %p156 = scmp.eq.s32.totalorder %s22, 0
      %p157 = por %p155, %p156
      %p158 = scmp.ne.s32.totalorder %s150, %s152
      %p159 = scmp.eq.s32.totalorder %s27, 1
      %p160 = por %p158, %p159
      %p161 = scmp.ne.s32.totalorder %s152, %s153
      %p162 = scmp.eq.s32.totalorder %s27, 0
      %p163 = por %p161, %p162
      %p164 = scmp.ne.s32.totalorder %s152, %s153
      %p165 = scmp.eq.s32.totalorder %s28, 1
      %p166 = por %p164, %p165
      %p168 = scmp.ne.s32.totalorder %s153, %s167
      %p169 = scmp.eq.s32.totalorder %s28, 0
      %p170 = por %p168, %p169
      %s172 = sadd.s32 %s171, 1
      %p175 = scmp.eq.s32.totalorder %s22, 1
      %p176 = scmp.ne.s32.totalorder %s171, %s173
      %p177 = scmp.eq.s32.totalorder %s22, 0
      %p178 = por %p176, %p177
      %p179 = scmp.ne.s32.totalorder %s171, %s173
      %p180 = scmp.eq.s32.totalorder %s27, 1
      %p181 = por %p179, %p180
      %p182 = scmp.ne.s32.totalorder %s173, %s174
      %p183 = scmp.eq.s32.totalorder %s27, 0
      %p184 = por %p182, %p183
      %p185 = scmp.ne.s32.totalorder %s173, %s174
      %p186 = scmp.eq.s32.totalorder %s28, 1
      %p187 = por %p185, %p186
      %p189 = scmp.ne.s32.totalorder %s174, %s188
      %p190 = scmp.eq.s32.totalorder %s28, 0
      %p191 = por %p189, %p190
      %s193 = sadd.s32 %s192, 1
      %p196 = scmp.eq.s32.totalorder %s22, 1
      %p197 = scmp.ne.s32.totalorder %s192, %s194
      %p198 = scmp.eq.s32.totalorder %s22, 0
      %p199 = por %p197, %p198
      %p200 = scmp.ne.s32.totalorder %s192, %s194
      %p201 = scmp.eq.s32.totalorder %s27, 1
      %p202 = por %p200, %p201
      %p203 = scmp.ne.s32.totalorder %s194, %s195
      %p204 = scmp.eq.s32.totalorder %s27, 0
      %p205 = por %p203, %p204
      %p206 = scmp.ne.s32.totalorder %s194, %s195
      %p207 = scmp.eq.s32.totalorder %s28, 1
      %p208 = por %p206, %p207
      %p210 = scmp.ne.s32.totalorder %s195, %s209
      %p211 = scmp.eq.s32.totalorder %s28, 0
      %p212 = por %p210, %p211
      %s214 = sadd.s32 %s213, 1
      %p217 = scmp.eq.s32.totalorder %s22, 1
      %p218 = scmp.ne.s32.totalorder %s213, %s215
      %p219 = scmp.eq.s32.totalorder %s22, 0
      %p220 = por %p218, %p219
      %p221 = scmp.ne.s32.totalorder %s213, %s215
      %p222 = scmp.eq.s32.totalorder %s27, 1
      %p223 = por %p221, %p222
      %p224 = scmp.ne.s32.totalorder %s215, %s216
      %p225 = scmp.eq.s32.totalorder %s27, 0
      %p226 = por %p224, %p225
      %p227 = scmp.ne.s32.totalorder %s215, %s216
      %p228 = scmp.eq.s32.totalorder %s28, 1
      %p229 = por %p227, %p228
      %p231 = scmp.ne.s32.totalorder %s216, %s230
      %p232 = scmp.eq.s32.totalorder %s28, 0
      %p233 = por %p231, %p232
      %s234 = ssub.s32 %s22, %s29
      %p235 = scmp.eq.s32.totalorder %s234, 0
      %s237 = sadd.s32 %s236, 1
      %s238 = scalar_select %p235, %s236, %s237
      %p241 = pneg %p235
      %p242 = scmp.eq.s32.totalorder %s22, 1
      %p243 = por %p241, %p242
      %p244 = scmp.ne.s32.totalorder %s236, %s239
      %p245 = scmp.eq.s32.totalorder %s22, 0
      %p246 = por %p244, %p245
      %p247 = scmp.ne.s32.totalorder %s236, %s239
      %p248 = scmp.eq.s32.totalorder %s27, 1
      %p249 = por %p247, %p248
      %p250 = scmp.ne.s32.totalorder %s239, %s240
      %p251 = scmp.eq.s32.totalorder %s27, 0
      %p252 = por %p250, %p251
      %p253 = scmp.ne.s32.totalorder %s239, %s240
      %p254 = scmp.eq.s32.totalorder %s28, 1
      %p255 = por %p253, %p254
      %p257 = scmp.ne.s32.totalorder %s240, %s256
      %p258 = scmp.eq.s32.totalorder %s28, 0
      %p259 = por %p257, %p258
      %p260 = scmp.le.s32.totalorder 1, %s22
      %p261 = scmp.lt.s32.totalorder %s22, 3
      %p262 = pnand %p260, %p261
      %p263 = pneg %p262
      // Predicated region
      $region9: #{tpu_custom_call.1} parent=5 // pred_check
        _
      $region10: #{tpu_custom_call.1} parent=5 // pred_check_branch
        %265 = sbr.rel (%p262) target = $region12
      $region11: #{tpu_custom_call.1} parent=5 // pred_region
        %s266 = ssub.s32 %s22, 1
        // Predicated region
        $region13: #{tpu_custom_call.1} parent=11 // pred_check
          %p267 = pneg %p121
        $region14: #{tpu_custom_call.1} parent=11 // pred_check_branch
          %269 = sbr.rel (%p267) target = $region16
        $region15: #{tpu_custom_call.1} parent=11 // pred_region
          %s271 = ssub.s32 128, 128
          %272 = vsyncadd [#allocation8], %s271
          %s274 = sshll.u32 [#allocation7], 4
          %s275 = int_to_ptr.vmem [resolvable:$true] %s274
          %277 = dma.hbm_to_vmem [thread:$0]  %s3, 128, %s275, [#allocation8]
        $region16: #{tpu_custom_call.1} parent=11 // pred_fallthru
          _
        // Predicated region
        $region17: #{tpu_custom_call.1} parent=11 // pred_check
          %p278 = pneg %p142
        $region18: #{tpu_custom_call.1} parent=11 // pred_check_branch
          %280 = sbr.rel (%p278) target = $region20
        $region19: #{tpu_custom_call.1} parent=11 // pred_region
          _
        $region20: #{tpu_custom_call.1} parent=11 // pred_fallthru
          _
        // Predicated region
        $region21: #{tpu_custom_call.1} parent=11 // pred_check
          %p281 = pneg %p163
        $region22: #{tpu_custom_call.1} parent=11 // pred_check_branch
          %283 = sbr.rel (%p281) target = $region24
        $region23: #{tpu_custom_call.1} parent=11 // pred_region
          _
        $region24: #{tpu_custom_call.1} parent=11 // pred_fallthru
          _
        // Predicated region
        $region25: #{tpu_custom_call.1} parent=11 // pred_check
          %p284 = pneg %p184
        $region26: #{tpu_custom_call.1} parent=11 // pred_check_branch
          %286 = sbr.rel (%p284) target = $region28
        $region27: #{tpu_custom_call.1} parent=11 // pred_region
          _
        $region28: #{tpu_custom_call.1} parent=11 // pred_fallthru
          _
        // Predicated region
        $region29: #{tpu_custom_call.1} parent=11 // pred_check
          %p287 = pneg %p205
        $region30: #{tpu_custom_call.1} parent=11 // pred_check_branch
          %289 = sbr.rel (%p287) target = $region32
        $region31: #{tpu_custom_call.1} parent=11 // pred_region
          %s291 = ssub.s32 4096, 4096
          %292 = vsyncadd [#allocation8], %s291
          %s293 = sshll.u32 [#allocation9], 4
          %s294 = int_to_ptr.vmem [resolvable:$true] %s293
          %299 = dma.hbm_to_vmem [thread:$0]  %s7, 4096, %s294, [#allocation8], 64, 64, 4
        $region32: #{tpu_custom_call.1} parent=11 // pred_fallthru
          _
        // Predicated region
        $region33: #{tpu_custom_call.1} parent=11 // pred_check
          %p300 = pneg %p226
        $region34: #{tpu_custom_call.1} parent=11 // pred_check_branch
          %302 = sbr.rel (%p300) target = $region36
        $region35: #{tpu_custom_call.1} parent=11 // pred_region
          _
        $region36: #{tpu_custom_call.1} parent=11 // pred_fallthru
          _
      $region12: #{tpu_custom_call.1} parent=5 // pred_fallthru
        _
      %p303 = scmp.lt.s32.totalorder %s22, 2
      // Predicated region
      $region37: #{tpu_custom_call.1} parent=5 // pred_check
        %p304 = pneg %p303
      $region38: #{tpu_custom_call.1} parent=5 // pred_check_branch
        %306 = sbr.rel (%p304) target = $region40
      $region39: #{tpu_custom_call.1} parent=5 // pred_region
        // Predicated region
        $region41: #{tpu_custom_call.1} parent=39 // pred_check
          %p307 = pneg %p42
        $region42: #{tpu_custom_call.1} parent=39 // pred_check_branch
          %309 = sbr.rel (%p307) target = $region44
        $region43: #{tpu_custom_call.1} parent=39 // pred_region
          %p310 = scmp.lt.s32.totalorder %s22, 1
          %s311 = scalar_select %p310, %s22, 1
          %s312 = smul.addr %s311, 32
          %s313 = smul.addr %s312, 8
          %s314 = scalar_lea.vmem %s0, %s313
        $region44: #{tpu_custom_call.1} parent=39 // pred_fallthru
          _
        // Predicated region
        $region45: #{tpu_custom_call.1} parent=39 // pred_check
          %p315 = pneg %p68
        $region46: #{tpu_custom_call.1} parent=39 // pred_check_branch
          %317 = sbr.rel (%p315) target = $region48
        $region47: #{tpu_custom_call.1} parent=39 // pred_region
          %p318 = scmp.lt.s32.totalorder %s22, 1
          %s319 = scalar_select %p318, %s22, 1
          %s320 = smul.addr %s319, 2
          %s321 = smul.addr %s320, 8
          %s322 = scalar_lea.vmem %s1, %s321
        $region48: #{tpu_custom_call.1} parent=39 // pred_fallthru
          _
        // Predicated region
        $region49: #{tpu_custom_call.1} parent=39 // pred_check
          %p323 = pneg %p94
        $region50: #{tpu_custom_call.1} parent=39 // pred_check_branch
          %325 = sbr.rel (%p323) target = $region52
        $region51: #{tpu_custom_call.1} parent=39 // pred_region
          %s326 = sand.u32 %s84, 1
          %s327 = scalar_lea.sflag [#allocation5], %s326
          %s328 = sand.u32 %s84, 1
          %s329 = smul.addr %s328, 16
          %s330 = scalar_lea.vmem [#allocation4], %s329
          %s332 = ssub.s32 256, 256
          %333 = vsyncadd %s327, %s332
          %s334 = smul.addr %s22, 2
          %s335 = smul.addr %s334, 128
          %s336 = scalar_lea.hbm %s2, %s335
          %s337 = sshll.u32 %s330, 4
          %s338 = int_to_ptr.vmem [resolvable:$true] %s337
          %343 = dma.hbm_to_vmem [thread:$0]  %s336, 256, %s338, %s327, 128, 128, 8
        $region52: #{tpu_custom_call.1} parent=39 // pred_fallthru
          _
      $region40: #{tpu_custom_call.1} parent=5 // pred_fallthru
        _
      %p344 = scmp.le.s32.totalorder 1, %s22
      %p345 = scmp.lt.s32.totalorder %s22, 3
      %p346 = pnand %p344, %p345
      %p347 = pneg %p346
      // Predicated region
      $region53: #{tpu_custom_call.1} parent=5 // pred_check
        _
      $region54: #{tpu_custom_call.1} parent=5 // pred_check_branch
        %349 = sbr.rel (%p346) target = $region56
      $region55: #{tpu_custom_call.1} parent=5 // pred_region
        %s350 = ssub.s32 %s22, 1
        %s351 = sand.u32 %s87, 1
        %s352 = scalar_lea.sflag [#allocation5], %s351
        %s353 = sand.u32 %s87, 1
        %s354 = smul.addr %s353, 16
        %s355 = scalar_lea.vmem [#allocation4], %s354
        // Predicated region
        $region57: #{tpu_custom_call.1} parent=55 // pred_check
          %p356 = pneg %p100
        $region58: #{tpu_custom_call.1} parent=55 // pred_check_branch
          %358 = sbr.rel (%p356) target = $region60
        $region59: #{tpu_custom_call.1} parent=55 // pred_region
          %359 = dma.done %s352, 256
        $region60: #{tpu_custom_call.1} parent=55 // pred_fallthru
          _
        // Predicated region
        $region61: #{tpu_custom_call.1} parent=55 // pred_check
          %p360 = pneg %p121
        $region62: #{tpu_custom_call.1} parent=55 // pred_check_branch
          %362 = sbr.rel (%p360) target = $region64
        $region63: #{tpu_custom_call.1} parent=55 // pred_region
          %363 = dma.done [#allocation8], 128
        $region64: #{tpu_custom_call.1} parent=55 // pred_fallthru
          _
        // Predicated region
        $region65: #{tpu_custom_call.1} parent=55 // pred_check
          %p364 = pneg %p205
        $region66: #{tpu_custom_call.1} parent=55 // pred_check_branch
          %366 = sbr.rel (%p364) target = $region68
        $region67: #{tpu_custom_call.1} parent=55 // pred_region
          %367 = dma.done [#allocation8], 4096
        $region68: #{tpu_custom_call.1} parent=55 // pred_fallthru
          _
        %p368 = scmp.lt.s32.totalorder %s27, 1
        %s369 = scalar_select %p368, %s27, 1
        %s370 = smul.addr %s369, 32
        %s371 = smul.addr %s370, 8
        %s372 = scalar_lea.vmem %s0, %s371
        %p373 = pneg %p48
        %p374 = pneg %p45
        %p375 = scmp.lt.s32.totalorder %s27, 1
        %s376 = scalar_select %p375, %s27, 1
        %s377 = smul.addr %s376, 2
        %s378 = smul.addr %s377, 8
        %s379 = scalar_lea.vmem %s1, %s378
        %p380 = pneg %p74
        %p381 = pneg %p71
        %s382 = sand.u32 %s87, 1
        %s383 = scalar_lea.sflag [#allocation5], %s382
        %s384 = sand.u32 %s87, 1
        %s385 = smul.addr %s384, 16
        %s386 = scalar_lea.vmem [#allocation4], %s385
        %p387 = pneg %p100
        %p388 = pneg %p97
        %p389 = pneg %p121
        %p390 = pneg %p118
        %p391 = pneg %p142
        %p392 = pneg %p139
        %p393 = pneg %p163
        %p394 = pneg %p160
        %p395 = pneg %p184
        %p396 = pneg %p181
        %p397 = pneg %p205
        %p398 = pneg %p202
        %p399 = pneg %p226
        %p400 = pneg %p223
        %p401 = pneg %p252
        %p402 = pneg %p249
        %s403 = sand.u32 %s239, 1
        %s404 = scalar_lea.sflag [#allocation6], %s403
        %s405 = sand.u32 %s239, 1
        %s406 = scalar_lea.vmem [#allocation10], %s405
        %p407 = scmp.lt.s32.totalorder %s27, 1
        %s408 = scalar_select %p407, %s27, 1
        %s409 = smul.addr %s408, 32
        %s410 = smul.addr %s409, 8
        %s411 = scalar_lea.vmem %s0, %s410
        %p412 = scmp.lt.s32.totalorder %s27, 1
        %s413 = scalar_select %p412, %s27, 1
        %s414 = smul.addr %s413, 2
        %s415 = smul.addr %s414, 8
        %s416 = scalar_lea.vmem %s1, %s415
        %v418 = vld [vmem:[%s411] sm:$0xff]
        %v419 = vld [vmem:[%s411 + $0x8] sm:$0xff]
        %v420 = vld [vmem:[%s411 + $0x10] sm:$0xff]
        %v421 = vld [vmem:[%s411 + $0x18] sm:$0xff]
        %v422 = vld [vmem:[%s411 + $0x20] sm:$0xff]
        %v423 = vld [vmem:[%s411 + $0x28] sm:$0xff]
        %v424 = vld [vmem:[%s411 + $0x30] sm:$0xff]
        %v425 = vld [vmem:[%s411 + $0x38] sm:$0xff]
        %v426 = vld [vmem:[%s411 + $0x40] sm:$0xff]
        %v427 = vld [vmem:[%s411 + $0x48] sm:$0xff]
        %v428 = vld [vmem:[%s411 + $0x50] sm:$0xff]
        %v429 = vld [vmem:[%s411 + $0x58] sm:$0xff]
        %v430 = vld [vmem:[%s411 + $0x60] sm:$0xff]
        %v431 = vld [vmem:[%s411 + $0x68] sm:$0xff]
        %v432 = vld [vmem:[%s411 + $0x70] sm:$0xff]
        %v433 = vld [vmem:[%s411 + $0x78] sm:$0xff]
        %v434 = vld [vmem:[%s411 + $0x80] sm:$0xff]
        %v435 = vld [vmem:[%s411 + $0x88] sm:$0xff]
        %v436 = vld [vmem:[%s411 + $0x90] sm:$0xff]
        %v437 = vld [vmem:[%s411 + $0x98] sm:$0xff]
        %v438 = vld [vmem:[%s411 + $0xa0] sm:$0xff]
        %v439 = vld [vmem:[%s411 + $0xa8] sm:$0xff]
        %v440 = vld [vmem:[%s411 + $0xb0] sm:$0xff]
        %v441 = vld [vmem:[%s411 + $0xb8] sm:$0xff]
        %v442 = vld [vmem:[%s411 + $0xc0] sm:$0xff]
        %v443 = vld [vmem:[%s411 + $0xc8] sm:$0xff]
        %v444 = vld [vmem:[%s411 + $0xd0] sm:$0xff]
        %v445 = vld [vmem:[%s411 + $0xd8] sm:$0xff]
        %v446 = vld [vmem:[%s411 + $0xe0] sm:$0xff]
        %v447 = vld [vmem:[%s411 + $0xe8] sm:$0xff]
        %v448 = vld [vmem:[%s411 + $0xf0] sm:$0xff]
        %v449 = vld [vmem:[%s411 + $0xf8] sm:$0xff]
        %v450 = vld [vmem:[#allocation7] sm:$0xff]
        %452 = vset.pattern.permute.xlu0 0
        %453 = vperm.xlu0 %452, %v418
        %v454 = vpop.permute.xlu0 %453
        %457 = vset.pattern.permute.xlu0 0
        %458 = vperm.xlu0 %457, %v419
        %v459 = vpop.permute.xlu0 %458
        %462 = vset.pattern.permute.xlu0 0
        %463 = vperm.xlu0 %462, %v420
        %v464 = vpop.permute.xlu0 %463
        %467 = vset.pattern.permute.xlu0 0
        %468 = vperm.xlu0 %467, %v421
        %v469 = vpop.permute.xlu0 %468
        %472 = vset.pattern.permute.xlu0 0
        %473 = vperm.xlu0 %472, %v422
        %v474 = vpop.permute.xlu0 %473
        %477 = vset.pattern.permute.xlu0 0
        %478 = vperm.xlu0 %477, %v423
        %v479 = vpop.permute.xlu0 %478
        %482 = vset.pattern.permute.xlu0 0
        %483 = vperm.xlu0 %482, %v424
        %v484 = vpop.permute.xlu0 %483
        %487 = vset.pattern.permute.xlu0 0
        %488 = vperm.xlu0 %487, %v425
        %v489 = vpop.permute.xlu0 %488
        %492 = vset.pattern.permute.xlu0 0
        %493 = vperm.xlu0 %492, %v426
        %v494 = vpop.permute.xlu0 %493
        %497 = vset.pattern.permute.xlu0 0
        %498 = vperm.xlu0 %497, %v427
        %v499 = vpop.permute.xlu0 %498
        %502 = vset.pattern.permute.xlu0 0
        %503 = vperm.xlu0 %502, %v428
        %v504 = vpop.permute.xlu0 %503
        %507 = vset.pattern.permute.xlu0 0
        %508 = vperm.xlu0 %507, %v429
        %v509 = vpop.permute.xlu0 %508
        %512 = vset.pattern.permute.xlu0 0
        %513 = vperm.xlu0 %512, %v430
        %v514 = vpop.permute.xlu0 %513
        %517 = vset.pattern.permute.xlu0 0
        %518 = vperm.xlu0 %517, %v431
        %v519 = vpop.permute.xlu0 %518
        %522 = vset.pattern.permute.xlu0 0
        %523 = vperm.xlu0 %522, %v432
        %v524 = vpop.permute.xlu0 %523
        %527 = vset.pattern.permute.xlu0 0
        %528 = vperm.xlu0 %527, %v433
        %v529 = vpop.permute.xlu0 %528
        %532 = vset.pattern.permute.xlu0 0
        %533 = vperm.xlu0 %532, %v434
        %v534 = vpop.permute.xlu0 %533
        %537 = vset.pattern.permute.xlu0 0
        %538 = vperm.xlu0 %537, %v435
        %v539 = vpop.permute.xlu0 %538
        %542 = vset.pattern.permute.xlu0 0
        %543 = vperm.xlu0 %542, %v436
        %v544 = vpop.permute.xlu0 %543
        %547 = vset.pattern.permute.xlu0 0
        %548 = vperm.xlu0 %547, %v437
        %v549 = vpop.permute.xlu0 %548
        %552 = vset.pattern.permute.xlu0 0
        %553 = vperm.xlu0 %552, %v438
        %v554 = vpop.permute.xlu0 %553
        %557 = vset.pattern.permute.xlu0 0
        %558 = vperm.xlu0 %557, %v439
        %v559 = vpop.permute.xlu0 %558
        %562 = vset.pattern.permute.xlu0 0
        %563 = vperm.xlu0 %562, %v440
        %v564 = vpop.permute.xlu0 %563
        %567 = vset.pattern.permute.xlu0 0
        %568 = vperm.xlu0 %567, %v441
        %v569 = vpop.permute.xlu0 %568
        %572 = vset.pattern.permute.xlu0 0
        %573 = vperm.xlu0 %572, %v442
        %v574 = vpop.permute.xlu0 %573
        %577 = vset.pattern.permute.xlu0 0
        %578 = vperm.xlu0 %577, %v443
        %v579 = vpop.permute.xlu0 %578
        %582 = vset.pattern.permute.xlu0 0
        %583 = vperm.xlu0 %582, %v444
        %v584 = vpop.permute.xlu0 %583
        %587 = vset.pattern.permute.xlu0 0
        %588 = vperm.xlu0 %587, %v445
        %v589 = vpop.permute.xlu0 %588
        %592 = vset.pattern.permute.xlu0 0
        %593 = vperm.xlu0 %592, %v446
        %v594 = vpop.permute.xlu0 %593
        %597 = vset.pattern.permute.xlu0 0
        %598 = vperm.xlu0 %597, %v447
        %v599 = vpop.permute.xlu0 %598
        %602 = vset.pattern.permute.xlu0 0
        %603 = vperm.xlu0 %602, %v448
        %v604 = vpop.permute.xlu0 %603
        %607 = vset.pattern.permute.xlu0 0
        %608 = vperm.xlu0 %607, %v449
        %v609 = vpop.permute.xlu0 %608
        %v612 = vlaneseq
        %v613 = vshrl.u32 %v612, 7
        %v614 = vsub.s32 0, %v613
        %v615 = vrot.slane %v450, %v614
        %v616 = vlaneseq
        %v617 = vshrl.u32 %v616, 7
        %v618 = vsub.s32 4, %v617
        %v619 = vrot.slane %v450, %v618
        %v622 = vlaneseq
        %v623 = vshrl.u32 %v622, 7
        %v624 = vsub.s32 0, %v623
        %v625 = vrot.slane %v615, %v624
        %v626 = vlaneseq
        %v627 = vshrl.u32 %v626, 7
        %v628 = vsub.s32 0, %v627
        %v629 = vrot.slane %v619, %v628
        %v630 = vmul.f32 %v454, %v625
        %v631 = vmul.f32 %v454, %v629
        %v632 = vmul.f32 %v459, %v625
        %v633 = vmul.f32 %v459, %v629
        %v634 = vmul.f32 %v464, %v625
        %v635 = vmul.f32 %v464, %v629
        %v636 = vmul.f32 %v469, %v625
        %v637 = vmul.f32 %v469, %v629
        %v638 = vmul.f32 %v474, %v625
        %v639 = vmul.f32 %v474, %v629
        %v640 = vmul.f32 %v479, %v625
        %v641 = vmul.f32 %v479, %v629
        %v642 = vmul.f32 %v484, %v625
        %v643 = vmul.f32 %v484, %v629
        %v644 = vmul.f32 %v489, %v625
        %v645 = vmul.f32 %v489, %v629
        %v646 = vmul.f32 %v494, %v625
        %v647 = vmul.f32 %v494, %v629
        %v648 = vmul.f32 %v499, %v625
        %v649 = vmul.f32 %v499, %v629
        %v650 = vmul.f32 %v504, %v625
        %v651 = vmul.f32 %v504, %v629
        %v652 = vmul.f32 %v509, %v625
        %v653 = vmul.f32 %v509, %v629
        %v654 = vmul.f32 %v514, %v625
        %v655 = vmul.f32 %v514, %v629
        %v656 = vmul.f32 %v519, %v625
        %v657 = vmul.f32 %v519, %v629
        %v658 = vmul.f32 %v524, %v625
        %v659 = vmul.f32 %v524, %v629
        %v660 = vmul.f32 %v529, %v625
        %v661 = vmul.f32 %v529, %v629
        %v662 = vmul.f32 %v534, %v625
        %v663 = vmul.f32 %v534, %v629
        %v664 = vmul.f32 %v539, %v625
        %v665 = vmul.f32 %v539, %v629
        %v666 = vmul.f32 %v544, %v625
        %v667 = vmul.f32 %v544, %v629
        %v668 = vmul.f32 %v549, %v625
        %v669 = vmul.f32 %v549, %v629
        %v670 = vmul.f32 %v554, %v625
        %v671 = vmul.f32 %v554, %v629
        %v672 = vmul.f32 %v559, %v625
        %v673 = vmul.f32 %v559, %v629
        %v674 = vmul.f32 %v564, %v625
        %v675 = vmul.f32 %v564, %v629
        %v676 = vmul.f32 %v569, %v625
        %v677 = vmul.f32 %v569, %v629
        %v678 = vmul.f32 %v574, %v625
        %v679 = vmul.f32 %v574, %v629
        %v680 = vmul.f32 %v579, %v625
        %v681 = vmul.f32 %v579, %v629
        %v682 = vmul.f32 %v584, %v625
        %v683 = vmul.f32 %v584, %v629
        %v684 = vmul.f32 %v589, %v625
        %v685 = vmul.f32 %v589, %v629
        %v686 = vmul.f32 %v594, %v625
        %v687 = vmul.f32 %v594, %v629
        %v688 = vmul.f32 %v599, %v625
        %v689 = vmul.f32 %v599, %v629
        %v690 = vmul.f32 %v604, %v625
        %v691 = vmul.f32 %v604, %v629
        %v692 = vmul.f32 %v609, %v625
        %v693 = vmul.f32 %v609, %v629
        %v694 = vadd.f32 %v630, 0.0
        %v695 = vadd.f32 %v631, 0.0
        %v696 = vadd.f32 %v632, 0.0
        %v697 = vadd.f32 %v633, 0.0
        %v698 = vadd.f32 %v634, 0.0
        %v699 = vadd.f32 %v635, 0.0
        %v700 = vadd.f32 %v636, 0.0
        %v701 = vadd.f32 %v637, 0.0
        %v702 = vadd.f32 %v638, 0.0
        %v703 = vadd.f32 %v639, 0.0
        %v704 = vadd.f32 %v640, 0.0
        %v705 = vadd.f32 %v641, 0.0
        %v706 = vadd.f32 %v642, 0.0
        %v707 = vadd.f32 %v643, 0.0
        %v708 = vadd.f32 %v644, 0.0
        %v709 = vadd.f32 %v645, 0.0
        %v710 = vadd.f32 %v646, 0.0
        %v711 = vadd.f32 %v647, 0.0
        %v712 = vadd.f32 %v648, 0.0
        %v713 = vadd.f32 %v649, 0.0
        %v714 = vadd.f32 %v650, 0.0
        %v715 = vadd.f32 %v651, 0.0
        %v716 = vadd.f32 %v652, 0.0
        %v717 = vadd.f32 %v653, 0.0
        %v718 = vadd.f32 %v654, 0.0
        %v719 = vadd.f32 %v655, 0.0
        %v720 = vadd.f32 %v656, 0.0
        %v721 = vadd.f32 %v657, 0.0
        %v722 = vadd.f32 %v658, 0.0
        %v723 = vadd.f32 %v659, 0.0
        %v724 = vadd.f32 %v660, 0.0
        %v725 = vadd.f32 %v661, 0.0
        %v726 = vadd.f32 %v662, 0.0
        %v727 = vadd.f32 %v663, 0.0
        %v728 = vadd.f32 %v664, 0.0
        %v729 = vadd.f32 %v665, 0.0
        %v730 = vadd.f32 %v666, 0.0
        %v731 = vadd.f32 %v667, 0.0
        %v732 = vadd.f32 %v668, 0.0
        %v733 = vadd.f32 %v669, 0.0
        %v734 = vadd.f32 %v670, 0.0
        %v735 = vadd.f32 %v671, 0.0
        %v736 = vadd.f32 %v672, 0.0
        %v737 = vadd.f32 %v673, 0.0
        %v738 = vadd.f32 %v674, 0.0
        %v739 = vadd.f32 %v675, 0.0
        %v740 = vadd.f32 %v676, 0.0
        %v741 = vadd.f32 %v677, 0.0
        %v742 = vadd.f32 %v678, 0.0
        %v743 = vadd.f32 %v679, 0.0
        %v744 = vadd.f32 %v680, 0.0
        %v745 = vadd.f32 %v681, 0.0
        %v746 = vadd.f32 %v682, 0.0
        %v747 = vadd.f32 %v683, 0.0
        %v748 = vadd.f32 %v684, 0.0
        %v749 = vadd.f32 %v685, 0.0
        %v750 = vadd.f32 %v686, 0.0
        %v751 = vadd.f32 %v687, 0.0
        %v752 = vadd.f32 %v688, 0.0
        %v753 = vadd.f32 %v689, 0.0
        %v754 = vadd.f32 %v690, 0.0
        %v755 = vadd.f32 %v691, 0.0
        %v756 = vadd.f32 %v692, 0.0
        %v757 = vadd.f32 %v693, 0.0
        %758 = vset.pattern.permute.xlu0 1
        %759 = vperm.xlu0 %758, %v418
        %v760 = vpop.permute.xlu0 %759
        %762 = vset.pattern.permute.xlu0 1
        %763 = vperm.xlu0 %762, %v419
        %v764 = vpop.permute.xlu0 %763
        %766 = vset.pattern.permute.xlu0 1
        %767 = vperm.xlu0 %766, %v420
        %v768 = vpop.permute.xlu0 %767
        %770 = vset.pattern.permute.xlu0 1
        %771 = vperm.xlu0 %770, %v421
        %v772 = vpop.permute.xlu0 %771
        %774 = vset.pattern.permute.xlu0 1
        %775 = vperm.xlu0 %774, %v422
        %v776 = vpop.permute.xlu0 %775
        %778 = vset.pattern.permute.xlu0 1
        %779 = vperm.xlu0 %778, %v423
        %v780 = vpop.permute.xlu0 %779
        %782 = vset.pattern.permute.xlu0 1
        %783 = vperm.xlu0 %782, %v424
        %v784 = vpop.permute.xlu0 %783
        %786 = vset.pattern.permute.xlu0 1
        %787 = vperm.xlu0 %786, %v425
        %v788 = vpop.permute.xlu0 %787
        %790 = vset.pattern.permute.xlu0 1
        %791 = vperm.xlu0 %790, %v426
        %v792 = vpop.permute.xlu0 %791
        %794 = vset.pattern.permute.xlu0 1
        %795 = vperm.xlu0 %794, %v427
        %v796 = vpop.permute.xlu0 %795
        %798 = vset.pattern.permute.xlu0 1
        %799 = vperm.xlu0 %798, %v428
        %v800 = vpop.permute.xlu0 %799
        %802 = vset.pattern.permute.xlu0 1
        %803 = vperm.xlu0 %802, %v429
        %v804 = vpop.permute.xlu0 %803
        %806 = vset.pattern.permute.xlu0 1
        %807 = vperm.xlu0 %806, %v430
        %v808 = vpop.permute.xlu0 %807
        %810 = vset.pattern.permute.xlu0 1
        %811 = vperm.xlu0 %810, %v431
        %v812 = vpop.permute.xlu0 %811
        %814 = vset.pattern.permute.xlu0 1
        %815 = vperm.xlu0 %814, %v432
        %v816 = vpop.permute.xlu0 %815
        %818 = vset.pattern.permute.xlu0 1
        %819 = vperm.xlu0 %818, %v433
        %v820 = vpop.permute.xlu0 %819
        %822 = vset.pattern.permute.xlu0 1
        %823 = vperm.xlu0 %822, %v434
        %v824 = vpop.permute.xlu0 %823
        %826 = vset.pattern.permute.xlu0 1
        %827 = vperm.xlu0 %826, %v435
        %v828 = vpop.permute.xlu0 %827
        %830 = vset.pattern.permute.xlu0 1
        %831 = vperm.xlu0 %830, %v436
        %v832 = vpop.permute.xlu0 %831
        %834 = vset.pattern.permute.xlu0 1
        %835 = vperm.xlu0 %834, %v437
        %v836 = vpop.permute.xlu0 %835
        %838 = vset.pattern.permute.xlu0 1
        %839 = vperm.xlu0 %838, %v438
        %v840 = vpop.permute.xlu0 %839
        %842 = vset.pattern.permute.xlu0 1
        %843 = vperm.xlu0 %842, %v439
        %v844 = vpop.permute.xlu0 %843
        %846 = vset.pattern.permute.xlu0 1
        %847 = vperm.xlu0 %846, %v440
        %v848 = vpop.permute.xlu0 %847
        %850 = vset.pattern.permute.xlu0 1
        %851 = vperm.xlu0 %850, %v441
        %v852 = vpop.permute.xlu0 %851
        %854 = vset.pattern.permute.xlu0 1
        %855 = vperm.xlu0 %854, %v442
        %v856 = vpop.permute.xlu0 %855
        %858 = vset.pattern.permute.xlu0 1
        %859 = vperm.xlu0 %858, %v443
        %v860 = vpop.permute.xlu0 %859
        %862 = vset.pattern.permute.xlu0 1
        %863 = vperm.xlu0 %862, %v444
        %v864 = vpop.permute.xlu0 %863
        %866 = vset.pattern.permute.xlu0 1
        %867 = vperm.xlu0 %866, %v445
        %v868 = vpop.permute.xlu0 %867
        %870 = vset.pattern.permute.xlu0 1
        %871 = vperm.xlu0 %870, %v446
        %v872 = vpop.permute.xlu0 %871
        %874 = vset.pattern.permute.xlu0 1
        %875 = vperm.xlu0 %874, %v447
        %v876 = vpop.permute.xlu0 %875
        %878 = vset.pattern.permute.xlu0 1
        %879 = vperm.xlu0 %878, %v448
        %v880 = vpop.permute.xlu0 %879
        %882 = vset.pattern.permute.xlu0 1
        %883 = vperm.xlu0 %882, %v449
        %v884 = vpop.permute.xlu0 %883
        %v886 = vlaneseq
        %v887 = vshrl.u32 %v886, 7
        %v888 = vsub.s32 1, %v887
        %v889 = vrot.slane %v450, %v888
        %v890 = vlaneseq
        %v891 = vshrl.u32 %v890, 7
        %v892 = vsub.s32 5, %v891
        %v893 = vrot.slane %v450, %v892
        %v896 = vlaneseq
        %v897 = vshrl.u32 %v896, 7
        %v898 = vsub.s32 1, %v897
        %v899 = vrot.slane %v889, %v898
        %v900 = vlaneseq
        %v901 = vshrl.u32 %v900, 7
        %v902 = vsub.s32 1, %v901
        %v903 = vrot.slane %v893, %v902
        %v904 = vmul.f32 %v760, %v899
        %v905 = vmul.f32 %v760, %v903
        %v906 = vmul.f32 %v764, %v899
        %v907 = vmul.f32 %v764, %v903
        %v908 = vmul.f32 %v768, %v899
        %v909 = vmul.f32 %v768, %v903
        %v910 = vmul.f32 %v772, %v899
        %v911 = vmul.f32 %v772, %v903
        %v912 = vmul.f32 %v776, %v899
        %v913 = vmul.f32 %v776, %v903
        %v914 = vmul.f32 %v780, %v899
        %v915 = vmul.f32 %v780, %v903
        %v916 = vmul.f32 %v784, %v899
        %v917 = vmul.f32 %v784, %v903
        %v918 = vmul.f32 %v788, %v899
        %v919 = vmul.f32 %v788, %v903
        %v920 = vmul.f32 %v792, %v899
        %v921 = vmul.f32 %v792, %v903
        %v922 = vmul.f32 %v796, %v899
        %v923 = vmul.f32 %v796, %v903
        %v924 = vmul.f32 %v800, %v899
        %v925 = vmul.f32 %v800, %v903
        %v926 = vmul.f32 %v804, %v899
        %v927 = vmul.f32 %v804, %v903
        %v928 = vmul.f32 %v808, %v899
        %v929 = vmul.f32 %v808, %v903
        %v930 = vmul.f32 %v812, %v899
        %v931 = vmul.f32 %v812, %v903
        %v932 = vmul.f32 %v816, %v899
        %v933 = vmul.f32 %v816, %v903
        %v934 = vmul.f32 %v820, %v899
        %v935 = vmul.f32 %v820, %v903
        %v936 = vmul.f32 %v824, %v899
        %v937 = vmul.f32 %v824, %v903
        %v938 = vmul.f32 %v828, %v899
        %v939 = vmul.f32 %v828, %v903
        %v940 = vmul.f32 %v832, %v899
        %v941 = vmul.f32 %v832, %v903
        %v942 = vmul.f32 %v836, %v899
        %v943 = vmul.f32 %v836, %v903
        %v944 = vmul.f32 %v840, %v899
        %v945 = vmul.f32 %v840, %v903
        %v946 = vmul.f32 %v844, %v899
        %v947 = vmul.f32 %v844, %v903
        %v948 = vmul.f32 %v848, %v899
        %v949 = vmul.f32 %v848, %v903
        %v950 = vmul.f32 %v852, %v899
        %v951 = vmul.f32 %v852, %v903
        %v952 = vmul.f32 %v856, %v899
        %v953 = vmul.f32 %v856, %v903
        %v954 = vmul.f32 %v860, %v899
        %v955 = vmul.f32 %v860, %v903
        %v956 = vmul.f32 %v864, %v899
        %v957 = vmul.f32 %v864, %v903
        %v958 = vmul.f32 %v868, %v899
        %v959 = vmul.f32 %v868, %v903
        %v960 = vmul.f32 %v872, %v899
        %v961 = vmul.f32 %v872, %v903
        %v962 = vmul.f32 %v876, %v899
        %v963 = vmul.f32 %v876, %v903
        %v964 = vmul.f32 %v880, %v899
        %v965 = vmul.f32 %v880, %v903
        %v966 = vmul.f32 %v884, %v899
        %v967 = vmul.f32 %v884, %v903
        %v968 = vadd.f32 %v694, %v904
        %v969 = vadd.f32 %v695, %v905
        %v970 = vadd.f32 %v696, %v906
        %v971 = vadd.f32 %v697, %v907
        %v972 = vadd.f32 %v698, %v908
        %v973 = vadd.f32 %v699, %v909
        %v974 = vadd.f32 %v700, %v910
        %v975 = vadd.f32 %v701, %v911
        %v976 = vadd.f32 %v702, %v912
        %v977 = vadd.f32 %v703, %v913
        %v978 = vadd.f32 %v704, %v914
        %v979 = vadd.f32 %v705, %v915
        %v980 = vadd.f32 %v706, %v916
        %v981 = vadd.f32 %v707, %v917
        %v982 = vadd.f32 %v708, %v918
        %v983 = vadd.f32 %v709, %v919
        %v984 = vadd.f32 %v710, %v920
        %v985 = vadd.f32 %v711, %v921
        %v986 = vadd.f32 %v712, %v922
        %v987 = vadd.f32 %v713, %v923
        %v988 = vadd.f32 %v714, %v924
        %v989 = vadd.f32 %v715, %v925
        %v990 = vadd.f32 %v716, %v926
        %v991 = vadd.f32 %v717, %v927
        %v992 = vadd.f32 %v718, %v928
        %v993 = vadd.f32 %v719, %v929
        %v994 = vadd.f32 %v720, %v930
        %v995 = vadd.f32 %v721, %v931
        %v996 = vadd.f32 %v722, %v932
        %v997 = vadd.f32 %v723, %v933
        %v998 = vadd.f32 %v724, %v934
        %v999 = vadd.f32 %v725, %v935
        %v1000 = vadd.f32 %v726, %v936
        %v1001 = vadd.f32 %v727, %v937
        %v1002 = vadd.f32 %v728, %v938
        %v1003 = vadd.f32 %v729, %v939
        %v1004 = vadd.f32 %v730, %v940
        %v1005 = vadd.f32 %v731, %v941
        %v1006 = vadd.f32 %v732, %v942
        %v1007 = vadd.f32 %v733, %v943
        %v1008 = vadd.f32 %v734, %v944
        %v1009 = vadd.f32 %v735, %v945
        %v1010 = vadd.f32 %v736, %v946
        %v1011 = vadd.f32 %v737, %v947
        %v1012 = vadd.f32 %v738, %v948
        %v1013 = vadd.f32 %v739, %v949
        %v1014 = vadd.f32 %v740, %v950
        %v1015 = vadd.f32 %v741, %v951
        %v1016 = vadd.f32 %v742, %v952
        %v1017 = vadd.f32 %v743, %v953
        %v1018 = vadd.f32 %v744, %v954
        %v1019 = vadd.f32 %v745, %v955
        %v1020 = vadd.f32 %v746, %v956
        %v1021 = vadd.f32 %v747, %v957
        %v1022 = vadd.f32 %v748, %v958
        %v1023 = vadd.f32 %v749, %v959
        %v1024 = vadd.f32 %v750, %v960
        %v1025 = vadd.f32 %v751, %v961
        %v1026 = vadd.f32 %v752, %v962
        %v1027 = vadd.f32 %v753, %v963
        %v1028 = vadd.f32 %v754, %v964
        %v1029 = vadd.f32 %v755, %v965
        %v1030 = vadd.f32 %v756, %v966
        %v1031 = vadd.f32 %v757, %v967
        %1032 = vset.pattern.permute.xlu0 2
        %1033 = vperm.xlu0 %1032, %v418
        %v1034 = vpop.permute.xlu0 %1033
        %1036 = vset.pattern.permute.xlu0 2
        %1037 = vperm.xlu0 %1036, %v419
        %v1038 = vpop.permute.xlu0 %1037
        %1040 = vset.pattern.permute.xlu0 2
        %1041 = vperm.xlu0 %1040, %v420
        %v1042 = vpop.permute.xlu0 %1041
        %1044 = vset.pattern.permute.xlu0 2
        %1045 = vperm.xlu0 %1044, %v421
        %v1046 = vpop.permute.xlu0 %1045
        %1048 = vset.pattern.permute.xlu0 2
        %1049 = vperm.xlu0 %1048, %v422
        %v1050 = vpop.permute.xlu0 %1049
        %1052 = vset.pattern.permute.xlu0 2
        %1053 = vperm.xlu0 %1052, %v423
        %v1054 = vpop.permute.xlu0 %1053
        %1056 = vset.pattern.permute.xlu0 2
        %1057 = vperm.xlu0 %1056, %v424
        %v1058 = vpop.permute.xlu0 %1057
        %1060 = vset.pattern.permute.xlu0 2
        %1061 = vperm.xlu0 %1060, %v425
        %v1062 = vpop.permute.xlu0 %1061
        %1064 = vset.pattern.permute.xlu0 2
        %1065 = vperm.xlu0 %1064, %v426
        %v1066 = vpop.permute.xlu0 %1065
        %1068 = vset.pattern.permute.xlu0 2
        %1069 = vperm.xlu0 %1068, %v427
        %v1070 = vpop.permute.xlu0 %1069
        %1072 = vset.pattern.permute.xlu0 2
        %1073 = vperm.xlu0 %1072, %v428
        %v1074 = vpop.permute.xlu0 %1073
        %1076 = vset.pattern.permute.xlu0 2
        %1077 = vperm.xlu0 %1076, %v429
        %v1078 = vpop.permute.xlu0 %1077
        %1080 = vset.pattern.permute.xlu0 2
        %1081 = vperm.xlu0 %1080, %v430
        %v1082 = vpop.permute.xlu0 %1081
        %1084 = vset.pattern.permute.xlu0 2
        %1085 = vperm.xlu0 %1084, %v431
        %v1086 = vpop.permute.xlu0 %1085
        %1088 = vset.pattern.permute.xlu0 2
        %1089 = vperm.xlu0 %1088, %v432
        %v1090 = vpop.permute.xlu0 %1089
        %1092 = vset.pattern.permute.xlu0 2
        %1093 = vperm.xlu0 %1092, %v433
        %v1094 = vpop.permute.xlu0 %1093
        %1096 = vset.pattern.permute.xlu0 2
        %1097 = vperm.xlu0 %1096, %v434
        %v1098 = vpop.permute.xlu0 %1097
        %1100 = vset.pattern.permute.xlu0 2
        %1101 = vperm.xlu0 %1100, %v435
        %v1102 = vpop.permute.xlu0 %1101
        %1104 = vset.pattern.permute.xlu0 2
        %1105 = vperm.xlu0 %1104, %v436
        %v1106 = vpop.permute.xlu0 %1105
        %1108 = vset.pattern.permute.xlu0 2
        %1109 = vperm.xlu0 %1108, %v437
        %v1110 = vpop.permute.xlu0 %1109
        %1112 = vset.pattern.permute.xlu0 2
        %1113 = vperm.xlu0 %1112, %v438
        %v1114 = vpop.permute.xlu0 %1113
        %1116 = vset.pattern.permute.xlu0 2
        %1117 = vperm.xlu0 %1116, %v439
        %v1118 = vpop.permute.xlu0 %1117
        %1120 = vset.pattern.permute.xlu0 2
        %1121 = vperm.xlu0 %1120, %v440
        %v1122 = vpop.permute.xlu0 %1121
        %1124 = vset.pattern.permute.xlu0 2
        %1125 = vperm.xlu0 %1124, %v441
        %v1126 = vpop.permute.xlu0 %1125
        %1128 = vset.pattern.permute.xlu0 2
        %1129 = vperm.xlu0 %1128, %v442
        %v1130 = vpop.permute.xlu0 %1129
        %1132 = vset.pattern.permute.xlu0 2
        %1133 = vperm.xlu0 %1132, %v443
        %v1134 = vpop.permute.xlu0 %1133
        %1136 = vset.pattern.permute.xlu0 2
        %1137 = vperm.xlu0 %1136, %v444
        %v1138 = vpop.permute.xlu0 %1137
        %1140 = vset.pattern.permute.xlu0 2
        %1141 = vperm.xlu0 %1140, %v445
        %v1142 = vpop.permute.xlu0 %1141
        %1144 = vset.pattern.permute.xlu0 2
        %1145 = vperm.xlu0 %1144, %v446
        %v1146 = vpop.permute.xlu0 %1145
        %1148 = vset.pattern.permute.xlu0 2
        %1149 = vperm.xlu0 %1148, %v447
        %v1150 = vpop.permute.xlu0 %1149
        %1152 = vset.pattern.permute.xlu0 2
        %1153 = vperm.xlu0 %1152, %v448
        %v1154 = vpop.permute.xlu0 %1153
        %1156 = vset.pattern.permute.xlu0 2
        %1157 = vperm.xlu0 %1156, %v449
        %v1158 = vpop.permute.xlu0 %1157
        %v1160 = vlaneseq
        %v1161 = vshrl.u32 %v1160, 7
        %v1162 = vsub.s32 2, %v1161
        %v1163 = vrot.slane %v450, %v1162
        %v1164 = vlaneseq
        %v1165 = vshrl.u32 %v1164, 7
        %v1166 = vsub.s32 6, %v1165
        %v1167 = vrot.slane %v450, %v1166
        %v1170 = vlaneseq
        %v1171 = vshrl.u32 %v1170, 7
        %v1172 = vsub.s32 2, %v1171
        %v1173 = vrot.slane %v1163, %v1172
        %v1174 = vlaneseq
        %v1175 = vshrl.u32 %v1174, 7
        %v1176 = vsub.s32 2, %v1175
        %v1177 = vrot.slane %v1167, %v1176
        %v1178 = vmul.f32 %v1034, %v1173
        %v1179 = vmul.f32 %v1034, %v1177
        %v1180 = vmul.f32 %v1038, %v1173
        %v1181 = vmul.f32 %v1038, %v1177
        %v1182 = vmul.f32 %v1042, %v1173
        %v1183 = vmul.f32 %v1042, %v1177
        %v1184 = vmul.f32 %v1046, %v1173
        %v1185 = vmul.f32 %v1046, %v1177
        %v1186 = vmul.f32 %v1050, %v1173
        %v1187 = vmul.f32 %v1050, %v1177
        %v1188 = vmul.f32 %v1054, %v1173
        %v1189 = vmul.f32 %v1054, %v1177
        %v1190 = vmul.f32 %v1058, %v1173
        %v1191 = vmul.f32 %v1058, %v1177
        %v1192 = vmul.f32 %v1062, %v1173
        %v1193 = vmul.f32 %v1062, %v1177
        %v1194 = vmul.f32 %v1066, %v1173
        %v1195 = vmul.f32 %v1066, %v1177
        %v1196 = vmul.f32 %v1070, %v1173
        %v1197 = vmul.f32 %v1070, %v1177
        %v1198 = vmul.f32 %v1074, %v1173
        %v1199 = vmul.f32 %v1074, %v1177
        %v1200 = vmul.f32 %v1078, %v1173
        %v1201 = vmul.f32 %v1078, %v1177
        %v1202 = vmul.f32 %v1082, %v1173
        %v1203 = vmul.f32 %v1082, %v1177
        %v1204 = vmul.f32 %v1086, %v1173
        %v1205 = vmul.f32 %v1086, %v1177
        %v1206 = vmul.f32 %v1090, %v1173
        %v1207 = vmul.f32 %v1090, %v1177
        %v1208 = vmul.f32 %v1094, %v1173
        %v1209 = vmul.f32 %v1094, %v1177
        %v1210 = vmul.f32 %v1098, %v1173
        %v1211 = vmul.f32 %v1098, %v1177
        %v1212 = vmul.f32 %v1102, %v1173
        %v1213 = vmul.f32 %v1102, %v1177
        %v1214 = vmul.f32 %v1106, %v1173
        %v1215 = vmul.f32 %v1106, %v1177
        %v1216 = vmul.f32 %v1110, %v1173
        %v1217 = vmul.f32 %v1110, %v1177
        %v1218 = vmul.f32 %v1114, %v1173
        %v1219 = vmul.f32 %v1114, %v1177
        %v1220 = vmul.f32 %v1118, %v1173
        %v1221 = vmul.f32 %v1118, %v1177
        %v1222 = vmul.f32 %v1122, %v1173
        %v1223 = vmul.f32 %v1122, %v1177
        %v1224 = vmul.f32 %v1126, %v1173
        %v1225 = vmul.f32 %v1126, %v1177
        %v1226 = vmul.f32 %v1130, %v1173
        %v1227 = vmul.f32 %v1130, %v1177
        %v1228 = vmul.f32 %v1134, %v1173
        %v1229 = vmul.f32 %v1134, %v1177
        %v1230 = vmul.f32 %v1138, %v1173
        %v1231 = vmul.f32 %v1138, %v1177
        %v1232 = vmul.f32 %v1142, %v1173
        %v1233 = vmul.f32 %v1142, %v1177
        %v1234 = vmul.f32 %v1146, %v1173
        %v1235 = vmul.f32 %v1146, %v1177
        %v1236 = vmul.f32 %v1150, %v1173
        %v1237 = vmul.f32 %v1150, %v1177
        %v1238 = vmul.f32 %v1154, %v1173
        %v1239 = vmul.f32 %v1154, %v1177
        %v1240 = vmul.f32 %v1158, %v1173
        %v1241 = vmul.f32 %v1158, %v1177
        %v1242 = vadd.f32 %v968, %v1178
        %v1243 = vadd.f32 %v969, %v1179
        %v1244 = vadd.f32 %v970, %v1180
        %v1245 = vadd.f32 %v971, %v1181
        %v1246 = vadd.f32 %v972, %v1182
        %v1247 = vadd.f32 %v973, %v1183
        %v1248 = vadd.f32 %v974, %v1184
        %v1249 = vadd.f32 %v975, %v1185
        %v1250 = vadd.f32 %v976, %v1186
        %v1251 = vadd.f32 %v977, %v1187
        %v1252 = vadd.f32 %v978, %v1188
        %v1253 = vadd.f32 %v979, %v1189
        %v1254 = vadd.f32 %v980, %v1190
        %v1255 = vadd.f32 %v981, %v1191
        %v1256 = vadd.f32 %v982, %v1192
        %v1257 = vadd.f32 %v983, %v1193
        %v1258 = vadd.f32 %v984, %v1194
        %v1259 = vadd.f32 %v985, %v1195
        %v1260 = vadd.f32 %v986, %v1196
        %v1261 = vadd.f32 %v987, %v1197
        %v1262 = vadd.f32 %v988, %v1198
        %v1263 = vadd.f32 %v989, %v1199
        %v1264 = vadd.f32 %v990, %v1200
        %v1265 = vadd.f32 %v991, %v1201
        %v1266 = vadd.f32 %v992, %v1202
        %v1267 = vadd.f32 %v993, %v1203
        %v1268 = vadd.f32 %v994, %v1204
        %v1269 = vadd.f32 %v995, %v1205
        %v1270 = vadd.f32 %v996, %v1206
        %v1271 = vadd.f32 %v997, %v1207
        %v1272 = vadd.f32 %v998, %v1208
        %v1273 = vadd.f32 %v999, %v1209
        %v1274 = vadd.f32 %v1000, %v1210
        %v1275 = vadd.f32 %v1001, %v1211
        %v1276 = vadd.f32 %v1002, %v1212
        %v1277 = vadd.f32 %v1003, %v1213
        %v1278 = vadd.f32 %v1004, %v1214
        %v1279 = vadd.f32 %v1005, %v1215
        %v1280 = vadd.f32 %v1006, %v1216
        %v1281 = vadd.f32 %v1007, %v1217
        %v1282 = vadd.f32 %v1008, %v1218
        %v1283 = vadd.f32 %v1009, %v1219
        %v1284 = vadd.f32 %v1010, %v1220
        %v1285 = vadd.f32 %v1011, %v1221
        %v1286 = vadd.f32 %v1012, %v1222
        %v1287 = vadd.f32 %v1013, %v1223
        %v1288 = vadd.f32 %v1014, %v1224
        %v1289 = vadd.f32 %v1015, %v1225
        %v1290 = vadd.f32 %v1016, %v1226
        %v1291 = vadd.f32 %v1017, %v1227
        %v1292 = vadd.f32 %v1018, %v1228
        %v1293 = vadd.f32 %v1019, %v1229
        %v1294 = vadd.f32 %v1020, %v1230
        %v1295 = vadd.f32 %v1021, %v1231
        %v1296 = vadd.f32 %v1022, %v1232
        %v1297 = vadd.f32 %v1023, %v1233
        %v1298 = vadd.f32 %v1024, %v1234
        %v1299 = vadd.f32 %v1025, %v1235
        %v1300 = vadd.f32 %v1026, %v1236
        %v1301 = vadd.f32 %v1027, %v1237
        %v1302 = vadd.f32 %v1028, %v1238
        %v1303 = vadd.f32 %v1029, %v1239
        %v1304 = vadd.f32 %v1030, %v1240
        %v1305 = vadd.f32 %v1031, %v1241
        %1306 = vset.pattern.permute.xlu0 3
        %1307 = vperm.xlu0 %1306, %v418
        %v1308 = vpop.permute.xlu0 %1307
        %1310 = vset.pattern.permute.xlu0 3
        %1311 = vperm.xlu0 %1310, %v419
        %v1312 = vpop.permute.xlu0 %1311
        %1314 = vset.pattern.permute.xlu0 3
        %1315 = vperm.xlu0 %1314, %v420
        %v1316 = vpop.permute.xlu0 %1315
        %1318 = vset.pattern.permute.xlu0 3
        %1319 = vperm.xlu0 %1318, %v421
        %v1320 = vpop.permute.xlu0 %1319
        %1322 = vset.pattern.permute.xlu0 3
        %1323 = vperm.xlu0 %1322, %v422
        %v1324 = vpop.permute.xlu0 %1323
        %1326 = vset.pattern.permute.xlu0 3
        %1327 = vperm.xlu0 %1326, %v423
        %v1328 = vpop.permute.xlu0 %1327
        %1330 = vset.pattern.permute.xlu0 3
        %1331 = vperm.xlu0 %1330, %v424
        %v1332 = vpop.permute.xlu0 %1331
        %1334 = vset.pattern.permute.xlu0 3
        %1335 = vperm.xlu0 %1334, %v425
        %v1336 = vpop.permute.xlu0 %1335
        %1338 = vset.pattern.permute.xlu0 3
        %1339 = vperm.xlu0 %1338, %v426
        %v1340 = vpop.permute.xlu0 %1339
        %1342 = vset.pattern.permute.xlu0 3
        %1343 = vperm.xlu0 %1342, %v427
        %v1344 = vpop.permute.xlu0 %1343
        %1346 = vset.pattern.permute.xlu0 3
        %1347 = vperm.xlu0 %1346, %v428
        %v1348 = vpop.permute.xlu0 %1347
        %1350 = vset.pattern.permute.xlu0 3
        %1351 = vperm.xlu0 %1350, %v429
        %v1352 = vpop.permute.xlu0 %1351
        %1354 = vset.pattern.permute.xlu0 3
        %1355 = vperm.xlu0 %1354, %v430
        %v1356 = vpop.permute.xlu0 %1355
        %1358 = vset.pattern.permute.xlu0 3
        %1359 = vperm.xlu0 %1358, %v431
        %v1360 = vpop.permute.xlu0 %1359
        %1362 = vset.pattern.permute.xlu0 3
        %1363 = vperm.xlu0 %1362, %v432
        %v1364 = vpop.permute.xlu0 %1363
        %1366 = vset.pattern.permute.xlu0 3
        %1367 = vperm.xlu0 %1366, %v433
        %v1368 = vpop.permute.xlu0 %1367
        %1370 = vset.pattern.permute.xlu0 3
        %1371 = vperm.xlu0 %1370, %v434
        %v1372 = vpop.permute.xlu0 %1371
        %1374 = vset.pattern.permute.xlu0 3
        %1375 = vperm.xlu0 %1374, %v435
        %v1376 = vpop.permute.xlu0 %1375
        %1378 = vset.pattern.permute.xlu0 3
        %1379 = vperm.xlu0 %1378, %v436
        %v1380 = vpop.permute.xlu0 %1379
        %1382 = vset.pattern.permute.xlu0 3
        %1383 = vperm.xlu0 %1382, %v437
        %v1384 = vpop.permute.xlu0 %1383
        %1386 = vset.pattern.permute.xlu0 3
        %1387 = vperm.xlu0 %1386, %v438
        %v1388 = vpop.permute.xlu0 %1387
        %1390 = vset.pattern.permute.xlu0 3
        %1391 = vperm.xlu0 %1390, %v439
        %v1392 = vpop.permute.xlu0 %1391
        %1394 = vset.pattern.permute.xlu0 3
        %1395 = vperm.xlu0 %1394, %v440
        %v1396 = vpop.permute.xlu0 %1395
        %1398 = vset.pattern.permute.xlu0 3
        %1399 = vperm.xlu0 %1398, %v441
        %v1400 = vpop.permute.xlu0 %1399
        %1402 = vset.pattern.permute.xlu0 3
        %1403 = vperm.xlu0 %1402, %v442
        %v1404 = vpop.permute.xlu0 %1403
        %1406 = vset.pattern.permute.xlu0 3
        %1407 = vperm.xlu0 %1406, %v443
        %v1408 = vpop.permute.xlu0 %1407
        %1410 = vset.pattern.permute.xlu0 3
        %1411 = vperm.xlu0 %1410, %v444
        %v1412 = vpop.permute.xlu0 %1411
        %1414 = vset.pattern.permute.xlu0 3
        %1415 = vperm.xlu0 %1414, %v445
        %v1416 = vpop.permute.xlu0 %1415
        %1418 = vset.pattern.permute.xlu0 3
        %1419 = vperm.xlu0 %1418, %v446
        %v1420 = vpop.permute.xlu0 %1419
        %1422 = vset.pattern.permute.xlu0 3
        %1423 = vperm.xlu0 %1422, %v447
        %v1424 = vpop.permute.xlu0 %1423
        %1426 = vset.pattern.permute.xlu0 3
        %1427 = vperm.xlu0 %1426, %v448
        %v1428 = vpop.permute.xlu0 %1427
        %1430 = vset.pattern.permute.xlu0 3
        %1431 = vperm.xlu0 %1430, %v449
        %v1432 = vpop.permute.xlu0 %1431
        %v1434 = vlaneseq
        %v1435 = vshrl.u32 %v1434, 7
        %v1436 = vsub.s32 3, %v1435
        %v1437 = vrot.slane %v450, %v1436
        %v1438 = vlaneseq
        %v1439 = vshrl.u32 %v1438, 7
        %v1440 = vsub.s32 7, %v1439
        %v1441 = vrot.slane %v450, %v1440
        %v1444 = vlaneseq
        %v1445 = vshrl.u32 %v1444, 7
        %v1446 = vsub.s32 3, %v1445
        %v1447 = vrot.slane %v1437, %v1446
        %v1448 = vlaneseq
        %v1449 = vshrl.u32 %v1448, 7
        %v1450 = vsub.s32 3, %v1449
        %v1451 = vrot.slane %v1441, %v1450
        %v1452 = vmul.f32 %v1308, %v1447
        %v1453 = vmul.f32 %v1308, %v1451
        %v1454 = vmul.f32 %v1312, %v1447
        %v1455 = vmul.f32 %v1312, %v1451
        %v1456 = vmul.f32 %v1316, %v1447
        %v1457 = vmul.f32 %v1316, %v1451
        %v1458 = vmul.f32 %v1320, %v1447
        %v1459 = vmul.f32 %v1320, %v1451
        %v1460 = vmul.f32 %v1324, %v1447
        %v1461 = vmul.f32 %v1324, %v1451
        %v1462 = vmul.f32 %v1328, %v1447
        %v1463 = vmul.f32 %v1328, %v1451
        %v1464 = vmul.f32 %v1332, %v1447
        %v1465 = vmul.f32 %v1332, %v1451
        %v1466 = vmul.f32 %v1336, %v1447
        %v1467 = vmul.f32 %v1336, %v1451
        %v1468 = vmul.f32 %v1340, %v1447
        %v1469 = vmul.f32 %v1340, %v1451
        %v1470 = vmul.f32 %v1344, %v1447
        %v1471 = vmul.f32 %v1344, %v1451
        %v1472 = vmul.f32 %v1348, %v1447
        %v1473 = vmul.f32 %v1348, %v1451
        %v1474 = vmul.f32 %v1352, %v1447
        %v1475 = vmul.f32 %v1352, %v1451
        %v1476 = vmul.f32 %v1356, %v1447
        %v1477 = vmul.f32 %v1356, %v1451
        %v1478 = vmul.f32 %v1360, %v1447
        %v1479 = vmul.f32 %v1360, %v1451
        %v1480 = vmul.f32 %v1364, %v1447
        %v1481 = vmul.f32 %v1364, %v1451
        %v1482 = vmul.f32 %v1368, %v1447
        %v1483 = vmul.f32 %v1368, %v1451
        %v1484 = vmul.f32 %v1372, %v1447
        %v1485 = vmul.f32 %v1372, %v1451
        %v1486 = vmul.f32 %v1376, %v1447
        %v1487 = vmul.f32 %v1376, %v1451
        %v1488 = vmul.f32 %v1380, %v1447
        %v1489 = vmul.f32 %v1380, %v1451
        %v1490 = vmul.f32 %v1384, %v1447
        %v1491 = vmul.f32 %v1384, %v1451
        %v1492 = vmul.f32 %v1388, %v1447
        %v1493 = vmul.f32 %v1388, %v1451
        %v1494 = vmul.f32 %v1392, %v1447
        %v1495 = vmul.f32 %v1392, %v1451
        %v1496 = vmul.f32 %v1396, %v1447
        %v1497 = vmul.f32 %v1396, %v1451
        %v1498 = vmul.f32 %v1400, %v1447
        %v1499 = vmul.f32 %v1400, %v1451
        %v1500 = vmul.f32 %v1404, %v1447
        %v1501 = vmul.f32 %v1404, %v1451
        %v1502 = vmul.f32 %v1408, %v1447
        %v1503 = vmul.f32 %v1408, %v1451
        %v1504 = vmul.f32 %v1412, %v1447
        %v1505 = vmul.f32 %v1412, %v1451
        %v1506 = vmul.f32 %v1416, %v1447
        %v1507 = vmul.f32 %v1416, %v1451
        %v1508 = vmul.f32 %v1420, %v1447
        %v1509 = vmul.f32 %v1420, %v1451
        %v1510 = vmul.f32 %v1424, %v1447
        %v1511 = vmul.f32 %v1424, %v1451
        %v1512 = vmul.f32 %v1428, %v1447
        %v1513 = vmul.f32 %v1428, %v1451
        %v1514 = vmul.f32 %v1432, %v1447
        %v1515 = vmul.f32 %v1432, %v1451
        %v1516 = vadd.f32 %v1242, %v1452
        %v1517 = vadd.f32 %v1243, %v1453
        %v1518 = vadd.f32 %v1244, %v1454
        %v1519 = vadd.f32 %v1245, %v1455
        %v1520 = vadd.f32 %v1246, %v1456
        %v1521 = vadd.f32 %v1247, %v1457
        %v1522 = vadd.f32 %v1248, %v1458
        %v1523 = vadd.f32 %v1249, %v1459
        %v1524 = vadd.f32 %v1250, %v1460
        %v1525 = vadd.f32 %v1251, %v1461
        %v1526 = vadd.f32 %v1252, %v1462
        %v1527 = vadd.f32 %v1253, %v1463
        %v1528 = vadd.f32 %v1254, %v1464
        %v1529 = vadd.f32 %v1255, %v1465
        %v1530 = vadd.f32 %v1256, %v1466
        %v1531 = vadd.f32 %v1257, %v1467
        %v1532 = vadd.f32 %v1258, %v1468
        %v1533 = vadd.f32 %v1259, %v1469
        %v1534 = vadd.f32 %v1260, %v1470
        %v1535 = vadd.f32 %v1261, %v1471
        %v1536 = vadd.f32 %v1262, %v1472
        %v1537 = vadd.f32 %v1263, %v1473
        %v1538 = vadd.f32 %v1264, %v1474
        %v1539 = vadd.f32 %v1265, %v1475
        %v1540 = vadd.f32 %v1266, %v1476
        %v1541 = vadd.f32 %v1267, %v1477
        %v1542 = vadd.f32 %v1268, %v1478
        %v1543 = vadd.f32 %v1269, %v1479
        %v1544 = vadd.f32 %v1270, %v1480
        %v1545 = vadd.f32 %v1271, %v1481
        %v1546 = vadd.f32 %v1272, %v1482
        %v1547 = vadd.f32 %v1273, %v1483
        %v1548 = vadd.f32 %v1274, %v1484
        %v1549 = vadd.f32 %v1275, %v1485
        %v1550 = vadd.f32 %v1276, %v1486
        %v1551 = vadd.f32 %v1277, %v1487
        %v1552 = vadd.f32 %v1278, %v1488
        %v1553 = vadd.f32 %v1279, %v1489
        %v1554 = vadd.f32 %v1280, %v1490
        %v1555 = vadd.f32 %v1281, %v1491
        %v1556 = vadd.f32 %v1282, %v1492
        %v1557 = vadd.f32 %v1283, %v1493
        %v1558 = vadd.f32 %v1284, %v1494
        %v1559 = vadd.f32 %v1285, %v1495
        %v1560 = vadd.f32 %v1286, %v1496
        %v1561 = vadd.f32 %v1287, %v1497
        %v1562 = vadd.f32 %v1288, %v1498
        %v1563 = vadd.f32 %v1289, %v1499
        %v1564 = vadd.f32 %v1290, %v1500
        %v1565 = vadd.f32 %v1291, %v1501
        %v1566 = vadd.f32 %v1292, %v1502
        %v1567 = vadd.f32 %v1293, %v1503
        %v1568 = vadd.f32 %v1294, %v1504
        %v1569 = vadd.f32 %v1295, %v1505
        %v1570 = vadd.f32 %v1296, %v1506
        %v1571 = vadd.f32 %v1297, %v1507
        %v1572 = vadd.f32 %v1298, %v1508
        %v1573 = vadd.f32 %v1299, %v1509
        %v1574 = vadd.f32 %v1300, %v1510
        %v1575 = vadd.f32 %v1301, %v1511
        %v1576 = vadd.f32 %v1302, %v1512
        %v1577 = vadd.f32 %v1303, %v1513
        %v1578 = vadd.f32 %v1304, %v1514
        %v1579 = vadd.f32 %v1305, %v1515
        %v1580 = vld [vmem:[%s4] sm:$0x3]
        %v1582 = vlaneseq
        %v1583 = vshrl.u32 %v1582, 7
        %v1584 = vsub.s32 0, %v1583
        %v1585 = vrot.slane %v1580, %v1584
        %v1586 = vlaneseq
        %v1587 = vshrl.u32 %v1586, 7
        %v1588 = vsub.s32 1, %v1587
        %v1589 = vrot.slane %v1580, %v1588
        %v1592 = vadd.f32 %v1516, %v1585
        %v1593 = vadd.f32 %v1517, %v1589
        %v1594 = vadd.f32 %v1518, %v1585
        %v1595 = vadd.f32 %v1519, %v1589
        %v1596 = vadd.f32 %v1520, %v1585
        %v1597 = vadd.f32 %v1521, %v1589
        %v1598 = vadd.f32 %v1522, %v1585
        %v1599 = vadd.f32 %v1523, %v1589
        %v1600 = vadd.f32 %v1524, %v1585
        %v1601 = vadd.f32 %v1525, %v1589
        %v1602 = vadd.f32 %v1526, %v1585
        %v1603 = vadd.f32 %v1527, %v1589
        %v1604 = vadd.f32 %v1528, %v1585
        %v1605 = vadd.f32 %v1529, %v1589
        %v1606 = vadd.f32 %v1530, %v1585
        %v1607 = vadd.f32 %v1531, %v1589
        %v1608 = vadd.f32 %v1532, %v1585
        %v1609 = vadd.f32 %v1533, %v1589
        %v1610 = vadd.f32 %v1534, %v1585
        %v1611 = vadd.f32 %v1535, %v1589
        %v1612 = vadd.f32 %v1536, %v1585
        %v1613 = vadd.f32 %v1537, %v1589
        %v1614 = vadd.f32 %v1538, %v1585
        %v1615 = vadd.f32 %v1539, %v1589
        %v1616 = vadd.f32 %v1540, %v1585
        %v1617 = vadd.f32 %v1541, %v1589
        %v1618 = vadd.f32 %v1542, %v1585
        %v1619 = vadd.f32 %v1543, %v1589
        %v1620 = vadd.f32 %v1544, %v1585
        %v1621 = vadd.f32 %v1545, %v1589
        %v1622 = vadd.f32 %v1546, %v1585
        %v1623 = vadd.f32 %v1547, %v1589
        %v1624 = vadd.f32 %v1548, %v1585
        %v1625 = vadd.f32 %v1549, %v1589
        %v1626 = vadd.f32 %v1550, %v1585
        %v1627 = vadd.f32 %v1551, %v1589
        %v1628 = vadd.f32 %v1552, %v1585
        %v1629 = vadd.f32 %v1553, %v1589
        %v1630 = vadd.f32 %v1554, %v1585
        %v1631 = vadd.f32 %v1555, %v1589
        %v1632 = vadd.f32 %v1556, %v1585
        %v1633 = vadd.f32 %v1557, %v1589
        %v1634 = vadd.f32 %v1558, %v1585
        %v1635 = vadd.f32 %v1559, %v1589
        %v1636 = vadd.f32 %v1560, %v1585
        %v1637 = vadd.f32 %v1561, %v1589
        %v1638 = vadd.f32 %v1562, %v1585
        %v1639 = vadd.f32 %v1563, %v1589
        %v1640 = vadd.f32 %v1564, %v1585
        %v1641 = vadd.f32 %v1565, %v1589
        %v1642 = vadd.f32 %v1566, %v1585
        %v1643 = vadd.f32 %v1567, %v1589
        %v1644 = vadd.f32 %v1568, %v1585
        %v1645 = vadd.f32 %v1569, %v1589
        %v1646 = vadd.f32 %v1570, %v1585
        %v1647 = vadd.f32 %v1571, %v1589
        %v1648 = vadd.f32 %v1572, %v1585
        %v1649 = vadd.f32 %v1573, %v1589
        %v1650 = vadd.f32 %v1574, %v1585
        %v1651 = vadd.f32 %v1575, %v1589
        %v1652 = vadd.f32 %v1576, %v1585
        %v1653 = vadd.f32 %v1577, %v1589
        %v1654 = vadd.f32 %v1578, %v1585
        %v1655 = vadd.f32 %v1579, %v1589
        %v1656 = vmax.f32 %v1592, 0.0
        %v1657 = vmax.f32 %v1593, 0.0
        %v1658 = vmax.f32 %v1594, 0.0
        %v1659 = vmax.f32 %v1595, 0.0
        %v1660 = vmax.f32 %v1596, 0.0
        %v1661 = vmax.f32 %v1597, 0.0
        %v1662 = vmax.f32 %v1598, 0.0
        %v1663 = vmax.f32 %v1599, 0.0
        %v1664 = vmax.f32 %v1600, 0.0
        %v1665 = vmax.f32 %v1601, 0.0
        %v1666 = vmax.f32 %v1602, 0.0
        %v1667 = vmax.f32 %v1603, 0.0
        %v1668 = vmax.f32 %v1604, 0.0
        %v1669 = vmax.f32 %v1605, 0.0
        %v1670 = vmax.f32 %v1606, 0.0
        %v1671 = vmax.f32 %v1607, 0.0
        %v1672 = vmax.f32 %v1608, 0.0
        %v1673 = vmax.f32 %v1609, 0.0
        %v1674 = vmax.f32 %v1610, 0.0
        %v1675 = vmax.f32 %v1611, 0.0
        %v1676 = vmax.f32 %v1612, 0.0
        %v1677 = vmax.f32 %v1613, 0.0
        %v1678 = vmax.f32 %v1614, 0.0
        %v1679 = vmax.f32 %v1615, 0.0
        %v1680 = vmax.f32 %v1616, 0.0
        %v1681 = vmax.f32 %v1617, 0.0
        %v1682 = vmax.f32 %v1618, 0.0
        %v1683 = vmax.f32 %v1619, 0.0
        %v1684 = vmax.f32 %v1620, 0.0
        %v1685 = vmax.f32 %v1621, 0.0
        %v1686 = vmax.f32 %v1622, 0.0
        %v1687 = vmax.f32 %v1623, 0.0
        %v1688 = vmax.f32 %v1624, 0.0
        %v1689 = vmax.f32 %v1625, 0.0
        %v1690 = vmax.f32 %v1626, 0.0
        %v1691 = vmax.f32 %v1627, 0.0
        %v1692 = vmax.f32 %v1628, 0.0
        %v1693 = vmax.f32 %v1629, 0.0
        %v1694 = vmax.f32 %v1630, 0.0
        %v1695 = vmax.f32 %v1631, 0.0
        %v1696 = vmax.f32 %v1632, 0.0
        %v1697 = vmax.f32 %v1633, 0.0
        %v1698 = vmax.f32 %v1634, 0.0
        %v1699 = vmax.f32 %v1635, 0.0
        %v1700 = vmax.f32 %v1636, 0.0
        %v1701 = vmax.f32 %v1637, 0.0
        %v1702 = vmax.f32 %v1638, 0.0
        %v1703 = vmax.f32 %v1639, 0.0
        %v1704 = vmax.f32 %v1640, 0.0
        %v1705 = vmax.f32 %v1641, 0.0
        %v1706 = vmax.f32 %v1642, 0.0
        %v1707 = vmax.f32 %v1643, 0.0
        %v1708 = vmax.f32 %v1644, 0.0
        %v1709 = vmax.f32 %v1645, 0.0
        %v1710 = vmax.f32 %v1646, 0.0
        %v1711 = vmax.f32 %v1647, 0.0
        %v1712 = vmax.f32 %v1648, 0.0
        %v1713 = vmax.f32 %v1649, 0.0
        %v1714 = vmax.f32 %v1650, 0.0
        %v1715 = vmax.f32 %v1651, 0.0
        %v1716 = vmax.f32 %v1652, 0.0
        %v1717 = vmax.f32 %v1653, 0.0
        %v1718 = vmax.f32 %v1654, 0.0
        %v1719 = vmax.f32 %v1655, 0.0
        %v1720 = vpack.c.bf16 %v1658, %v1656
        %v1721 = vpack.c.bf16 %v1659, %v1657
        %v1722 = vpack.c.bf16 %v1662, %v1660
        %v1723 = vpack.c.bf16 %v1663, %v1661
        %v1724 = vpack.c.bf16 %v1666, %v1664
        %v1725 = vpack.c.bf16 %v1667, %v1665
        %v1726 = vpack.c.bf16 %v1670, %v1668
        %v1727 = vpack.c.bf16 %v1671, %v1669
        %v1728 = vpack.c.bf16 %v1674, %v1672
        %v1729 = vpack.c.bf16 %v1675, %v1673
        %v1730 = vpack.c.bf16 %v1678, %v1676
        %v1731 = vpack.c.bf16 %v1679, %v1677
        %v1732 = vpack.c.bf16 %v1682, %v1680
        %v1733 = vpack.c.bf16 %v1683, %v1681
        %v1734 = vpack.c.bf16 %v1686, %v1684
        %v1735 = vpack.c.bf16 %v1687, %v1685
        %v1736 = vpack.c.bf16 %v1690, %v1688
        %v1737 = vpack.c.bf16 %v1691, %v1689
        %v1738 = vpack.c.bf16 %v1694, %v1692
        %v1739 = vpack.c.bf16 %v1695, %v1693
        %v1740 = vpack.c.bf16 %v1698, %v1696
        %v1741 = vpack.c.bf16 %v1699, %v1697
        %v1742 = vpack.c.bf16 %v1702, %v1700
        %v1743 = vpack.c.bf16 %v1703, %v1701
        %v1744 = vpack.c.bf16 %v1706, %v1704
        %v1745 = vpack.c.bf16 %v1707, %v1705
        %v1746 = vpack.c.bf16 %v1710, %v1708
        %v1747 = vpack.c.bf16 %v1711, %v1709
        %v1748 = vpack.c.bf16 %v1714, %v1712
        %v1749 = vpack.c.bf16 %v1715, %v1713
        %v1750 = vpack.c.bf16 %v1718, %v1716
        %v1751 = vpack.c.bf16 %v1719, %v1717
        %1752 = vst [vmem:[#allocation2] sm:$0xff] %v1720
        %1753 = vst [vmem:[#allocation2 + $0x8] sm:$0xff] %v1721
        %1754 = vst [vmem:[#allocation2 + $0x10] sm:$0xff] %v1722
        %1755 = vst [vmem:[#allocation2 + $0x18] sm:$0xff] %v1723
        %1756 = vst [vmem:[#allocation2 + $0x20] sm:$0xff] %v1724
        %1757 = vst [vmem:[#allocation2 + $0x28] sm:$0xff] %v1725
        %1758 = vst [vmem:[#allocation2 + $0x30] sm:$0xff] %v1726
        %1759 = vst [vmem:[#allocation2 + $0x38] sm:$0xff] %v1727
        %1760 = vst [vmem:[#allocation2 + $0x40] sm:$0xff] %v1728
        %1761 = vst [vmem:[#allocation2 + $0x48] sm:$0xff] %v1729
        %1762 = vst [vmem:[#allocation2 + $0x50] sm:$0xff] %v1730
        %1763 = vst [vmem:[#allocation2 + $0x58] sm:$0xff] %v1731
        %1764 = vst [vmem:[#allocation2 + $0x60] sm:$0xff] %v1732
        %1765 = vst [vmem:[#allocation2 + $0x68] sm:$0xff] %v1733
        %1766 = vst [vmem:[#allocation2 + $0x70] sm:$0xff] %v1734
        %1767 = vst [vmem:[#allocation2 + $0x78] sm:$0xff] %v1735
        %1768 = vst [vmem:[#allocation2 + $0x80] sm:$0xff] %v1736
        %1769 = vst [vmem:[#allocation2 + $0x88] sm:$0xff] %v1737
        %1770 = vst [vmem:[#allocation2 + $0x90] sm:$0xff] %v1738
        %1771 = vst [vmem:[#allocation2 + $0x98] sm:$0xff] %v1739
        %1772 = vst [vmem:[#allocation2 + $0xa0] sm:$0xff] %v1740
        %1773 = vst [vmem:[#allocation2 + $0xa8] sm:$0xff] %v1741
        %1774 = vst [vmem:[#allocation2 + $0xb0] sm:$0xff] %v1742
        %1775 = vst [vmem:[#allocation2 + $0xb8] sm:$0xff] %v1743
        %1776 = vst [vmem:[#allocation2 + $0xc0] sm:$0xff] %v1744
        %1777 = vst [vmem:[#allocation2 + $0xc8] sm:$0xff] %v1745
        %1778 = vst [vmem:[#allocation2 + $0xd0] sm:$0xff] %v1746
        %1779 = vst [vmem:[#allocation2 + $0xd8] sm:$0xff] %v1747
        %1780 = vst [vmem:[#allocation2 + $0xe0] sm:$0xff] %v1748
        %1781 = vst [vmem:[#allocation2 + $0xe8] sm:$0xff] %v1749
        %1782 = vst [vmem:[#allocation2 + $0xf0] sm:$0xff] %v1750
        %1783 = vst [vmem:[#allocation2 + $0xf8] sm:$0xff] %v1751
        %v1784 = vld [vmem:[#allocation2] sm:$0xff]
        %v1785 = vld [vmem:[#allocation2 + $0x8] sm:$0xff]
        %v1786 = vld [vmem:[#allocation2 + $0x10] sm:$0xff]
        %v1787 = vld [vmem:[#allocation2 + $0x18] sm:$0xff]
        %v1788 = vld [vmem:[#allocation2 + $0x20] sm:$0xff]
        %v1789 = vld [vmem:[#allocation2 + $0x28] sm:$0xff]
        %v1790 = vld [vmem:[#allocation2 + $0x30] sm:$0xff]
        %v1791 = vld [vmem:[#allocation2 + $0x38] sm:$0xff]
        %v1792 = vld [vmem:[#allocation2 + $0x40] sm:$0xff]
        %v1793 = vld [vmem:[#allocation2 + $0x48] sm:$0xff]
        %v1794 = vld [vmem:[#allocation2 + $0x50] sm:$0xff]
        %v1795 = vld [vmem:[#allocation2 + $0x58] sm:$0xff]
        %v1796 = vld [vmem:[#allocation2 + $0x60] sm:$0xff]
        %v1797 = vld [vmem:[#allocation2 + $0x68] sm:$0xff]
        %v1798 = vld [vmem:[#allocation2 + $0x70] sm:$0xff]
        %v1799 = vld [vmem:[#allocation2 + $0x78] sm:$0xff]
        %v1800 = vld [vmem:[#allocation2 + $0x80] sm:$0xff]
        %v1801 = vld [vmem:[#allocation2 + $0x88] sm:$0xff]
        %v1802 = vld [vmem:[#allocation2 + $0x90] sm:$0xff]
        %v1803 = vld [vmem:[#allocation2 + $0x98] sm:$0xff]
        %v1804 = vld [vmem:[#allocation2 + $0xa0] sm:$0xff]
        %v1805 = vld [vmem:[#allocation2 + $0xa8] sm:$0xff]
        %v1806 = vld [vmem:[#allocation2 + $0xb0] sm:$0xff]
        %v1807 = vld [vmem:[#allocation2 + $0xb8] sm:$0xff]
        %v1808 = vld [vmem:[#allocation2 + $0xc0] sm:$0xff]
        %v1809 = vld [vmem:[#allocation2 + $0xc8] sm:$0xff]
        %v1810 = vld [vmem:[#allocation2 + $0xd0] sm:$0xff]
        %v1811 = vld [vmem:[#allocation2 + $0xd8] sm:$0xff]
        %v1812 = vld [vmem:[#allocation2 + $0xe0] sm:$0xff]
        %v1813 = vld [vmem:[#allocation2 + $0xe8] sm:$0xff]
        %v1814 = vld [vmem:[#allocation2 + $0xf0] sm:$0xff]
        %v1815 = vld [vmem:[#allocation2 + $0xf8] sm:$0xff]
        %v1816 = vld [vmem:[%s5] sm:$0xff]
        %v1817 = vld [vmem:[%s5 + $0x8] sm:$0xff]
        %v1818 = vld [vmem:[%s5 + $0x10] sm:$0xff]
        %v1819 = vld [vmem:[%s5 + $0x18] sm:$0xff]
        %v1820 = vld [vmem:[%s5 + $0x20] sm:$0xff]
        %v1821 = vld [vmem:[%s5 + $0x28] sm:$0xff]
        %v1822 = vld [vmem:[%s5 + $0x30] sm:$0xff]
        %v1823 = vld [vmem:[%s5 + $0x38] sm:$0xff]
        %v1824 = vld [vmem:[%s5 + $0x40] sm:$0xff]
        %v1825 = vld [vmem:[%s5 + $0x48] sm:$0xff]
        %v1826 = vld [vmem:[%s5 + $0x50] sm:$0xff]
        %v1827 = vld [vmem:[%s5 + $0x58] sm:$0xff]
        %v1828 = vld [vmem:[%s5 + $0x60] sm:$0xff]
        %v1829 = vld [vmem:[%s5 + $0x68] sm:$0xff]
        %v1830 = vld [vmem:[%s5 + $0x70] sm:$0xff]
        %v1831 = vld [vmem:[%s5 + $0x78] sm:$0xff]
        %v1832 = vld [vmem:[%s5 + $0x80] sm:$0xff]
        %v1833 = vld [vmem:[%s5 + $0x88] sm:$0xff]
        %v1834 = vld [vmem:[%s5 + $0x90] sm:$0xff]
        %v1835 = vld [vmem:[%s5 + $0x98] sm:$0xff]
        %v1836 = vld [vmem:[%s5 + $0xa0] sm:$0xff]
        %v1837 = vld [vmem:[%s5 + $0xa8] sm:$0xff]
        %v1838 = vld [vmem:[%s5 + $0xb0] sm:$0xff]
        %v1839 = vld [vmem:[%s5 + $0xb8] sm:$0xff]
        %v1840 = vld [vmem:[%s5 + $0xc0] sm:$0xff]
        %v1841 = vld [vmem:[%s5 + $0xc8] sm:$0xff]
        %v1842 = vld [vmem:[%s5 + $0xd0] sm:$0xff]
        %v1843 = vld [vmem:[%s5 + $0xd8] sm:$0xff]
        %v1844 = vld [vmem:[%s5 + $0xe0] sm:$0xff]
        %v1845 = vld [vmem:[%s5 + $0xe8] sm:$0xff]
        %v1846 = vld [vmem:[%s5 + $0xf0] sm:$0xff]
        %v1847 = vld [vmem:[%s5 + $0xf8] sm:$0xff]
        %v1848 = vld [vmem:[%s5 + $0x100] sm:$0xff]
        %v1849 = vld [vmem:[%s5 + $0x108] sm:$0xff]
        %v1850 = vld [vmem:[%s5 + $0x110] sm:$0xff]
        %v1851 = vld [vmem:[%s5 + $0x118] sm:$0xff]
        %v1852 = vld [vmem:[%s5 + $0x120] sm:$0xff]
        %v1853 = vld [vmem:[%s5 + $0x128] sm:$0xff]
        %v1854 = vld [vmem:[%s5 + $0x130] sm:$0xff]
        %v1855 = vld [vmem:[%s5 + $0x138] sm:$0xff]
        %v1856 = vld [vmem:[%s5 + $0x140] sm:$0xff]
        %v1857 = vld [vmem:[%s5 + $0x148] sm:$0xff]
        %v1858 = vld [vmem:[%s5 + $0x150] sm:$0xff]
        %v1859 = vld [vmem:[%s5 + $0x158] sm:$0xff]
        %v1860 = vld [vmem:[%s5 + $0x160] sm:$0xff]
        %v1861 = vld [vmem:[%s5 + $0x168] sm:$0xff]
        %v1862 = vld [vmem:[%s5 + $0x170] sm:$0xff]
        %v1863 = vld [vmem:[%s5 + $0x178] sm:$0xff]
        %v1864 = vld [vmem:[%s5 + $0x180] sm:$0xff]
        %v1865 = vld [vmem:[%s5 + $0x188] sm:$0xff]
        %v1866 = vld [vmem:[%s5 + $0x190] sm:$0xff]
        %v1867 = vld [vmem:[%s5 + $0x198] sm:$0xff]
        %v1868 = vld [vmem:[%s5 + $0x1a0] sm:$0xff]
        %v1869 = vld [vmem:[%s5 + $0x1a8] sm:$0xff]
        %v1870 = vld [vmem:[%s5 + $0x1b0] sm:$0xff]
        %v1871 = vld [vmem:[%s5 + $0x1b8] sm:$0xff]
        %v1872 = vld [vmem:[%s5 + $0x1c0] sm:$0xff]
        %v1873 = vld [vmem:[%s5 + $0x1c8] sm:$0xff]
        %v1874 = vld [vmem:[%s5 + $0x1d0] sm:$0xff]
        %v1875 = vld [vmem:[%s5 + $0x1d8] sm:$0xff]
        %v1876 = vld [vmem:[%s5 + $0x1e0] sm:$0xff]
        %v1877 = vld [vmem:[%s5 + $0x1e8] sm:$0xff]
        %v1878 = vld [vmem:[%s5 + $0x1f0] sm:$0xff]
        %v1879 = vld [vmem:[%s5 + $0x1f8] sm:$0xff]
        %v1880 = vld [vmem:[%s6] sm:$0xf]
        %v1882 = vlaneseq
        %v1883 = vshrl.u32 %v1882, 7
        %v1884 = vsub.s32 0, %v1883
        %v1885 = vrot.slane %v1880, %v1884
        %v1886 = vlaneseq
        %v1887 = vshrl.u32 %v1886, 7
        %v1888 = vsub.s32 1, %v1887
        %v1889 = vrot.slane %v1880, %v1888
        %v1890 = vlaneseq
        %v1891 = vshrl.u32 %v1890, 7
        %v1892 = vsub.s32 2, %v1891
        %v1893 = vrot.slane %v1880, %v1892
        %v1894 = vlaneseq
        %v1895 = vshrl.u32 %v1894, 7
        %v1896 = vsub.s32 3, %v1895
        %v1897 = vrot.slane %v1880, %v1896
        %v1966 = vunpack.c.l.b16 %v1816
        %v1967 = vunpack.c.h.b16 %v1816
        %v1968 = vunpack.c.l.b16 %v1817
        %v1969 = vunpack.c.h.b16 %v1817
        %v1970 = vunpack.c.l.b16 %v1818
        %v1971 = vunpack.c.h.b16 %v1818
        %v1972 = vunpack.c.l.b16 %v1819
        %v1973 = vunpack.c.h.b16 %v1819
        %v1974 = vunpack.c.l.b16 %v1820
        %v1975 = vunpack.c.h.b16 %v1820
        %v1976 = vunpack.c.l.b16 %v1821
        %v1977 = vunpack.c.h.b16 %v1821
        %v1978 = vunpack.c.l.b16 %v1822
        %v1979 = vunpack.c.h.b16 %v1822
        %v1980 = vunpack.c.l.b16 %v1823
        %v1981 = vunpack.c.h.b16 %v1823
        %v1982 = vunpack.c.l.b16 %v1824
        %v1983 = vunpack.c.h.b16 %v1824
        %v1984 = vunpack.c.l.b16 %v1825
        %v1985 = vunpack.c.h.b16 %v1825
        %v1986 = vunpack.c.l.b16 %v1826
        %v1987 = vunpack.c.h.b16 %v1826
        %v1988 = vunpack.c.l.b16 %v1827
        %v1989 = vunpack.c.h.b16 %v1827
        %v1990 = vunpack.c.l.b16 %v1828
        %v1991 = vunpack.c.h.b16 %v1828
        %v1992 = vunpack.c.l.b16 %v1829
        %v1993 = vunpack.c.h.b16 %v1829
        %v1994 = vunpack.c.l.b16 %v1830
        %v1995 = vunpack.c.h.b16 %v1830
        %v1996 = vunpack.c.l.b16 %v1831
        %v1997 = vunpack.c.h.b16 %v1831
        %v1998 = vunpack.c.l.b16 %v1832
        %v1999 = vunpack.c.h.b16 %v1832
        %v2000 = vunpack.c.l.b16 %v1833
        %v2001 = vunpack.c.h.b16 %v1833
        %v2002 = vunpack.c.l.b16 %v1834
        %v2003 = vunpack.c.h.b16 %v1834
        %v2004 = vunpack.c.l.b16 %v1835
        %v2005 = vunpack.c.h.b16 %v1835
        %v2006 = vunpack.c.l.b16 %v1836
        %v2007 = vunpack.c.h.b16 %v1836
        %v2008 = vunpack.c.l.b16 %v1837
        %v2009 = vunpack.c.h.b16 %v1837
        %v2010 = vunpack.c.l.b16 %v1838
        %v2011 = vunpack.c.h.b16 %v1838
        %v2012 = vunpack.c.l.b16 %v1839
        %v2013 = vunpack.c.h.b16 %v1839
        %v2014 = vunpack.c.l.b16 %v1840
        %v2015 = vunpack.c.h.b16 %v1840
        %v2016 = vunpack.c.l.b16 %v1841
        %v2017 = vunpack.c.h.b16 %v1841
        %v2018 = vunpack.c.l.b16 %v1842
        %v2019 = vunpack.c.h.b16 %v1842
        %v2020 = vunpack.c.l.b16 %v1843
        %v2021 = vunpack.c.h.b16 %v1843
        %v2022 = vunpack.c.l.b16 %v1844
        %v2023 = vunpack.c.h.b16 %v1844
        %v2024 = vunpack.c.l.b16 %v1845
        %v2025 = vunpack.c.h.b16 %v1845
        %v2026 = vunpack.c.l.b16 %v1846
        %v2027 = vunpack.c.h.b16 %v1846
        %v2028 = vunpack.c.l.b16 %v1847
        %v2029 = vunpack.c.h.b16 %v1847
        %v2030 = vunpack.c.l.b16 %v1848
        %v2031 = vunpack.c.h.b16 %v1848
        %v2032 = vunpack.c.l.b16 %v1849
        %v2033 = vunpack.c.h.b16 %v1849
        %v2034 = vunpack.c.l.b16 %v1850
        %v2035 = vunpack.c.h.b16 %v1850
        %v2036 = vunpack.c.l.b16 %v1851
        %v2037 = vunpack.c.h.b16 %v1851
        %v2038 = vunpack.c.l.b16 %v1852
        %v2039 = vunpack.c.h.b16 %v1852
        %v2040 = vunpack.c.l.b16 %v1853
        %v2041 = vunpack.c.h.b16 %v1853
        %v2042 = vunpack.c.l.b16 %v1854
        %v2043 = vunpack.c.h.b16 %v1854
        %v2044 = vunpack.c.l.b16 %v1855
        %v2045 = vunpack.c.h.b16 %v1855
        %v2046 = vunpack.c.l.b16 %v1856
        %v2047 = vunpack.c.h.b16 %v1856
        %v2048 = vunpack.c.l.b16 %v1857
        %v2049 = vunpack.c.h.b16 %v1857
        %v2050 = vunpack.c.l.b16 %v1858
        %v2051 = vunpack.c.h.b16 %v1858
        %v2052 = vunpack.c.l.b16 %v1859
        %v2053 = vunpack.c.h.b16 %v1859
        %v2054 = vunpack.c.l.b16 %v1860
        %v2055 = vunpack.c.h.b16 %v1860
        %v2056 = vunpack.c.l.b16 %v1861
        %v2057 = vunpack.c.h.b16 %v1861
        %v2058 = vunpack.c.l.b16 %v1862
        %v2059 = vunpack.c.h.b16 %v1862
        %v2060 = vunpack.c.l.b16 %v1863
        %v2061 = vunpack.c.h.b16 %v1863
        %v2062 = vunpack.c.l.b16 %v1864
        %v2063 = vunpack.c.h.b16 %v1864
        %v2064 = vunpack.c.l.b16 %v1865
        %v2065 = vunpack.c.h.b16 %v1865
        %v2066 = vunpack.c.l.b16 %v1866
        %v2067 = vunpack.c.h.b16 %v1866
        %v2068 = vunpack.c.l.b16 %v1867
        %v2069 = vunpack.c.h.b16 %v1867
        %v2070 = vunpack.c.l.b16 %v1868
        %v2071 = vunpack.c.h.b16 %v1868
        %v2072 = vunpack.c.l.b16 %v1869
        %v2073 = vunpack.c.h.b16 %v1869
        %v2074 = vunpack.c.l.b16 %v1870
        %v2075 = vunpack.c.h.b16 %v1870
        %v2076 = vunpack.c.l.b16 %v1871
        %v2077 = vunpack.c.h.b16 %v1871
        %v2078 = vunpack.c.l.b16 %v1872
        %v2079 = vunpack.c.h.b16 %v1872
        %v2080 = vunpack.c.l.b16 %v1873
        %v2081 = vunpack.c.h.b16 %v1873
        %v2082 = vunpack.c.l.b16 %v1874
        %v2083 = vunpack.c.h.b16 %v1874
        %v2084 = vunpack.c.l.b16 %v1875
        %v2085 = vunpack.c.h.b16 %v1875
        %v2086 = vunpack.c.l.b16 %v1876
        %v2087 = vunpack.c.h.b16 %v1876
        %v2088 = vunpack.c.l.b16 %v1877
        %v2089 = vunpack.c.h.b16 %v1877
        %v2090 = vunpack.c.l.b16 %v1878
        %v2091 = vunpack.c.h.b16 %v1878
        %v2092 = vunpack.c.l.b16 %v1879
        %v2093 = vunpack.c.h.b16 %v1879
        %v2094 = vpack.c.b16 %v1970, %v1966
        %v2095 = vpack.c.b16 %v1971, %v1967
        %v2096 = vpack.c.b16 %v1972, %v1968
        %v2097 = vpack.c.b16 %v1973, %v1969
        %v2098 = vpack.c.b16 %v1978, %v1974
        %v2099 = vpack.c.b16 %v1979, %v1975
        %v2100 = vpack.c.b16 %v1980, %v1976
        %v2101 = vpack.c.b16 %v1981, %v1977
        %v2102 = vpack.c.b16 %v1986, %v1982
        %v2103 = vpack.c.b16 %v1987, %v1983
        %v2104 = vpack.c.b16 %v1988, %v1984
        %v2105 = vpack.c.b16 %v1989, %v1985
        %v2106 = vpack.c.b16 %v1994, %v1990
        %v2107 = vpack.c.b16 %v1995, %v1991
        %v2108 = vpack.c.b16 %v1996, %v1992
        %v2109 = vpack.c.b16 %v1997, %v1993
        %v2110 = vpack.c.b16 %v2002, %v1998
        %v2111 = vpack.c.b16 %v2003, %v1999
        %v2112 = vpack.c.b16 %v2004, %v2000
        %v2113 = vpack.c.b16 %v2005, %v2001
        %v2114 = vpack.c.b16 %v2010, %v2006
        %v2115 = vpack.c.b16 %v2011, %v2007
        %v2116 = vpack.c.b16 %v2012, %v2008
        %v2117 = vpack.c.b16 %v2013, %v2009
        %v2118 = vpack.c.b16 %v2018, %v2014
        %v2119 = vpack.c.b16 %v2019, %v2015
        %v2120 = vpack.c.b16 %v2020, %v2016
        %v2121 = vpack.c.b16 %v2021, %v2017
        %v2122 = vpack.c.b16 %v2026, %v2022
        %v2123 = vpack.c.b16 %v2027, %v2023
        %v2124 = vpack.c.b16 %v2028, %v2024
        %v2125 = vpack.c.b16 %v2029, %v2025
        %v2126 = vpack.c.b16 %v2034, %v2030
        %v2127 = vpack.c.b16 %v2035, %v2031
        %v2128 = vpack.c.b16 %v2036, %v2032
        %v2129 = vpack.c.b16 %v2037, %v2033
        %v2130 = vpack.c.b16 %v2042, %v2038
        %v2131 = vpack.c.b16 %v2043, %v2039
        %v2132 = vpack.c.b16 %v2044, %v2040
        %v2133 = vpack.c.b16 %v2045, %v2041
        %v2134 = vpack.c.b16 %v2050, %v2046
        %v2135 = vpack.c.b16 %v2051, %v2047
        %v2136 = vpack.c.b16 %v2052, %v2048
        %v2137 = vpack.c.b16 %v2053, %v2049
        %v2138 = vpack.c.b16 %v2058, %v2054
        %v2139 = vpack.c.b16 %v2059, %v2055
        %v2140 = vpack.c.b16 %v2060, %v2056
        %v2141 = vpack.c.b16 %v2061, %v2057
        %v2142 = vpack.c.b16 %v2066, %v2062
        %v2143 = vpack.c.b16 %v2067, %v2063
        %v2144 = vpack.c.b16 %v2068, %v2064
        %v2145 = vpack.c.b16 %v2069, %v2065
        %v2146 = vpack.c.b16 %v2074, %v2070
        %v2147 = vpack.c.b16 %v2075, %v2071
        %v2148 = vpack.c.b16 %v2076, %v2072
        %v2149 = vpack.c.b16 %v2077, %v2073
        %v2150 = vpack.c.b16 %v2082, %v2078
        %v2151 = vpack.c.b16 %v2083, %v2079
        %v2152 = vpack.c.b16 %v2084, %v2080
        %v2153 = vpack.c.b16 %v2085, %v2081
        %v2154 = vpack.c.b16 %v2090, %v2086
        %v2155 = vpack.c.b16 %v2091, %v2087
        %v2156 = vpack.c.b16 %v2092, %v2088
        %v2157 = vpack.c.b16 %v2093, %v2089
        %2222 = vmatprep.subr.bf16.mxu0 %v2095
        %2223 = vmatpush1.bf16.msra.mxu0 %v2094
        %2224 = vmatprep.subr.bf16.mxu0 %v2099
        %2225 = vmatpush1.bf16.msra.mxu0 %v2098
        %2226 = vmatprep.subr.bf16.mxu0 %v2103
        %2227 = vmatpush1.bf16.msra.mxu0 %v2102
        %2228 = vmatprep.subr.bf16.mxu0 %v2107
        %2229 = vmatpush1.bf16.msra.mxu0 %v2106
        %2230 = vmatprep.subr.bf16.mxu0 %v2111
        %2231 = vmatpush1.bf16.msra.mxu0 %v2110
        %2232 = vmatprep.subr.bf16.mxu0 %v2115
        %2233 = vmatpush1.bf16.msra.mxu0 %v2114
        %2234 = vmatprep.subr.bf16.mxu0 %v2119
        %2235 = vmatpush1.bf16.msra.mxu0 %v2118
        %2236 = vmatprep.subr.bf16.mxu0 %v2123
        %2237 = vmatpush1.bf16.msra.mxu0 %v2122
        %2238 = vmatprep.subr.bf16.mxu0 %v2127
        %2239 = vmatpush1.bf16.msra.mxu0 %v2126
        %2240 = vmatprep.subr.bf16.mxu0 %v2131
        %2241 = vmatpush1.bf16.msra.mxu0 %v2130
        %2242 = vmatprep.subr.bf16.mxu0 %v2135
        %2243 = vmatpush1.bf16.msra.mxu0 %v2134
        %2244 = vmatprep.subr.bf16.mxu0 %v2139
        %2245 = vmatpush1.bf16.msra.mxu0 %v2138
        %2246 = vmatprep.subr.bf16.mxu0 %v2143
        %2247 = vmatpush1.bf16.msra.mxu0 %v2142
        %2248 = vmatprep.subr.bf16.mxu0 %v2147
        %2249 = vmatpush1.bf16.msra.mxu0 %v2146
        %2250 = vmatprep.subr.bf16.mxu0 %v2151
        %2251 = vmatpush1.bf16.msra.mxu0 %v2150
        %2252 = vmatprep.subr.bf16.mxu0 %v2155
        %2253 = vmatpush1.bf16.msra.mxu0 %v2154
        %2254 = vmatprep.mubr.bf16.mxu0 %v1785
        %2255 = vmatmul.mubr.bf16.gmra.mrb[0].mxu0 %v1784
        %v2256 = vpop.f32.mrb[0].mxu0
        %v2257 = vadd.f32 %v1885, %v2256
        %v2258 = vpop.f32.mrb[0].mxu0
        %v2259 = vadd.f32 %v1889, %v2258
        %v2260 = vpop.f32.mrb[0].mxu0
        %v2261 = vadd.f32 %v1885, %v2260
        %v2262 = vpop.f32.mrb[0].mxu0
        %v2263 = vadd.f32 %v1889, %v2262
        %2264 = vmatprep.mubr.bf16.mxu0 %v1787
        %2265 = vmatmul.mubr.bf16.gmra.mrb[0].mxu0 %v1786
        %v2266 = vpop.f32.mrb[0].mxu0
        %v2267 = vadd.f32 %v1885, %v2266
        %v2268 = vpop.f32.mrb[0].mxu0
        %v2269 = vadd.f32 %v1889, %v2268
        %v2270 = vpop.f32.mrb[0].mxu0
        %v2271 = vadd.f32 %v1885, %v2270
        %v2272 = vpop.f32.mrb[0].mxu0
        %v2273 = vadd.f32 %v1889, %v2272
        %2274 = vmatprep.mubr.bf16.mxu0 %v1789
        %2275 = vmatmul.mubr.bf16.gmra.mrb[0].mxu0 %v1788
        %v2276 = vpop.f32.mrb[0].mxu0
        %v2277 = vadd.f32 %v1885, %v2276
        %v2278 = vpop.f32.mrb[0].mxu0
        %v2279 = vadd.f32 %v1889, %v2278
        %v2280 = vpop.f32.mrb[0].mxu0
        %v2281 = vadd.f32 %v1885, %v2280
        %v2282 = vpop.f32.mrb[0].mxu0
        %v2283 = vadd.f32 %v1889, %v2282
        %2284 = vmatprep.mubr.bf16.mxu0 %v1791
        %2285 = vmatmul.mubr.bf16.gmra.mrb[0].mxu0 %v1790
        %v2286 = vpop.f32.mrb[0].mxu0
        %v2287 = vadd.f32 %v1885, %v2286
        %v2288 = vpop.f32.mrb[0].mxu0
        %v2289 = vadd.f32 %v1889, %v2288
        %v2290 = vpop.f32.mrb[0].mxu0
        %v2291 = vadd.f32 %v1885, %v2290
        %v2292 = vpop.f32.mrb[0].mxu0
        %v2293 = vadd.f32 %v1889, %v2292
        %2294 = vmatprep.mubr.bf16.mxu0 %v1793
        %2295 = vmatmul.mubr.bf16.gmra.mrb[0].mxu0 %v1792
        %v2296 = vpop.f32.mrb[0].mxu0
        %v2297 = vadd.f32 %v1885, %v2296
        %v2298 = vpop.f32.mrb[0].mxu0
        %v2299 = vadd.f32 %v1889, %v2298
        %v2300 = vpop.f32.mrb[0].mxu0
        %v2301 = vadd.f32 %v1885, %v2300
        %v2302 = vpop.f32.mrb[0].mxu0
        %v2303 = vadd.f32 %v1889, %v2302
        %2304 = vmatprep.mubr.bf16.mxu0 %v1795
        %2305 = vmatmul.mubr.bf16.gmra.mrb[0].mxu0 %v1794
        %v2306 = vpop.f32.mrb[0].mxu0
        %v2307 = vadd.f32 %v1885, %v2306
        %v2308 = vpop.f32.mrb[0].mxu0
        %v2309 = vadd.f32 %v1889, %v2308
        %v2310 = vpop.f32.mrb[0].mxu0
        %v2311 = vadd.f32 %v1885, %v2310
        %v2312 = vpop.f32.mrb[0].mxu0
        %v2313 = vadd.f32 %v1889, %v2312
        %2314 = vmatprep.mubr.bf16.mxu0 %v1797
        %2315 = vmatmul.mubr.bf16.gmra.mrb[0].mxu0 %v1796
        %v2316 = vpop.f32.mrb[0].mxu0
        %v2317 = vadd.f32 %v1885, %v2316
        %v2318 = vpop.f32.mrb[0].mxu0
        %v2319 = vadd.f32 %v1889, %v2318
        %v2320 = vpop.f32.mrb[0].mxu0
        %v2321 = vadd.f32 %v1885, %v2320
        %v2322 = vpop.f32.mrb[0].mxu0
        %v2323 = vadd.f32 %v1889, %v2322
        %2324 = vmatprep.mubr.bf16.mxu0 %v1799
        %2325 = vmatmul.mubr.bf16.gmra.mrb[0].mxu0 %v1798
        %v2326 = vpop.f32.mrb[0].mxu0
        %v2327 = vadd.f32 %v1885, %v2326
        %v2328 = vpop.f32.mrb[0].mxu0
        %v2329 = vadd.f32 %v1889, %v2328
        %v2330 = vpop.f32.mrb[0].mxu0
        %v2331 = vadd.f32 %v1885, %v2330
        %v2332 = vpop.f32.mrb[0].mxu0
        %v2333 = vadd.f32 %v1889, %v2332
        %2334 = vmatprep.mubr.bf16.mxu0 %v1801
        %2335 = vmatmul.mubr.bf16.gmra.mrb[0].mxu0 %v1800
        %v2336 = vpop.f32.mrb[0].mxu0
        %v2337 = vadd.f32 %v1885, %v2336
        %v2338 = vpop.f32.mrb[0].mxu0
        %v2339 = vadd.f32 %v1889, %v2338
        %v2340 = vpop.f32.mrb[0].mxu0
        %v2341 = vadd.f32 %v1885, %v2340
        %v2342 = vpop.f32.mrb[0].mxu0
        %v2343 = vadd.f32 %v1889, %v2342
        %2344 = vmatprep.mubr.bf16.mxu0 %v1803
        %2345 = vmatmul.mubr.bf16.gmra.mrb[0].mxu0 %v1802
        %v2346 = vpop.f32.mrb[0].mxu0
        %v2347 = vadd.f32 %v1885, %v2346
        %v2348 = vpop.f32.mrb[0].mxu0
        %v2349 = vadd.f32 %v1889, %v2348
        %v2350 = vpop.f32.mrb[0].mxu0
        %v2351 = vadd.f32 %v1885, %v2350
        %v2352 = vpop.f32.mrb[0].mxu0
        %v2353 = vadd.f32 %v1889, %v2352
        %2354 = vmatprep.mubr.bf16.mxu0 %v1805
        %2355 = vmatmul.mubr.bf16.gmra.mrb[0].mxu0 %v1804
        %v2356 = vpop.f32.mrb[0].mxu0
        %v2357 = vadd.f32 %v1885, %v2356
        %v2358 = vpop.f32.mrb[0].mxu0
        %v2359 = vadd.f32 %v1889, %v2358
        %v2360 = vpop.f32.mrb[0].mxu0
        %v2361 = vadd.f32 %v1885, %v2360
        %v2362 = vpop.f32.mrb[0].mxu0
        %v2363 = vadd.f32 %v1889, %v2362
        %2364 = vmatprep.mubr.bf16.mxu0 %v1807
        %2365 = vmatmul.mubr.bf16.gmra.mrb[0].mxu0 %v1806
        %v2366 = vpop.f32.mrb[0].mxu0
        %v2367 = vadd.f32 %v1885, %v2366
        %v2368 = vpop.f32.mrb[0].mxu0
        %v2369 = vadd.f32 %v1889, %v2368
        %v2370 = vpop.f32.mrb[0].mxu0
        %v2371 = vadd.f32 %v1885, %v2370
        %v2372 = vpop.f32.mrb[0].mxu0
        %v2373 = vadd.f32 %v1889, %v2372
        %2374 = vmatprep.mubr.bf16.mxu0 %v1809
        %2375 = vmatmul.mubr.bf16.gmra.mrb[0].mxu0 %v1808
        %v2376 = vpop.f32.mrb[0].mxu0
        %v2377 = vadd.f32 %v1885, %v2376
        %v2378 = vpop.f32.mrb[0].mxu0
        %v2379 = vadd.f32 %v1889, %v2378
        %v2380 = vpop.f32.mrb[0].mxu0
        %v2381 = vadd.f32 %v1885, %v2380
        %v2382 = vpop.f32.mrb[0].mxu0
        %v2383 = vadd.f32 %v1889, %v2382
        %2384 = vmatprep.mubr.bf16.mxu0 %v1811
        %2385 = vmatmul.mubr.bf16.gmra.mrb[0].mxu0 %v1810
        %v2386 = vpop.f32.mrb[0].mxu0
        %v2387 = vadd.f32 %v1885, %v2386
        %v2388 = vpop.f32.mrb[0].mxu0
        %v2389 = vadd.f32 %v1889, %v2388
        %v2390 = vpop.f32.mrb[0].mxu0
        %v2391 = vadd.f32 %v1885, %v2390
        %v2392 = vpop.f32.mrb[0].mxu0
        %v2393 = vadd.f32 %v1889, %v2392
        %2394 = vmatprep.mubr.bf16.mxu0 %v1813
        %2395 = vmatmul.mubr.bf16.gmra.mrb[0].mxu0 %v1812
        %v2396 = vpop.f32.mrb[0].mxu0
        %v2397 = vadd.f32 %v1885, %v2396
        %v2398 = vpop.f32.mrb[0].mxu0
        %v2399 = vadd.f32 %v1889, %v2398
        %v2400 = vpop.f32.mrb[0].mxu0
        %v2401 = vadd.f32 %v1885, %v2400
        %v2402 = vpop.f32.mrb[0].mxu0
        %v2403 = vadd.f32 %v1889, %v2402
        %2404 = vmatprep.mubr.bf16.mxu0 %v1815
        %2405 = vmatmul.mubr.bf16.gmra.mrb[0].mxu0 %v1814
        %v2406 = vpop.f32.mrb[0].mxu0
        %v2407 = vadd.f32 %v1885, %v2406
        %v2408 = vpop.f32.mrb[0].mxu0
        %v2409 = vadd.f32 %v1889, %v2408
        %v2410 = vpop.f32.mrb[0].mxu0
        %v2411 = vadd.f32 %v1885, %v2410
        %v2412 = vpop.f32.mrb[0].mxu0
        %v2413 = vadd.f32 %v1889, %v2412
        %2414 = vdwg.mxu0
        %2415 = vmatprep.subr.bf16.mxu0 %v2097
        %2416 = vmatpush1.bf16.msra.mxu0 %v2096
        %2417 = vmatprep.subr.bf16.mxu0 %v2101
        %2418 = vmatpush1.bf16.msra.mxu0 %v2100
        %2419 = vmatprep.subr.bf16.mxu0 %v2105
        %2420 = vmatpush1.bf16.msra.mxu0 %v2104
        %2421 = vmatprep.subr.bf16.mxu0 %v2109
        %2422 = vmatpush1.bf16.msra.mxu0 %v2108
        %2423 = vmatprep.subr.bf16.mxu0 %v2113
        %2424 = vmatpush1.bf16.msra.mxu0 %v2112
        %2425 = vmatprep.subr.bf16.mxu0 %v2117
        %2426 = vmatpush1.bf16.msra.mxu0 %v2116
        %2427 = vmatprep.subr.bf16.mxu0 %v2121
        %2428 = vmatpush1.bf16.msra.mxu0 %v2120
        %2429 = vmatprep.subr.bf16.mxu0 %v2125
        %2430 = vmatpush1.bf16.msra.mxu0 %v2124
        %2431 = vmatprep.subr.bf16.mxu0 %v2129
        %2432 = vmatpush1.bf16.msra.mxu0 %v2128
        %2433 = vmatprep.subr.bf16.mxu0 %v2133
        %2434 = vmatpush1.bf16.msra.mxu0 %v2132
        %2435 = vmatprep.subr.bf16.mxu0 %v2137
        %2436 = vmatpush1.bf16.msra.mxu0 %v2136
        %2437 = vmatprep.subr.bf16.mxu0 %v2141
        %2438 = vmatpush1.bf16.msra.mxu0 %v2140
        %2439 = vmatprep.subr.bf16.mxu0 %v2145
        %2440 = vmatpush1.bf16.msra.mxu0 %v2144
        %2441 = vmatprep.subr.bf16.mxu0 %v2149
        %2442 = vmatpush1.bf16.msra.mxu0 %v2148
        %2443 = vmatprep.subr.bf16.mxu0 %v2153
        %2444 = vmatpush1.bf16.msra.mxu0 %v2152
        %2445 = vmatprep.subr.bf16.mxu0 %v2157
        %2446 = vmatpush1.bf16.msra.mxu0 %v2156
        %2447 = vmatprep.mubr.bf16.mxu0 %v1785
        %2448 = vmatmul.mubr.bf16.gmra.mrb[0].mxu0 %v1784
        %v2449 = vpop.f32.mrb[0].mxu0
        %v2450 = vadd.f32 %v1893, %v2449
        %v2451 = vpop.f32.mrb[0].mxu0
        %v2452 = vadd.f32 %v1897, %v2451
        %v2453 = vpop.f32.mrb[0].mxu0
        %v2454 = vadd.f32 %v1893, %v2453
        %v2455 = vpop.f32.mrb[0].mxu0
        %v2456 = vadd.f32 %v1897, %v2455
        %2457 = vmatprep.mubr.bf16.mxu0 %v1787
        %2458 = vmatmul.mubr.bf16.gmra.mrb[0].mxu0 %v1786
        %v2459 = vpop.f32.mrb[0].mxu0
        %v2460 = vadd.f32 %v1893, %v2459
        %v2461 = vpop.f32.mrb[0].mxu0
        %v2462 = vadd.f32 %v1897, %v2461
        %v2463 = vpop.f32.mrb[0].mxu0
        %v2464 = vadd.f32 %v1893, %v2463
        %v2465 = vpop.f32.mrb[0].mxu0
        %v2466 = vadd.f32 %v1897, %v2465
        %2467 = vmatprep.mubr.bf16.mxu0 %v1789
        %2468 = vmatmul.mubr.bf16.gmra.mrb[0].mxu0 %v1788
        %v2469 = vpop.f32.mrb[0].mxu0
        %v2470 = vadd.f32 %v1893, %v2469
        %v2471 = vpop.f32.mrb[0].mxu0
        %v2472 = vadd.f32 %v1897, %v2471
        %v2473 = vpop.f32.mrb[0].mxu0
        %v2474 = vadd.f32 %v1893, %v2473
        %v2475 = vpop.f32.mrb[0].mxu0
        %v2476 = vadd.f32 %v1897, %v2475
        %2477 = vmatprep.mubr.bf16.mxu0 %v1791
        %2478 = vmatmul.mubr.bf16.gmra.mrb[0].mxu0 %v1790
        %v2479 = vpop.f32.mrb[0].mxu0
        %v2480 = vadd.f32 %v1893, %v2479
        %v2481 = vpop.f32.mrb[0].mxu0
        %v2482 = vadd.f32 %v1897, %v2481
        %v2483 = vpop.f32.mrb[0].mxu0
        %v2484 = vadd.f32 %v1893, %v2483
        %v2485 = vpop.f32.mrb[0].mxu0
        %v2486 = vadd.f32 %v1897, %v2485
        %2487 = vmatprep.mubr.bf16.mxu0 %v1793
        %2488 = vmatmul.mubr.bf16.gmra.mrb[0].mxu0 %v1792
        %v2489 = vpop.f32.mrb[0].mxu0
        %v2490 = vadd.f32 %v1893, %v2489
        %v2491 = vpop.f32.mrb[0].mxu0
        %v2492 = vadd.f32 %v1897, %v2491
        %v2493 = vpop.f32.mrb[0].mxu0
        %v2494 = vadd.f32 %v1893, %v2493
        %v2495 = vpop.f32.mrb[0].mxu0
        %v2496 = vadd.f32 %v1897, %v2495
        %2497 = vmatprep.mubr.bf16.mxu0 %v1795
        %2498 = vmatmul.mubr.bf16.gmra.mrb[0].mxu0 %v1794
        %v2499 = vpop.f32.mrb[0].mxu0
        %v2500 = vadd.f32 %v1893, %v2499
        %v2501 = vpop.f32.mrb[0].mxu0
        %v2502 = vadd.f32 %v1897, %v2501
        %v2503 = vpop.f32.mrb[0].mxu0
        %v2504 = vadd.f32 %v1893, %v2503
        %v2505 = vpop.f32.mrb[0].mxu0
        %v2506 = vadd.f32 %v1897, %v2505
        %2507 = vmatprep.mubr.bf16.mxu0 %v1797
        %2508 = vmatmul.mubr.bf16.gmra.mrb[0].mxu0 %v1796
        %v2509 = vpop.f32.mrb[0].mxu0
        %v2510 = vadd.f32 %v1893, %v2509
        %v2511 = vpop.f32.mrb[0].mxu0
        %v2512 = vadd.f32 %v1897, %v2511
        %v2513 = vpop.f32.mrb[0].mxu0
        %v2514 = vadd.f32 %v1893, %v2513
        %v2515 = vpop.f32.mrb[0].mxu0
        %v2516 = vadd.f32 %v1897, %v2515
        %2517 = vmatprep.mubr.bf16.mxu0 %v1799
        %2518 = vmatmul.mubr.bf16.gmra.mrb[0].mxu0 %v1798
        %v2519 = vpop.f32.mrb[0].mxu0
        %v2520 = vadd.f32 %v1893, %v2519
        %v2521 = vpop.f32.mrb[0].mxu0
        %v2522 = vadd.f32 %v1897, %v2521
        %v2523 = vpop.f32.mrb[0].mxu0
        %v2524 = vadd.f32 %v1893, %v2523
        %v2525 = vpop.f32.mrb[0].mxu0
        %v2526 = vadd.f32 %v1897, %v2525
        %2527 = vmatprep.mubr.bf16.mxu0 %v1801
        %2528 = vmatmul.mubr.bf16.gmra.mrb[0].mxu0 %v1800
        %v2529 = vpop.f32.mrb[0].mxu0
        %v2530 = vadd.f32 %v1893, %v2529
        %v2531 = vpop.f32.mrb[0].mxu0
        %v2532 = vadd.f32 %v1897, %v2531
        %v2533 = vpop.f32.mrb[0].mxu0
        %v2534 = vadd.f32 %v1893, %v2533
        %v2535 = vpop.f32.mrb[0].mxu0
        %v2536 = vadd.f32 %v1897, %v2535
        %2537 = vmatprep.mubr.bf16.mxu0 %v1803
        %2538 = vmatmul.mubr.bf16.gmra.mrb[0].mxu0 %v1802
        %v2539 = vpop.f32.mrb[0].mxu0
        %v2540 = vadd.f32 %v1893, %v2539
        %v2541 = vpop.f32.mrb[0].mxu0
        %v2542 = vadd.f32 %v1897, %v2541
        %v2543 = vpop.f32.mrb[0].mxu0
        %v2544 = vadd.f32 %v1893, %v2543
        %v2545 = vpop.f32.mrb[0].mxu0
        %v2546 = vadd.f32 %v1897, %v2545
        %2547 = vmatprep.mubr.bf16.mxu0 %v1805
        %2548 = vmatmul.mubr.bf16.gmra.mrb[0].mxu0 %v1804
        %v2549 = vpop.f32.mrb[0].mxu0
        %v2550 = vadd.f32 %v1893, %v2549
        %v2551 = vpop.f32.mrb[0].mxu0
        %v2552 = vadd.f32 %v1897, %v2551
        %v2553 = vpop.f32.mrb[0].mxu0
        %v2554 = vadd.f32 %v1893, %v2553
        %v2555 = vpop.f32.mrb[0].mxu0
        %v2556 = vadd.f32 %v1897, %v2555
        %2557 = vmatprep.mubr.bf16.mxu0 %v1807
        %2558 = vmatmul.mubr.bf16.gmra.mrb[0].mxu0 %v1806
        %v2559 = vpop.f32.mrb[0].mxu0
        %v2560 = vadd.f32 %v1893, %v2559
        %v2561 = vpop.f32.mrb[0].mxu0
        %v2562 = vadd.f32 %v1897, %v2561
        %v2563 = vpop.f32.mrb[0].mxu0
        %v2564 = vadd.f32 %v1893, %v2563
        %v2565 = vpop.f32.mrb[0].mxu0
        %v2566 = vadd.f32 %v1897, %v2565
        %2567 = vmatprep.mubr.bf16.mxu0 %v1809
        %2568 = vmatmul.mubr.bf16.gmra.mrb[0].mxu0 %v1808
        %v2569 = vpop.f32.mrb[0].mxu0
        %v2570 = vadd.f32 %v1893, %v2569
        %v2571 = vpop.f32.mrb[0].mxu0
        %v2572 = vadd.f32 %v1897, %v2571
        %v2573 = vpop.f32.mrb[0].mxu0
        %v2574 = vadd.f32 %v1893, %v2573
        %v2575 = vpop.f32.mrb[0].mxu0
        %v2576 = vadd.f32 %v1897, %v2575
        %2577 = vmatprep.mubr.bf16.mxu0 %v1811
        %2578 = vmatmul.mubr.bf16.gmra.mrb[0].mxu0 %v1810
        %v2579 = vpop.f32.mrb[0].mxu0
        %v2580 = vadd.f32 %v1893, %v2579
        %v2581 = vpop.f32.mrb[0].mxu0
        %v2582 = vadd.f32 %v1897, %v2581
        %v2583 = vpop.f32.mrb[0].mxu0
        %v2584 = vadd.f32 %v1893, %v2583
        %v2585 = vpop.f32.mrb[0].mxu0
        %v2586 = vadd.f32 %v1897, %v2585
        %2587 = vmatprep.mubr.bf16.mxu0 %v1813
        %2588 = vmatmul.mubr.bf16.gmra.mrb[0].mxu0 %v1812
        %v2589 = vpop.f32.mrb[0].mxu0
        %v2590 = vadd.f32 %v1893, %v2589
        %v2591 = vpop.f32.mrb[0].mxu0
        %v2592 = vadd.f32 %v1897, %v2591
        %v2593 = vpop.f32.mrb[0].mxu0
        %v2594 = vadd.f32 %v1893, %v2593
        %v2595 = vpop.f32.mrb[0].mxu0
        %v2596 = vadd.f32 %v1897, %v2595
        %2597 = vmatprep.mubr.bf16.mxu0 %v1815
        %2598 = vmatmul.mubr.bf16.gmra.mrb[0].mxu0 %v1814
        %v2599 = vpop.f32.mrb[0].mxu0
        %v2600 = vadd.f32 %v1893, %v2599
        %v2601 = vpop.f32.mrb[0].mxu0
        %v2602 = vadd.f32 %v1897, %v2601
        %v2603 = vpop.f32.mrb[0].mxu0
        %v2604 = vadd.f32 %v1893, %v2603
        %v2605 = vpop.f32.mrb[0].mxu0
        %v2606 = vadd.f32 %v1897, %v2605
        %2607 = vdwg.mxu0
        %v2608 = vmax.f32 %v2257, 0.0
        %v2609 = vmax.f32 %v2259, 0.0
        %v2610 = vmax.f32 %v2450, 0.0
        %v2611 = vmax.f32 %v2452, 0.0
        %v2612 = vmax.f32 %v2261, 0.0
        %v2613 = vmax.f32 %v2263, 0.0
        %v2614 = vmax.f32 %v2454, 0.0
        %v2615 = vmax.f32 %v2456, 0.0
        %v2616 = vmax.f32 %v2267, 0.0
        %v2617 = vmax.f32 %v2269, 0.0
        %v2618 = vmax.f32 %v2460, 0.0
        %v2619 = vmax.f32 %v2462, 0.0
        %v2620 = vmax.f32 %v2271, 0.0
        %v2621 = vmax.f32 %v2273, 0.0
        %v2622 = vmax.f32 %v2464, 0.0
        %v2623 = vmax.f32 %v2466, 0.0
        %v2624 = vmax.f32 %v2277, 0.0
        %v2625 = vmax.f32 %v2279, 0.0
        %v2626 = vmax.f32 %v2470, 0.0
        %v2627 = vmax.f32 %v2472, 0.0
        %v2628 = vmax.f32 %v2281, 0.0
        %v2629 = vmax.f32 %v2283, 0.0
        %v2630 = vmax.f32 %v2474, 0.0
        %v2631 = vmax.f32 %v2476, 0.0
        %v2632 = vmax.f32 %v2287, 0.0
        %v2633 = vmax.f32 %v2289, 0.0
        %v2634 = vmax.f32 %v2480, 0.0
        %v2635 = vmax.f32 %v2482, 0.0
        %v2636 = vmax.f32 %v2291, 0.0
        %v2637 = vmax.f32 %v2293, 0.0
        %v2638 = vmax.f32 %v2484, 0.0
        %v2639 = vmax.f32 %v2486, 0.0
        %v2640 = vmax.f32 %v2297, 0.0
        %v2641 = vmax.f32 %v2299, 0.0
        %v2642 = vmax.f32 %v2490, 0.0
        %v2643 = vmax.f32 %v2492, 0.0
        %v2644 = vmax.f32 %v2301, 0.0
        %v2645 = vmax.f32 %v2303, 0.0
        %v2646 = vmax.f32 %v2494, 0.0
        %v2647 = vmax.f32 %v2496, 0.0
        %v2648 = vmax.f32 %v2307, 0.0
        %v2649 = vmax.f32 %v2309, 0.0
        %v2650 = vmax.f32 %v2500, 0.0
        %v2651 = vmax.f32 %v2502, 0.0
        %v2652 = vmax.f32 %v2311, 0.0
        %v2653 = vmax.f32 %v2313, 0.0
        %v2654 = vmax.f32 %v2504, 0.0
        %v2655 = vmax.f32 %v2506, 0.0
        %v2656 = vmax.f32 %v2317, 0.0
        %v2657 = vmax.f32 %v2319, 0.0
        %v2658 = vmax.f32 %v2510, 0.0
        %v2659 = vmax.f32 %v2512, 0.0
        %v2660 = vmax.f32 %v2321, 0.0
        %v2661 = vmax.f32 %v2323, 0.0
        %v2662 = vmax.f32 %v2514, 0.0
        %v2663 = vmax.f32 %v2516, 0.0
        %v2664 = vmax.f32 %v2327, 0.0
        %v2665 = vmax.f32 %v2329, 0.0
        %v2666 = vmax.f32 %v2520, 0.0
        %v2667 = vmax.f32 %v2522, 0.0
        %v2668 = vmax.f32 %v2331, 0.0
        %v2669 = vmax.f32 %v2333, 0.0
        %v2670 = vmax.f32 %v2524, 0.0
        %v2671 = vmax.f32 %v2526, 0.0
        %v2672 = vmax.f32 %v2337, 0.0
        %v2673 = vmax.f32 %v2339, 0.0
        %v2674 = vmax.f32 %v2530, 0.0
        %v2675 = vmax.f32 %v2532, 0.0
        %v2676 = vmax.f32 %v2341, 0.0
        %v2677 = vmax.f32 %v2343, 0.0
        %v2678 = vmax.f32 %v2534, 0.0
        %v2679 = vmax.f32 %v2536, 0.0
        %v2680 = vmax.f32 %v2347, 0.0
        %v2681 = vmax.f32 %v2349, 0.0
        %v2682 = vmax.f32 %v2540, 0.0
        %v2683 = vmax.f32 %v2542, 0.0
        %v2684 = vmax.f32 %v2351, 0.0
        %v2685 = vmax.f32 %v2353, 0.0
        %v2686 = vmax.f32 %v2544, 0.0
        %v2687 = vmax.f32 %v2546, 0.0
        %v2688 = vmax.f32 %v2357, 0.0
        %v2689 = vmax.f32 %v2359, 0.0
        %v2690 = vmax.f32 %v2550, 0.0
        %v2691 = vmax.f32 %v2552, 0.0
        %v2692 = vmax.f32 %v2361, 0.0
        %v2693 = vmax.f32 %v2363, 0.0
        %v2694 = vmax.f32 %v2554, 0.0
        %v2695 = vmax.f32 %v2556, 0.0
        %v2696 = vmax.f32 %v2367, 0.0
        %v2697 = vmax.f32 %v2369, 0.0
        %v2698 = vmax.f32 %v2560, 0.0
        %v2699 = vmax.f32 %v2562, 0.0
        %v2700 = vmax.f32 %v2371, 0.0
        %v2701 = vmax.f32 %v2373, 0.0
        %v2702 = vmax.f32 %v2564, 0.0
        %v2703 = vmax.f32 %v2566, 0.0
        %v2704 = vmax.f32 %v2377, 0.0
        %v2705 = vmax.f32 %v2379, 0.0
        %v2706 = vmax.f32 %v2570, 0.0
        %v2707 = vmax.f32 %v2572, 0.0
        %v2708 = vmax.f32 %v2381, 0.0
        %v2709 = vmax.f32 %v2383, 0.0
        %v2710 = vmax.f32 %v2574, 0.0
        %v2711 = vmax.f32 %v2576, 0.0
        %v2712 = vmax.f32 %v2387, 0.0
        %v2713 = vmax.f32 %v2389, 0.0
        %v2714 = vmax.f32 %v2580, 0.0
        %v2715 = vmax.f32 %v2582, 0.0
        %v2716 = vmax.f32 %v2391, 0.0
        %v2717 = vmax.f32 %v2393, 0.0
        %v2718 = vmax.f32 %v2584, 0.0
        %v2719 = vmax.f32 %v2586, 0.0
        %v2720 = vmax.f32 %v2397, 0.0
        %v2721 = vmax.f32 %v2399, 0.0
        %v2722 = vmax.f32 %v2590, 0.0
        %v2723 = vmax.f32 %v2592, 0.0
        %v2724 = vmax.f32 %v2401, 0.0
        %v2725 = vmax.f32 %v2403, 0.0
        %v2726 = vmax.f32 %v2594, 0.0
        %v2727 = vmax.f32 %v2596, 0.0
        %v2728 = vmax.f32 %v2407, 0.0
        %v2729 = vmax.f32 %v2409, 0.0
        %v2730 = vmax.f32 %v2600, 0.0
        %v2731 = vmax.f32 %v2602, 0.0
        %v2732 = vmax.f32 %v2411, 0.0
        %v2733 = vmax.f32 %v2413, 0.0
        %v2734 = vmax.f32 %v2604, 0.0
        %v2735 = vmax.f32 %v2606, 0.0
        %2736 = vst [vmem:[#allocation3] sm:$0xff] %v2608
        %2737 = vst [vmem:[#allocation3 + $0x8] sm:$0xff] %v2609
        %2738 = vst [vmem:[#allocation3 + $0x10] sm:$0xff] %v2610
        %2739 = vst [vmem:[#allocation3 + $0x18] sm:$0xff] %v2611
        %2740 = vst [vmem:[#allocation3 + $0x20] sm:$0xff] %v2612
        %2741 = vst [vmem:[#allocation3 + $0x28] sm:$0xff] %v2613
        %2742 = vst [vmem:[#allocation3 + $0x30] sm:$0xff] %v2614
        %2743 = vst [vmem:[#allocation3 + $0x38] sm:$0xff] %v2615
        %2744 = vst [vmem:[#allocation3 + $0x40] sm:$0xff] %v2616
        %2745 = vst [vmem:[#allocation3 + $0x48] sm:$0xff] %v2617
        %2746 = vst [vmem:[#allocation3 + $0x50] sm:$0xff] %v2618
        %2747 = vst [vmem:[#allocation3 + $0x58] sm:$0xff] %v2619
        %2748 = vst [vmem:[#allocation3 + $0x60] sm:$0xff] %v2620
        %2749 = vst [vmem:[#allocation3 + $0x68] sm:$0xff] %v2621
        %2750 = vst [vmem:[#allocation3 + $0x70] sm:$0xff] %v2622
        %2751 = vst [vmem:[#allocation3 + $0x78] sm:$0xff] %v2623
        %2752 = vst [vmem:[#allocation3 + $0x80] sm:$0xff] %v2624
        %2753 = vst [vmem:[#allocation3 + $0x88] sm:$0xff] %v2625
        %2754 = vst [vmem:[#allocation3 + $0x90] sm:$0xff] %v2626
        %2755 = vst [vmem:[#allocation3 + $0x98] sm:$0xff] %v2627
        %2756 = vst [vmem:[#allocation3 + $0xa0] sm:$0xff] %v2628
        %2757 = vst [vmem:[#allocation3 + $0xa8] sm:$0xff] %v2629
        %2758 = vst [vmem:[#allocation3 + $0xb0] sm:$0xff] %v2630
        %2759 = vst [vmem:[#allocation3 + $0xb8] sm:$0xff] %v2631
        %2760 = vst [vmem:[#allocation3 + $0xc0] sm:$0xff] %v2632
        %2761 = vst [vmem:[#allocation3 + $0xc8] sm:$0xff] %v2633
        %2762 = vst [vmem:[#allocation3 + $0xd0] sm:$0xff] %v2634
        %2763 = vst [vmem:[#allocation3 + $0xd8] sm:$0xff] %v2635
        %2764 = vst [vmem:[#allocation3 + $0xe0] sm:$0xff] %v2636
        %2765 = vst [vmem:[#allocation3 + $0xe8] sm:$0xff] %v2637
        %2766 = vst [vmem:[#allocation3 + $0xf0] sm:$0xff] %v2638
        %2767 = vst [vmem:[#allocation3 + $0xf8] sm:$0xff] %v2639
        %2768 = vst [vmem:[#allocation3 + $0x100] sm:$0xff] %v2640
        %2769 = vst [vmem:[#allocation3 + $0x108] sm:$0xff] %v2641
        %2770 = vst [vmem:[#allocation3 + $0x110] sm:$0xff] %v2642
        %2771 = vst [vmem:[#allocation3 + $0x118] sm:$0xff] %v2643
        %2772 = vst [vmem:[#allocation3 + $0x120] sm:$0xff] %v2644
        %2773 = vst [vmem:[#allocation3 + $0x128] sm:$0xff] %v2645
        %2774 = vst [vmem:[#allocation3 + $0x130] sm:$0xff] %v2646
        %2775 = vst [vmem:[#allocation3 + $0x138] sm:$0xff] %v2647
        %2776 = vst [vmem:[#allocation3 + $0x140] sm:$0xff] %v2648
        %2777 = vst [vmem:[#allocation3 + $0x148] sm:$0xff] %v2649
        %2778 = vst [vmem:[#allocation3 + $0x150] sm:$0xff] %v2650
        %2779 = vst [vmem:[#allocation3 + $0x158] sm:$0xff] %v2651
        %2780 = vst [vmem:[#allocation3 + $0x160] sm:$0xff] %v2652
        %2781 = vst [vmem:[#allocation3 + $0x168] sm:$0xff] %v2653
        %2782 = vst [vmem:[#allocation3 + $0x170] sm:$0xff] %v2654
        %2783 = vst [vmem:[#allocation3 + $0x178] sm:$0xff] %v2655
        %2784 = vst [vmem:[#allocation3 + $0x180] sm:$0xff] %v2656
        %2785 = vst [vmem:[#allocation3 + $0x188] sm:$0xff] %v2657
        %2786 = vst [vmem:[#allocation3 + $0x190] sm:$0xff] %v2658
        %2787 = vst [vmem:[#allocation3 + $0x198] sm:$0xff] %v2659
        %2788 = vst [vmem:[#allocation3 + $0x1a0] sm:$0xff] %v2660
        %2789 = vst [vmem:[#allocation3 + $0x1a8] sm:$0xff] %v2661
        %2790 = vst [vmem:[#allocation3 + $0x1b0] sm:$0xff] %v2662
        %2791 = vst [vmem:[#allocation3 + $0x1b8] sm:$0xff] %v2663
        %2792 = vst [vmem:[#allocation3 + $0x1c0] sm:$0xff] %v2664
        %2793 = vst [vmem:[#allocation3 + $0x1c8] sm:$0xff] %v2665
        %2794 = vst [vmem:[#allocation3 + $0x1d0] sm:$0xff] %v2666
        %2795 = vst [vmem:[#allocation3 + $0x1d8] sm:$0xff] %v2667
        %2796 = vst [vmem:[#allocation3 + $0x1e0] sm:$0xff] %v2668
        %2797 = vst [vmem:[#allocation3 + $0x1e8] sm:$0xff] %v2669
        %2798 = vst [vmem:[#allocation3 + $0x1f0] sm:$0xff] %v2670
        %2799 = vst [vmem:[#allocation3 + $0x1f8] sm:$0xff] %v2671
        %2800 = vst [vmem:[#allocation3 + $0x200] sm:$0xff] %v2672
        %2801 = vst [vmem:[#allocation3 + $0x208] sm:$0xff] %v2673
        %2802 = vst [vmem:[#allocation3 + $0x210] sm:$0xff] %v2674
        %2803 = vst [vmem:[#allocation3 + $0x218] sm:$0xff] %v2675
        %2804 = vst [vmem:[#allocation3 + $0x220] sm:$0xff] %v2676
        %2805 = vst [vmem:[#allocation3 + $0x228] sm:$0xff] %v2677
        %2806 = vst [vmem:[#allocation3 + $0x230] sm:$0xff] %v2678
        %2807 = vst [vmem:[#allocation3 + $0x238] sm:$0xff] %v2679
        %2808 = vst [vmem:[#allocation3 + $0x240] sm:$0xff] %v2680
        %2809 = vst [vmem:[#allocation3 + $0x248] sm:$0xff] %v2681
        %2810 = vst [vmem:[#allocation3 + $0x250] sm:$0xff] %v2682
        %2811 = vst [vmem:[#allocation3 + $0x258] sm:$0xff] %v2683
        %2812 = vst [vmem:[#allocation3 + $0x260] sm:$0xff] %v2684
        %2813 = vst [vmem:[#allocation3 + $0x268] sm:$0xff] %v2685
        %2814 = vst [vmem:[#allocation3 + $0x270] sm:$0xff] %v2686
        %2815 = vst [vmem:[#allocation3 + $0x278] sm:$0xff] %v2687
        %2816 = vst [vmem:[#allocation3 + $0x280] sm:$0xff] %v2688
        %2817 = vst [vmem:[#allocation3 + $0x288] sm:$0xff] %v2689
        %2818 = vst [vmem:[#allocation3 + $0x290] sm:$0xff] %v2690
        %2819 = vst [vmem:[#allocation3 + $0x298] sm:$0xff] %v2691
        %2820 = vst [vmem:[#allocation3 + $0x2a0] sm:$0xff] %v2692
        %2821 = vst [vmem:[#allocation3 + $0x2a8] sm:$0xff] %v2693
        %2822 = vst [vmem:[#allocation3 + $0x2b0] sm:$0xff] %v2694
        %2823 = vst [vmem:[#allocation3 + $0x2b8] sm:$0xff] %v2695
        %2824 = vst [vmem:[#allocation3 + $0x2c0] sm:$0xff] %v2696
        %2825 = vst [vmem:[#allocation3 + $0x2c8] sm:$0xff] %v2697
        %2826 = vst [vmem:[#allocation3 + $0x2d0] sm:$0xff] %v2698
        %2827 = vst [vmem:[#allocation3 + $0x2d8] sm:$0xff] %v2699
        %2828 = vst [vmem:[#allocation3 + $0x2e0] sm:$0xff] %v2700
        %2829 = vst [vmem:[#allocation3 + $0x2e8] sm:$0xff] %v2701
        %2830 = vst [vmem:[#allocation3 + $0x2f0] sm:$0xff] %v2702
        %2831 = vst [vmem:[#allocation3 + $0x2f8] sm:$0xff] %v2703
        %2832 = vst [vmem:[#allocation3 + $0x300] sm:$0xff] %v2704
        %2833 = vst [vmem:[#allocation3 + $0x308] sm:$0xff] %v2705
        %2834 = vst [vmem:[#allocation3 + $0x310] sm:$0xff] %v2706
        %2835 = vst [vmem:[#allocation3 + $0x318] sm:$0xff] %v2707
        %2836 = vst [vmem:[#allocation3 + $0x320] sm:$0xff] %v2708
        %2837 = vst [vmem:[#allocation3 + $0x328] sm:$0xff] %v2709
        %2838 = vst [vmem:[#allocation3 + $0x330] sm:$0xff] %v2710
        %2839 = vst [vmem:[#allocation3 + $0x338] sm:$0xff] %v2711
        %2840 = vst [vmem:[#allocation3 + $0x340] sm:$0xff] %v2712
        %2841 = vst [vmem:[#allocation3 + $0x348] sm:$0xff] %v2713
        %2842 = vst [vmem:[#allocation3 + $0x350] sm:$0xff] %v2714
        %2843 = vst [vmem:[#allocation3 + $0x358] sm:$0xff] %v2715
        %2844 = vst [vmem:[#allocation3 + $0x360] sm:$0xff] %v2716
        %2845 = vst [vmem:[#allocation3 + $0x368] sm:$0xff] %v2717
        %2846 = vst [vmem:[#allocation3 + $0x370] sm:$0xff] %v2718
        %2847 = vst [vmem:[#allocation3 + $0x378] sm:$0xff] %v2719
        %2848 = vst [vmem:[#allocation3 + $0x380] sm:$0xff] %v2720
        %2849 = vst [vmem:[#allocation3 + $0x388] sm:$0xff] %v2721
        %2850 = vst [vmem:[#allocation3 + $0x390] sm:$0xff] %v2722
        %2851 = vst [vmem:[#allocation3 + $0x398] sm:$0xff] %v2723
        %2852 = vst [vmem:[#allocation3 + $0x3a0] sm:$0xff] %v2724
        %2853 = vst [vmem:[#allocation3 + $0x3a8] sm:$0xff] %v2725
        %2854 = vst [vmem:[#allocation3 + $0x3b0] sm:$0xff] %v2726
        %2855 = vst [vmem:[#allocation3 + $0x3b8] sm:$0xff] %v2727
        %2856 = vst [vmem:[#allocation3 + $0x3c0] sm:$0xff] %v2728
        %2857 = vst [vmem:[#allocation3 + $0x3c8] sm:$0xff] %v2729
        %2858 = vst [vmem:[#allocation3 + $0x3d0] sm:$0xff] %v2730
        %2859 = vst [vmem:[#allocation3 + $0x3d8] sm:$0xff] %v2731
        %2860 = vst [vmem:[#allocation3 + $0x3e0] sm:$0xff] %v2732
        %2861 = vst [vmem:[#allocation3 + $0x3e8] sm:$0xff] %v2733
        %2862 = vst [vmem:[#allocation3 + $0x3f0] sm:$0xff] %v2734
        %2863 = vst [vmem:[#allocation3 + $0x3f8] sm:$0xff] %v2735
        %v2864 = vld [vmem:[#allocation3] sm:$0xff]
        %v2865 = vld [vmem:[#allocation3 + $0x8] sm:$0xff]
        %v2866 = vld [vmem:[#allocation3 + $0x10] sm:$0xff]
        %v2867 = vld [vmem:[#allocation3 + $0x18] sm:$0xff]
        %v2868 = vld [vmem:[#allocation3 + $0x20] sm:$0xff]
        %v2869 = vld [vmem:[#allocation3 + $0x28] sm:$0xff]
        %v2870 = vld [vmem:[#allocation3 + $0x30] sm:$0xff]
        %v2871 = vld [vmem:[#allocation3 + $0x38] sm:$0xff]
        %v2872 = vld [vmem:[#allocation3 + $0x40] sm:$0xff]
        %v2873 = vld [vmem:[#allocation3 + $0x48] sm:$0xff]
        %v2874 = vld [vmem:[#allocation3 + $0x50] sm:$0xff]
        %v2875 = vld [vmem:[#allocation3 + $0x58] sm:$0xff]
        %v2876 = vld [vmem:[#allocation3 + $0x60] sm:$0xff]
        %v2877 = vld [vmem:[#allocation3 + $0x68] sm:$0xff]
        %v2878 = vld [vmem:[#allocation3 + $0x70] sm:$0xff]
        %v2879 = vld [vmem:[#allocation3 + $0x78] sm:$0xff]
        %v2880 = vld [vmem:[#allocation3 + $0x80] sm:$0xff]
        %v2881 = vld [vmem:[#allocation3 + $0x88] sm:$0xff]
        %v2882 = vld [vmem:[#allocation3 + $0x90] sm:$0xff]
        %v2883 = vld [vmem:[#allocation3 + $0x98] sm:$0xff]
        %v2884 = vld [vmem:[#allocation3 + $0xa0] sm:$0xff]
        %v2885 = vld [vmem:[#allocation3 + $0xa8] sm:$0xff]
        %v2886 = vld [vmem:[#allocation3 + $0xb0] sm:$0xff]
        %v2887 = vld [vmem:[#allocation3 + $0xb8] sm:$0xff]
        %v2888 = vld [vmem:[#allocation3 + $0xc0] sm:$0xff]
        %v2889 = vld [vmem:[#allocation3 + $0xc8] sm:$0xff]
        %v2890 = vld [vmem:[#allocation3 + $0xd0] sm:$0xff]
        %v2891 = vld [vmem:[#allocation3 + $0xd8] sm:$0xff]
        %v2892 = vld [vmem:[#allocation3 + $0xe0] sm:$0xff]
        %v2893 = vld [vmem:[#allocation3 + $0xe8] sm:$0xff]
        %v2894 = vld [vmem:[#allocation3 + $0xf0] sm:$0xff]
        %v2895 = vld [vmem:[#allocation3 + $0xf8] sm:$0xff]
        %v2896 = vld [vmem:[#allocation3 + $0x100] sm:$0xff]
        %v2897 = vld [vmem:[#allocation3 + $0x108] sm:$0xff]
        %v2898 = vld [vmem:[#allocation3 + $0x110] sm:$0xff]
        %v2899 = vld [vmem:[#allocation3 + $0x118] sm:$0xff]
        %v2900 = vld [vmem:[#allocation3 + $0x120] sm:$0xff]
        %v2901 = vld [vmem:[#allocation3 + $0x128] sm:$0xff]
        %v2902 = vld [vmem:[#allocation3 + $0x130] sm:$0xff]
        %v2903 = vld [vmem:[#allocation3 + $0x138] sm:$0xff]
        %v2904 = vld [vmem:[#allocation3 + $0x140] sm:$0xff]
        %v2905 = vld [vmem:[#allocation3 + $0x148] sm:$0xff]
        %v2906 = vld [vmem:[#allocation3 + $0x150] sm:$0xff]
        %v2907 = vld [vmem:[#allocation3 + $0x158] sm:$0xff]
        %v2908 = vld [vmem:[#allocation3 + $0x160] sm:$0xff]
        %v2909 = vld [vmem:[#allocation3 + $0x168] sm:$0xff]
        %v2910 = vld [vmem:[#allocation3 + $0x170] sm:$0xff]
        %v2911 = vld [vmem:[#allocation3 + $0x178] sm:$0xff]
        %v2912 = vld [vmem:[#allocation3 + $0x180] sm:$0xff]
        %v2913 = vld [vmem:[#allocation3 + $0x188] sm:$0xff]
        %v2914 = vld [vmem:[#allocation3 + $0x190] sm:$0xff]
        %v2915 = vld [vmem:[#allocation3 + $0x198] sm:$0xff]
        %v2916 = vld [vmem:[#allocation3 + $0x1a0] sm:$0xff]
        %v2917 = vld [vmem:[#allocation3 + $0x1a8] sm:$0xff]
        %v2918 = vld [vmem:[#allocation3 + $0x1b0] sm:$0xff]
        %v2919 = vld [vmem:[#allocation3 + $0x1b8] sm:$0xff]
        %v2920 = vld [vmem:[#allocation3 + $0x1c0] sm:$0xff]
        %v2921 = vld [vmem:[#allocation3 + $0x1c8] sm:$0xff]
        %v2922 = vld [vmem:[#allocation3 + $0x1d0] sm:$0xff]
        %v2923 = vld [vmem:[#allocation3 + $0x1d8] sm:$0xff]
        %v2924 = vld [vmem:[#allocation3 + $0x1e0] sm:$0xff]
        %v2925 = vld [vmem:[#allocation3 + $0x1e8] sm:$0xff]
        %v2926 = vld [vmem:[#allocation3 + $0x1f0] sm:$0xff]
        %v2927 = vld [vmem:[#allocation3 + $0x1f8] sm:$0xff]
        %v2928 = vld [vmem:[#allocation3 + $0x200] sm:$0xff]
        %v2929 = vld [vmem:[#allocation3 + $0x208] sm:$0xff]
        %v2930 = vld [vmem:[#allocation3 + $0x210] sm:$0xff]
        %v2931 = vld [vmem:[#allocation3 + $0x218] sm:$0xff]
        %v2932 = vld [vmem:[#allocation3 + $0x220] sm:$0xff]
        %v2933 = vld [vmem:[#allocation3 + $0x228] sm:$0xff]
        %v2934 = vld [vmem:[#allocation3 + $0x230] sm:$0xff]
        %v2935 = vld [vmem:[#allocation3 + $0x238] sm:$0xff]
        %v2936 = vld [vmem:[#allocation3 + $0x240] sm:$0xff]
        %v2937 = vld [vmem:[#allocation3 + $0x248] sm:$0xff]
        %v2938 = vld [vmem:[#allocation3 + $0x250] sm:$0xff]
        %v2939 = vld [vmem:[#allocation3 + $0x258] sm:$0xff]
        %v2940 = vld [vmem:[#allocation3 + $0x260] sm:$0xff]
        %v2941 = vld [vmem:[#allocation3 + $0x268] sm:$0xff]
        %v2942 = vld [vmem:[#allocation3 + $0x270] sm:$0xff]
        %v2943 = vld [vmem:[#allocation3 + $0x278] sm:$0xff]
        %v2944 = vld [vmem:[#allocation3 + $0x280] sm:$0xff]
        %v2945 = vld [vmem:[#allocation3 + $0x288] sm:$0xff]
        %v2946 = vld [vmem:[#allocation3 + $0x290] sm:$0xff]
        %v2947 = vld [vmem:[#allocation3 + $0x298] sm:$0xff]
        %v2948 = vld [vmem:[#allocation3 + $0x2a0] sm:$0xff]
        %v2949 = vld [vmem:[#allocation3 + $0x2a8] sm:$0xff]
        %v2950 = vld [vmem:[#allocation3 + $0x2b0] sm:$0xff]
        %v2951 = vld [vmem:[#allocation3 + $0x2b8] sm:$0xff]
        %v2952 = vld [vmem:[#allocation3 + $0x2c0] sm:$0xff]
        %v2953 = vld [vmem:[#allocation3 + $0x2c8] sm:$0xff]
        %v2954 = vld [vmem:[#allocation3 + $0x2d0] sm:$0xff]
        %v2955 = vld [vmem:[#allocation3 + $0x2d8] sm:$0xff]
        %v2956 = vld [vmem:[#allocation3 + $0x2e0] sm:$0xff]
        %v2957 = vld [vmem:[#allocation3 + $0x2e8] sm:$0xff]
        %v2958 = vld [vmem:[#allocation3 + $0x2f0] sm:$0xff]
        %v2959 = vld [vmem:[#allocation3 + $0x2f8] sm:$0xff]
        %v2960 = vld [vmem:[#allocation3 + $0x300] sm:$0xff]
        %v2961 = vld [vmem:[#allocation3 + $0x308] sm:$0xff]
        %v2962 = vld [vmem:[#allocation3 + $0x310] sm:$0xff]
        %v2963 = vld [vmem:[#allocation3 + $0x318] sm:$0xff]
        %v2964 = vld [vmem:[#allocation3 + $0x320] sm:$0xff]
        %v2965 = vld [vmem:[#allocation3 + $0x328] sm:$0xff]
        %v2966 = vld [vmem:[#allocation3 + $0x330] sm:$0xff]
        %v2967 = vld [vmem:[#allocation3 + $0x338] sm:$0xff]
        %v2968 = vld [vmem:[#allocation3 + $0x340] sm:$0xff]
        %v2969 = vld [vmem:[#allocation3 + $0x348] sm:$0xff]
        %v2970 = vld [vmem:[#allocation3 + $0x350] sm:$0xff]
        %v2971 = vld [vmem:[#allocation3 + $0x358] sm:$0xff]
        %v2972 = vld [vmem:[#allocation3 + $0x360] sm:$0xff]
        %v2973 = vld [vmem:[#allocation3 + $0x368] sm:$0xff]
        %v2974 = vld [vmem:[#allocation3 + $0x370] sm:$0xff]
        %v2975 = vld [vmem:[#allocation3 + $0x378] sm:$0xff]
        %v2976 = vld [vmem:[#allocation3 + $0x380] sm:$0xff]
        %v2977 = vld [vmem:[#allocation3 + $0x388] sm:$0xff]
        %v2978 = vld [vmem:[#allocation3 + $0x390] sm:$0xff]
        %v2979 = vld [vmem:[#allocation3 + $0x398] sm:$0xff]
        %v2980 = vld [vmem:[#allocation3 + $0x3a0] sm:$0xff]
        %v2981 = vld [vmem:[#allocation3 + $0x3a8] sm:$0xff]
        %v2982 = vld [vmem:[#allocation3 + $0x3b0] sm:$0xff]
        %v2983 = vld [vmem:[#allocation3 + $0x3b8] sm:$0xff]
        %v2984 = vld [vmem:[#allocation3 + $0x3c0] sm:$0xff]
        %v2985 = vld [vmem:[#allocation3 + $0x3c8] sm:$0xff]
        %v2986 = vld [vmem:[#allocation3 + $0x3d0] sm:$0xff]
        %v2987 = vld [vmem:[#allocation3 + $0x3d8] sm:$0xff]
        %v2988 = vld [vmem:[#allocation3 + $0x3e0] sm:$0xff]
        %v2989 = vld [vmem:[#allocation3 + $0x3e8] sm:$0xff]
        %v2990 = vld [vmem:[#allocation3 + $0x3f0] sm:$0xff]
        %v2991 = vld [vmem:[#allocation3 + $0x3f8] sm:$0xff]
        %v2992 = vadd.f32 %v2864, %v2868
        %v2993 = vadd.f32 %v2992, %v2872
        %v2994 = vadd.f32 %v2993, %v2876
        %v2995 = vadd.f32 %v2994, %v2880
        %v2996 = vadd.f32 %v2995, %v2884
        %v2997 = vadd.f32 %v2996, %v2888
        %v2998 = vadd.f32 %v2997, %v2892
        %v2999 = vadd.f32 %v2998, %v2896
        %v3000 = vadd.f32 %v2999, %v2900
        %v3001 = vadd.f32 %v3000, %v2904
        %v3002 = vadd.f32 %v3001, %v2908
        %v3003 = vadd.f32 %v3002, %v2912
        %v3004 = vadd.f32 %v3003, %v2916
        %v3005 = vadd.f32 %v3004, %v2920
        %v3006 = vadd.f32 %v3005, %v2924
        %v3007 = vadd.f32 %v3006, %v2928
        %v3008 = vadd.f32 %v3007, %v2932
        %v3009 = vadd.f32 %v3008, %v2936
        %v3010 = vadd.f32 %v3009, %v2940
        %v3011 = vadd.f32 %v3010, %v2944
        %v3012 = vadd.f32 %v3011, %v2948
        %v3013 = vadd.f32 %v3012, %v2952
        %v3014 = vadd.f32 %v3013, %v2956
        %v3015 = vadd.f32 %v3014, %v2960
        %v3016 = vadd.f32 %v3015, %v2964
        %v3017 = vadd.f32 %v3016, %v2968
        %v3018 = vadd.f32 %v3017, %v2972
        %v3019 = vadd.f32 %v3018, %v2976
        %v3020 = vadd.f32 %v3019, %v2980
        %v3021 = vadd.f32 %v3020, %v2984
        %v3022 = vadd.f32 %v3021, %v2988
        %v3023 = vrot.slane %v3022, 4
        %v3024 = vadd.f32 %v3022, %v3023
        %v3025 = vrot.slane %v3024, 2
        %v3026 = vadd.f32 %v3024, %v3025
        %v3027 = vrot.slane %v3026, 1
        %v3028 = vadd.f32 %v3026, %v3027
        %v3029 = vadd.f32 %v2865, %v2869
        %v3030 = vadd.f32 %v3029, %v2873
        %v3031 = vadd.f32 %v3030, %v2877
        %v3032 = vadd.f32 %v3031, %v2881
        %v3033 = vadd.f32 %v3032, %v2885
        %v3034 = vadd.f32 %v3033, %v2889
        %v3035 = vadd.f32 %v3034, %v2893
        %v3036 = vadd.f32 %v3035, %v2897
        %v3037 = vadd.f32 %v3036, %v2901
        %v3038 = vadd.f32 %v3037, %v2905
        %v3039 = vadd.f32 %v3038, %v2909
        %v3040 = vadd.f32 %v3039, %v2913
        %v3041 = vadd.f32 %v3040, %v2917
        %v3042 = vadd.f32 %v3041, %v2921
        %v3043 = vadd.f32 %v3042, %v2925
        %v3044 = vadd.f32 %v3043, %v2929
        %v3045 = vadd.f32 %v3044, %v2933
        %v3046 = vadd.f32 %v3045, %v2937
        %v3047 = vadd.f32 %v3046, %v2941
        %v3048 = vadd.f32 %v3047, %v2945
        %v3049 = vadd.f32 %v3048, %v2949
        %v3050 = vadd.f32 %v3049, %v2953
        %v3051 = vadd.f32 %v3050, %v2957
        %v3052 = vadd.f32 %v3051, %v2961
        %v3053 = vadd.f32 %v3052, %v2965
        %v3054 = vadd.f32 %v3053, %v2969
        %v3055 = vadd.f32 %v3054, %v2973
        %v3056 = vadd.f32 %v3055, %v2977
        %v3057 = vadd.f32 %v3056, %v2981
        %v3058 = vadd.f32 %v3057, %v2985
        %v3059 = vadd.f32 %v3058, %v2989
        %v3060 = vrot.slane %v3059, 4
        %v3061 = vadd.f32 %v3059, %v3060
        %v3062 = vrot.slane %v3061, 2
        %v3063 = vadd.f32 %v3061, %v3062
        %v3064 = vrot.slane %v3063, 1
        %v3065 = vadd.f32 %v3063, %v3064
        %v3066 = vadd.f32 %v2866, %v2870
        %v3067 = vadd.f32 %v3066, %v2874
        %v3068 = vadd.f32 %v3067, %v2878
        %v3069 = vadd.f32 %v3068, %v2882
        %v3070 = vadd.f32 %v3069, %v2886
        %v3071 = vadd.f32 %v3070, %v2890
        %v3072 = vadd.f32 %v3071, %v2894
        %v3073 = vadd.f32 %v3072, %v2898
        %v3074 = vadd.f32 %v3073, %v2902
        %v3075 = vadd.f32 %v3074, %v2906
        %v3076 = vadd.f32 %v3075, %v2910
        %v3077 = vadd.f32 %v3076, %v2914
        %v3078 = vadd.f32 %v3077, %v2918
        %v3079 = vadd.f32 %v3078, %v2922
        %v3080 = vadd.f32 %v3079, %v2926
        %v3081 = vadd.f32 %v3080, %v2930
        %v3082 = vadd.f32 %v3081, %v2934
        %v3083 = vadd.f32 %v3082, %v2938
        %v3084 = vadd.f32 %v3083, %v2942
        %v3085 = vadd.f32 %v3084, %v2946
        %v3086 = vadd.f32 %v3085, %v2950
        %v3087 = vadd.f32 %v3086, %v2954
        %v3088 = vadd.f32 %v3087, %v2958
        %v3089 = vadd.f32 %v3088, %v2962
        %v3090 = vadd.f32 %v3089, %v2966
        %v3091 = vadd.f32 %v3090, %v2970
        %v3092 = vadd.f32 %v3091, %v2974
        %v3093 = vadd.f32 %v3092, %v2978
        %v3094 = vadd.f32 %v3093, %v2982
        %v3095 = vadd.f32 %v3094, %v2986
        %v3096 = vadd.f32 %v3095, %v2990
        %v3097 = vrot.slane %v3096, 4
        %v3098 = vadd.f32 %v3096, %v3097
        %v3099 = vrot.slane %v3098, 2
        %v3100 = vadd.f32 %v3098, %v3099
        %v3101 = vrot.slane %v3100, 1
        %v3102 = vadd.f32 %v3100, %v3101
        %v3103 = vadd.f32 %v2867, %v2871
        %v3104 = vadd.f32 %v3103, %v2875
        %v3105 = vadd.f32 %v3104, %v2879
        %v3106 = vadd.f32 %v3105, %v2883
        %v3107 = vadd.f32 %v3106, %v2887
        %v3108 = vadd.f32 %v3107, %v2891
        %v3109 = vadd.f32 %v3108, %v2895
        %v3110 = vadd.f32 %v3109, %v2899
        %v3111 = vadd.f32 %v3110, %v2903
        %v3112 = vadd.f32 %v3111, %v2907
        %v3113 = vadd.f32 %v3112, %v2911
        %v3114 = vadd.f32 %v3113, %v2915
        %v3115 = vadd.f32 %v3114, %v2919
        %v3116 = vadd.f32 %v3115, %v2923
        %v3117 = vadd.f32 %v3116, %v2927
        %v3118 = vadd.f32 %v3117, %v2931
        %v3119 = vadd.f32 %v3118, %v2935
        %v3120 = vadd.f32 %v3119, %v2939
        %v3121 = vadd.f32 %v3120, %v2943
        %v3122 = vadd.f32 %v3121, %v2947
        %v3123 = vadd.f32 %v3122, %v2951
        %v3124 = vadd.f32 %v3123, %v2955
        %v3125 = vadd.f32 %v3124, %v2959
        %v3126 = vadd.f32 %v3125, %v2963
        %v3127 = vadd.f32 %v3126, %v2967
        %v3128 = vadd.f32 %v3127, %v2971
        %v3129 = vadd.f32 %v3128, %v2975
        %v3130 = vadd.f32 %v3129, %v2979
        %v3131 = vadd.f32 %v3130, %v2983
        %v3132 = vadd.f32 %v3131, %v2987
        %v3133 = vadd.f32 %v3132, %v2991
        %v3134 = vrot.slane %v3133, 4
        %v3135 = vadd.f32 %v3133, %v3134
        %v3136 = vrot.slane %v3135, 2
        %v3137 = vadd.f32 %v3135, %v3136
        %v3138 = vrot.slane %v3137, 1
        %v3139 = vadd.f32 %v3137, %v3138
        %v3140 = vmul.f32 %v3028, 0.00390625
        %v3141 = vmul.f32 %v3065, 0.00390625
        %v3142 = vmul.f32 %v3102, 0.00390625
        %v3143 = vmul.f32 %v3139, 0.00390625
        %v3144 = vpack.c.bf16 %v3140, %v3140
        %v3145 = vpack.c.bf16 %v3141, %v3141
        %v3146 = vpack.c.bf16 %v3142, %v3142
        %v3147 = vpack.c.bf16 %v3143, %v3143
        %v3148 = vld [vmem:[#allocation9] sm:$0xf]
        %v3149 = vld [vmem:[#allocation9 + $0x4] sm:$0xf]
        %v3150 = vld [vmem:[#allocation9 + $0x8] sm:$0xf]
        %v3151 = vld [vmem:[#allocation9 + $0xc] sm:$0xf]
        %v3152 = vld [vmem:[#allocation9 + $0x10] sm:$0xf]
        %v3153 = vld [vmem:[#allocation9 + $0x14] sm:$0xf]
        %v3154 = vld [vmem:[#allocation9 + $0x18] sm:$0xf]
        %v3155 = vld [vmem:[#allocation9 + $0x1c] sm:$0xf]
        %v3156 = vld [vmem:[#allocation9 + $0x20] sm:$0xf]
        %v3157 = vld [vmem:[#allocation9 + $0x24] sm:$0xf]
        %v3158 = vld [vmem:[#allocation9 + $0x28] sm:$0xf]
        %v3159 = vld [vmem:[#allocation9 + $0x2c] sm:$0xf]
        %v3160 = vld [vmem:[#allocation9 + $0x30] sm:$0xf]
        %v3161 = vld [vmem:[#allocation9 + $0x34] sm:$0xf]
        %v3162 = vld [vmem:[#allocation9 + $0x38] sm:$0xf]
        %v3163 = vld [vmem:[#allocation9 + $0x3c] sm:$0xf]
        %v3164 = vld [vmem:[#allocation9 + $0x40] sm:$0xf]
        %v3165 = vld [vmem:[#allocation9 + $0x44] sm:$0xf]
        %v3166 = vld [vmem:[#allocation9 + $0x48] sm:$0xf]
        %v3167 = vld [vmem:[#allocation9 + $0x4c] sm:$0xf]
        %v3168 = vld [vmem:[#allocation9 + $0x50] sm:$0xf]
        %v3169 = vld [vmem:[#allocation9 + $0x54] sm:$0xf]
        %v3170 = vld [vmem:[#allocation9 + $0x58] sm:$0xf]
        %v3171 = vld [vmem:[#allocation9 + $0x5c] sm:$0xf]
        %v3172 = vld [vmem:[#allocation9 + $0x60] sm:$0xf]
        %v3173 = vld [vmem:[#allocation9 + $0x64] sm:$0xf]
        %v3174 = vld [vmem:[#allocation9 + $0x68] sm:$0xf]
        %v3175 = vld [vmem:[#allocation9 + $0x6c] sm:$0xf]
        %v3176 = vld [vmem:[#allocation9 + $0x70] sm:$0xf]
        %v3177 = vld [vmem:[#allocation9 + $0x74] sm:$0xf]
        %v3178 = vld [vmem:[#allocation9 + $0x78] sm:$0xf]
        %v3179 = vld [vmem:[#allocation9 + $0x7c] sm:$0xf]
        %v3180 = vld [vmem:[#allocation9 + $0x80] sm:$0xf]
        %v3181 = vld [vmem:[#allocation9 + $0x84] sm:$0xf]
        %v3182 = vld [vmem:[#allocation9 + $0x88] sm:$0xf]
        %v3183 = vld [vmem:[#allocation9 + $0x8c] sm:$0xf]
        %v3184 = vld [vmem:[#allocation9 + $0x90] sm:$0xf]
        %v3185 = vld [vmem:[#allocation9 + $0x94] sm:$0xf]
        %v3186 = vld [vmem:[#allocation9 + $0x98] sm:$0xf]
        %v3187 = vld [vmem:[#allocation9 + $0x9c] sm:$0xf]
        %v3188 = vld [vmem:[#allocation9 + $0xa0] sm:$0xf]
        %v3189 = vld [vmem:[#allocation9 + $0xa4] sm:$0xf]
        %v3190 = vld [vmem:[#allocation9 + $0xa8] sm:$0xf]
        %v3191 = vld [vmem:[#allocation9 + $0xac] sm:$0xf]
        %v3192 = vld [vmem:[#allocation9 + $0xb0] sm:$0xf]
        %v3193 = vld [vmem:[#allocation9 + $0xb4] sm:$0xf]
        %v3194 = vld [vmem:[#allocation9 + $0xb8] sm:$0xf]
        %v3195 = vld [vmem:[#allocation9 + $0xbc] sm:$0xf]
        %v3196 = vld [vmem:[#allocation9 + $0xc0] sm:$0xf]
        %v3197 = vld [vmem:[#allocation9 + $0xc4] sm:$0xf]
        %v3198 = vld [vmem:[#allocation9 + $0xc8] sm:$0xf]
        %v3199 = vld [vmem:[#allocation9 + $0xcc] sm:$0xf]
        %v3200 = vld [vmem:[#allocation9 + $0xd0] sm:$0xf]
        %v3201 = vld [vmem:[#allocation9 + $0xd4] sm:$0xf]
        %v3202 = vld [vmem:[#allocation9 + $0xd8] sm:$0xf]
        %v3203 = vld [vmem:[#allocation9 + $0xdc] sm:$0xf]
        %v3204 = vld [vmem:[#allocation9 + $0xe0] sm:$0xf]
        %v3205 = vld [vmem:[#allocation9 + $0xe4] sm:$0xf]
        %v3206 = vld [vmem:[#allocation9 + $0xe8] sm:$0xf]
        %v3207 = vld [vmem:[#allocation9 + $0xec] sm:$0xf]
        %v3208 = vld [vmem:[#allocation9 + $0xf0] sm:$0xf]
        %v3209 = vld [vmem:[#allocation9 + $0xf4] sm:$0xf]
        %v3210 = vld [vmem:[#allocation9 + $0xf8] sm:$0xf]
        %v3211 = vld [vmem:[#allocation9 + $0xfc] sm:$0xf]
        %v3212 = vld [vmem:[%s8] sm:$0x1]
        %v3277 = vunpack.c.l.b16 %v3148
        %v3278 = vunpack.c.l.b16 %v3149
        %v3279 = vunpack.c.l.b16 %v3150
        %v3280 = vunpack.c.l.b16 %v3151
        %v3281 = vunpack.c.l.b16 %v3152
        %v3282 = vunpack.c.l.b16 %v3153
        %v3283 = vunpack.c.l.b16 %v3154
        %v3284 = vunpack.c.l.b16 %v3155
        %v3285 = vunpack.c.l.b16 %v3156
        %v3286 = vunpack.c.l.b16 %v3157
        %v3287 = vunpack.c.l.b16 %v3158
        %v3288 = vunpack.c.l.b16 %v3159
        %v3289 = vunpack.c.l.b16 %v3160
        %v3290 = vunpack.c.l.b16 %v3161
        %v3291 = vunpack.c.l.b16 %v3162
        %v3292 = vunpack.c.l.b16 %v3163
        %v3293 = vunpack.c.l.b16 %v3164
        %v3294 = vunpack.c.l.b16 %v3165
        %v3295 = vunpack.c.l.b16 %v3166
        %v3296 = vunpack.c.l.b16 %v3167
        %v3297 = vunpack.c.l.b16 %v3168
        %v3298 = vunpack.c.l.b16 %v3169
        %v3299 = vunpack.c.l.b16 %v3170
        %v3300 = vunpack.c.l.b16 %v3171
        %v3301 = vunpack.c.l.b16 %v3172
        %v3302 = vunpack.c.l.b16 %v3173
        %v3303 = vunpack.c.l.b16 %v3174
        %v3304 = vunpack.c.l.b16 %v3175
        %v3305 = vunpack.c.l.b16 %v3176
        %v3306 = vunpack.c.l.b16 %v3177
        %v3307 = vunpack.c.l.b16 %v3178
        %v3308 = vunpack.c.l.b16 %v3179
        %v3309 = vunpack.c.l.b16 %v3180
        %v3310 = vunpack.c.l.b16 %v3181
        %v3311 = vunpack.c.l.b16 %v3182
        %v3312 = vunpack.c.l.b16 %v3183
        %v3313 = vunpack.c.l.b16 %v3184
        %v3314 = vunpack.c.l.b16 %v3185
        %v3315 = vunpack.c.l.b16 %v3186
        %v3316 = vunpack.c.l.b16 %v3187
        %v3317 = vunpack.c.l.b16 %v3188
        %v3318 = vunpack.c.l.b16 %v3189
        %v3319 = vunpack.c.l.b16 %v3190
        %v3320 = vunpack.c.l.b16 %v3191
        %v3321 = vunpack.c.l.b16 %v3192
        %v3322 = vunpack.c.l.b16 %v3193
        %v3323 = vunpack.c.l.b16 %v3194
        %v3324 = vunpack.c.l.b16 %v3195
        %v3325 = vunpack.c.l.b16 %v3196
        %v3326 = vunpack.c.l.b16 %v3197
        %v3327 = vunpack.c.l.b16 %v3198
        %v3328 = vunpack.c.l.b16 %v3199
        %v3329 = vunpack.c.l.b16 %v3200
        %v3330 = vunpack.c.l.b16 %v3201
        %v3331 = vunpack.c.l.b16 %v3202
        %v3332 = vunpack.c.l.b16 %v3203
        %v3333 = vunpack.c.l.b16 %v3204
        %v3334 = vunpack.c.l.b16 %v3205
        %v3335 = vunpack.c.l.b16 %v3206
        %v3336 = vunpack.c.l.b16 %v3207
        %v3337 = vunpack.c.l.b16 %v3208
        %v3338 = vunpack.c.l.b16 %v3209
        %v3339 = vunpack.c.l.b16 %v3210
        %v3340 = vunpack.c.l.b16 %v3211
        %v3341 = vpack.c.b16 %v3278, %v3277
        %v3342 = vpack.c.b16 %v3280, %v3279
        %v3343 = vpack.c.b16 %v3282, %v3281
        %v3344 = vpack.c.b16 %v3284, %v3283
        %v3345 = vpack.c.b16 %v3286, %v3285
        %v3346 = vpack.c.b16 %v3288, %v3287
        %v3347 = vpack.c.b16 %v3290, %v3289
        %v3348 = vpack.c.b16 %v3292, %v3291
        %v3349 = vpack.c.b16 %v3294, %v3293
        %v3350 = vpack.c.b16 %v3296, %v3295
        %v3351 = vpack.c.b16 %v3298, %v3297
        %v3352 = vpack.c.b16 %v3300, %v3299
        %v3353 = vpack.c.b16 %v3302, %v3301
        %v3354 = vpack.c.b16 %v3304, %v3303
        %v3355 = vpack.c.b16 %v3306, %v3305
        %v3356 = vpack.c.b16 %v3308, %v3307
        %v3357 = vpack.c.b16 %v3310, %v3309
        %v3358 = vpack.c.b16 %v3312, %v3311
        %v3359 = vpack.c.b16 %v3314, %v3313
        %v3360 = vpack.c.b16 %v3316, %v3315
        %v3361 = vpack.c.b16 %v3318, %v3317
        %v3362 = vpack.c.b16 %v3320, %v3319
        %v3363 = vpack.c.b16 %v3322, %v3321
        %v3364 = vpack.c.b16 %v3324, %v3323
        %v3365 = vpack.c.b16 %v3326, %v3325
        %v3366 = vpack.c.b16 %v3328, %v3327
        %v3367 = vpack.c.b16 %v3330, %v3329
        %v3368 = vpack.c.b16 %v3332, %v3331
        %v3369 = vpack.c.b16 %v3334, %v3333
        %v3370 = vpack.c.b16 %v3336, %v3335
        %v3371 = vpack.c.b16 %v3338, %v3337
        %v3372 = vpack.c.b16 %v3340, %v3339
        %3405 = vmatprep.subr.bf16.mxu0 0
        %3406 = vmatpush1.bf16.msra.mxu0 %v3341
        %3407 = vmatprep.subr.bf16.mxu0 0
        %3408 = vmatpush1.bf16.msra.mxu0 %v3342
        %3409 = vmatprep.subr.bf16.mxu0 0
        %3410 = vmatpush1.bf16.msra.mxu0 %v3343
        %3411 = vmatprep.subr.bf16.mxu0 0
        %3412 = vmatpush1.bf16.msra.mxu0 %v3344
        %3413 = vmatprep.subr.bf16.mxu0 0
        %3414 = vmatpush1.bf16.msra.mxu0 %v3345
        %3415 = vmatprep.subr.bf16.mxu0 0
        %3416 = vmatpush1.bf16.msra.mxu0 %v3346
        %3417 = vmatprep.subr.bf16.mxu0 0
        %3418 = vmatpush1.bf16.msra.mxu0 %v3347
        %3419 = vmatprep.subr.bf16.mxu0 0
        %3420 = vmatpush1.bf16.msra.mxu0 %v3348
        %3421 = vmatprep.subr.bf16.mxu0 0
        %3422 = vmatpush1.bf16.msra.mxu0 %v3349
        %3423 = vmatprep.subr.bf16.mxu0 0
        %3424 = vmatpush1.bf16.msra.mxu0 %v3350
        %3425 = vmatprep.subr.bf16.mxu0 0
        %3426 = vmatpush1.bf16.msra.mxu0 %v3351
        %3427 = vmatprep.subr.bf16.mxu0 0
        %3428 = vmatpush1.bf16.msra.mxu0 %v3352
        %3429 = vmatprep.subr.bf16.mxu0 0
        %3430 = vmatpush1.bf16.msra.mxu0 %v3353
        %3431 = vmatprep.subr.bf16.mxu0 0
        %3432 = vmatpush1.bf16.msra.mxu0 %v3354
        %3433 = vmatprep.subr.bf16.mxu0 0
        %3434 = vmatpush1.bf16.msra.mxu0 %v3355
        %3435 = vmatprep.subr.bf16.mxu0 0
        %3436 = vmatpush1.bf16.msra.mxu0 %v3356
        %3437 = vmatprep.mubr.bf16.mxu0 %v3145
        %3438 = vmatmul.mubr.bf16.gmra.mrb[0].mxu0 %v3144
        %v3439 = vpop.f32.mrb[0].mxu0
        %v3440 = vadd.f32 %v3212, %v3439
        %v3441 = vpop.f32.mrb[0].mxu0
        %v3442 = vpop.f32.mrb[0].mxu0
        %v3443 = vpop.f32.mrb[0].mxu0
        %3444 = vdwg.mxu0
        %3445 = vmatprep.subr.bf16.mxu0 0
        %3446 = vmatpush1.bf16.msra.mxu0 %v3357
        %3447 = vmatprep.subr.bf16.mxu0 0
        %3448 = vmatpush1.bf16.msra.mxu0 %v3358
        %3449 = vmatprep.subr.bf16.mxu0 0
        %3450 = vmatpush1.bf16.msra.mxu0 %v3359
        %3451 = vmatprep.subr.bf16.mxu0 0
        %3452 = vmatpush1.bf16.msra.mxu0 %v3360
        %3453 = vmatprep.subr.bf16.mxu0 0
        %3454 = vmatpush1.bf16.msra.mxu0 %v3361
        %3455 = vmatprep.subr.bf16.mxu0 0
        %3456 = vmatpush1.bf16.msra.mxu0 %v3362
        %3457 = vmatprep.subr.bf16.mxu0 0
        %3458 = vmatpush1.bf16.msra.mxu0 %v3363
        %3459 = vmatprep.subr.bf16.mxu0 0
        %3460 = vmatpush1.bf16.msra.mxu0 %v3364
        %3461 = vmatprep.subr.bf16.mxu0 0
        %3462 = vmatpush1.bf16.msra.mxu0 %v3365
        %3463 = vmatprep.subr.bf16.mxu0 0
        %3464 = vmatpush1.bf16.msra.mxu0 %v3366
        %3465 = vmatprep.subr.bf16.mxu0 0
        %3466 = vmatpush1.bf16.msra.mxu0 %v3367
        %3467 = vmatprep.subr.bf16.mxu0 0
        %3468 = vmatpush1.bf16.msra.mxu0 %v3368
        %3469 = vmatprep.subr.bf16.mxu0 0
        %3470 = vmatpush1.bf16.msra.mxu0 %v3369
        %3471 = vmatprep.subr.bf16.mxu0 0
        %3472 = vmatpush1.bf16.msra.mxu0 %v3370
        %3473 = vmatprep.subr.bf16.mxu0 0
        %3474 = vmatpush1.bf16.msra.mxu0 %v3371
        %3475 = vmatprep.subr.bf16.mxu0 0
        %3476 = vmatpush1.bf16.msra.mxu0 %v3372
        %3477 = vmatprep.mubr.bf16.mxu0 %v3147
        %3478 = vmatmul.mubr.bf16.gmra.mrb[0].mxu0 %v3146
        %v3479 = vpop.f32.mrb[0].mxu0
        %v3480 = vadd.f32 %v3440, %v3479
        %v3481 = vpop.f32.mrb[0].mxu0
        %v3482 = vpop.f32.mrb[0].mxu0
        %v3483 = vpop.f32.mrb[0].mxu0
        %3484 = vdwg.mxu0
        %v3485 = vlaneseq
        %v3486 = vand.u32 %v3485, 127
        %vm3487 = vcmp.eq.s32.totalorder %v3486, 0
        %v3488 = vsel %vm3487, %v3480, 0.0
        %vm3489 = vcmask 1040384
        %v3490 = vsel %vm3489, %v3488, 0.0
        %3491 = vadd.xlane.f32.xlu0 %v3490
        %v3492 = vpop.xlane.xlu0 %3491
        %vm3493 = vcmp.eq.s32.totalorder %v3486, 1
        %v3494 = vsel %vm3493, %v3480, 0.0
        %v3495 = vsel %vm3489, %v3494, 0.0
        %3496 = vadd.xlane.f32.xlu0 %v3495
        %v3497 = vpop.xlane.xlu0 %3496
        %v3498 = vsub.f32 %v3492, %v3497
        %v3499 = vmul.f32 %v3498, 1.442695
        %v3500 = vpow.pop %v3499
        %v3501 = vadd.f32 %v3500, 1.0
        %v3502 = vrcp.pop %v3501
        %v3503 = vmul.f32 1.0, %v3502
        %v3504 = vadd.f32 %v2864, %v2865
        %v3505 = vadd.f32 %v3504, %v2866
        %v3506 = vadd.f32 %v3505, %v2867
        %3507 = vadd.xlane.f32.xlu0 %v3506
        %v3508 = vpop.xlane.xlu0 %3507
        %v3509 = vadd.f32 %v2868, %v2869
        %v3510 = vadd.f32 %v3509, %v2870
        %v3511 = vadd.f32 %v3510, %v2871
        %3512 = vadd.xlane.f32.xlu0 %v3511
        %v3513 = vpop.xlane.xlu0 %3512
        %v3514 = vadd.f32 %v2872, %v2873
        %v3515 = vadd.f32 %v3514, %v2874
        %v3516 = vadd.f32 %v3515, %v2875
        %3517 = vadd.xlane.f32.xlu0 %v3516
        %v3518 = vpop.xlane.xlu0 %3517
        %v3519 = vadd.f32 %v2876, %v2877
        %v3520 = vadd.f32 %v3519, %v2878
        %v3521 = vadd.f32 %v3520, %v2879
        %3522 = vadd.xlane.f32.xlu0 %v3521
        %v3523 = vpop.xlane.xlu0 %3522
        %v3524 = vadd.f32 %v2880, %v2881
        %v3525 = vadd.f32 %v3524, %v2882
        %v3526 = vadd.f32 %v3525, %v2883
        %3527 = vadd.xlane.f32.xlu0 %v3526
        %v3528 = vpop.xlane.xlu0 %3527
        %v3529 = vadd.f32 %v2884, %v2885
        %v3530 = vadd.f32 %v3529, %v2886
        %v3531 = vadd.f32 %v3530, %v2887
        %3532 = vadd.xlane.f32.xlu0 %v3531
        %v3533 = vpop.xlane.xlu0 %3532
        %v3534 = vadd.f32 %v2888, %v2889
        %v3535 = vadd.f32 %v3534, %v2890
        %v3536 = vadd.f32 %v3535, %v2891
        %3537 = vadd.xlane.f32.xlu0 %v3536
        %v3538 = vpop.xlane.xlu0 %3537
        %v3539 = vadd.f32 %v2892, %v2893
        %v3540 = vadd.f32 %v3539, %v2894
        %v3541 = vadd.f32 %v3540, %v2895
        %3542 = vadd.xlane.f32.xlu0 %v3541
        %v3543 = vpop.xlane.xlu0 %3542
        %v3544 = vadd.f32 %v2896, %v2897
        %v3545 = vadd.f32 %v3544, %v2898
        %v3546 = vadd.f32 %v3545, %v2899
        %3547 = vadd.xlane.f32.xlu0 %v3546
        %v3548 = vpop.xlane.xlu0 %3547
        %v3549 = vadd.f32 %v2900, %v2901
        %v3550 = vadd.f32 %v3549, %v2902
        %v3551 = vadd.f32 %v3550, %v2903
        %3552 = vadd.xlane.f32.xlu0 %v3551
        %v3553 = vpop.xlane.xlu0 %3552
        %v3554 = vadd.f32 %v2904, %v2905
        %v3555 = vadd.f32 %v3554, %v2906
        %v3556 = vadd.f32 %v3555, %v2907
        %3557 = vadd.xlane.f32.xlu0 %v3556
        %v3558 = vpop.xlane.xlu0 %3557
        %v3559 = vadd.f32 %v2908, %v2909
        %v3560 = vadd.f32 %v3559, %v2910
        %v3561 = vadd.f32 %v3560, %v2911
        %3562 = vadd.xlane.f32.xlu0 %v3561
        %v3563 = vpop.xlane.xlu0 %3562
        %v3564 = vadd.f32 %v2912, %v2913
        %v3565 = vadd.f32 %v3564, %v2914
        %v3566 = vadd.f32 %v3565, %v2915
        %3567 = vadd.xlane.f32.xlu0 %v3566
        %v3568 = vpop.xlane.xlu0 %3567
        %v3569 = vadd.f32 %v2916, %v2917
        %v3570 = vadd.f32 %v3569, %v2918
        %v3571 = vadd.f32 %v3570, %v2919
        %3572 = vadd.xlane.f32.xlu0 %v3571
        %v3573 = vpop.xlane.xlu0 %3572
        %v3574 = vadd.f32 %v2920, %v2921
        %v3575 = vadd.f32 %v3574, %v2922
        %v3576 = vadd.f32 %v3575, %v2923
        %3577 = vadd.xlane.f32.xlu0 %v3576
        %v3578 = vpop.xlane.xlu0 %3577
        %v3579 = vadd.f32 %v2924, %v2925
        %v3580 = vadd.f32 %v3579, %v2926
        %v3581 = vadd.f32 %v3580, %v2927
        %3582 = vadd.xlane.f32.xlu0 %v3581
        %v3583 = vpop.xlane.xlu0 %3582
        %v3584 = vadd.f32 %v2928, %v2929
        %v3585 = vadd.f32 %v3584, %v2930
        %v3586 = vadd.f32 %v3585, %v2931
        %3587 = vadd.xlane.f32.xlu0 %v3586
        %v3588 = vpop.xlane.xlu0 %3587
        %v3589 = vadd.f32 %v2932, %v2933
        %v3590 = vadd.f32 %v3589, %v2934
        %v3591 = vadd.f32 %v3590, %v2935
        %3592 = vadd.xlane.f32.xlu0 %v3591
        %v3593 = vpop.xlane.xlu0 %3592
        %v3594 = vadd.f32 %v2936, %v2937
        %v3595 = vadd.f32 %v3594, %v2938
        %v3596 = vadd.f32 %v3595, %v2939
        %3597 = vadd.xlane.f32.xlu0 %v3596
        %v3598 = vpop.xlane.xlu0 %3597
        %v3599 = vadd.f32 %v2940, %v2941
        %v3600 = vadd.f32 %v3599, %v2942
        %v3601 = vadd.f32 %v3600, %v2943
        %3602 = vadd.xlane.f32.xlu0 %v3601
        %v3603 = vpop.xlane.xlu0 %3602
        %v3604 = vadd.f32 %v2944, %v2945
        %v3605 = vadd.f32 %v3604, %v2946
        %v3606 = vadd.f32 %v3605, %v2947
        %3607 = vadd.xlane.f32.xlu0 %v3606
        %v3608 = vpop.xlane.xlu0 %3607
        %v3609 = vadd.f32 %v2948, %v2949
        %v3610 = vadd.f32 %v3609, %v2950
        %v3611 = vadd.f32 %v3610, %v2951
        %3612 = vadd.xlane.f32.xlu0 %v3611
        %v3613 = vpop.xlane.xlu0 %3612
        %v3614 = vadd.f32 %v2952, %v2953
        %v3615 = vadd.f32 %v3614, %v2954
        %v3616 = vadd.f32 %v3615, %v2955
        %3617 = vadd.xlane.f32.xlu0 %v3616
        %v3618 = vpop.xlane.xlu0 %3617
        %v3619 = vadd.f32 %v2956, %v2957
        %v3620 = vadd.f32 %v3619, %v2958
        %v3621 = vadd.f32 %v3620, %v2959
        %3622 = vadd.xlane.f32.xlu0 %v3621
        %v3623 = vpop.xlane.xlu0 %3622
        %v3624 = vadd.f32 %v2960, %v2961
        %v3625 = vadd.f32 %v3624, %v2962
        %v3626 = vadd.f32 %v3625, %v2963
        %3627 = vadd.xlane.f32.xlu0 %v3626
        %v3628 = vpop.xlane.xlu0 %3627
        %v3629 = vadd.f32 %v2964, %v2965
        %v3630 = vadd.f32 %v3629, %v2966
        %v3631 = vadd.f32 %v3630, %v2967
        %3632 = vadd.xlane.f32.xlu0 %v3631
        %v3633 = vpop.xlane.xlu0 %3632
        %v3634 = vadd.f32 %v2968, %v2969
        %v3635 = vadd.f32 %v3634, %v2970
        %v3636 = vadd.f32 %v3635, %v2971
        %3637 = vadd.xlane.f32.xlu0 %v3636
        %v3638 = vpop.xlane.xlu0 %3637
        %v3639 = vadd.f32 %v2972, %v2973
        %v3640 = vadd.f32 %v3639, %v2974
        %v3641 = vadd.f32 %v3640, %v2975
        %3642 = vadd.xlane.f32.xlu0 %v3641
        %v3643 = vpop.xlane.xlu0 %3642
        %v3644 = vadd.f32 %v2976, %v2977
        %v3645 = vadd.f32 %v3644, %v2978
        %v3646 = vadd.f32 %v3645, %v2979
        %3647 = vadd.xlane.f32.xlu0 %v3646
        %v3648 = vpop.xlane.xlu0 %3647
        %v3649 = vadd.f32 %v2980, %v2981
        %v3650 = vadd.f32 %v3649, %v2982
        %v3651 = vadd.f32 %v3650, %v2983
        %3652 = vadd.xlane.f32.xlu0 %v3651
        %v3653 = vpop.xlane.xlu0 %3652
        %v3654 = vadd.f32 %v2984, %v2985
        %v3655 = vadd.f32 %v3654, %v2986
        %v3656 = vadd.f32 %v3655, %v2987
        %3657 = vadd.xlane.f32.xlu0 %v3656
        %v3658 = vpop.xlane.xlu0 %3657
        %v3659 = vadd.f32 %v2988, %v2989
        %v3660 = vadd.f32 %v3659, %v2990
        %v3661 = vadd.f32 %v3660, %v2991
        %3662 = vadd.xlane.f32.xlu0 %v3661
        %v3663 = vpop.xlane.xlu0 %3662
        %v3664 = vmul.f32 %v3508, 0.001953125
        %v3665 = vmul.f32 %v3513, 0.001953125
        %v3666 = vmul.f32 %v3518, 0.001953125
        %v3667 = vmul.f32 %v3523, 0.001953125
        %v3668 = vmul.f32 %v3528, 0.001953125
        %v3669 = vmul.f32 %v3533, 0.001953125
        %v3670 = vmul.f32 %v3538, 0.001953125
        %v3671 = vmul.f32 %v3543, 0.001953125
        %v3672 = vmul.f32 %v3548, 0.001953125
        %v3673 = vmul.f32 %v3553, 0.001953125
        %v3674 = vmul.f32 %v3558, 0.001953125
        %v3675 = vmul.f32 %v3563, 0.001953125
        %v3676 = vmul.f32 %v3568, 0.001953125
        %v3677 = vmul.f32 %v3573, 0.001953125
        %v3678 = vmul.f32 %v3578, 0.001953125
        %v3679 = vmul.f32 %v3583, 0.001953125
        %v3680 = vmul.f32 %v3588, 0.001953125
        %v3681 = vmul.f32 %v3593, 0.001953125
        %v3682 = vmul.f32 %v3598, 0.001953125
        %v3683 = vmul.f32 %v3603, 0.001953125
        %v3684 = vmul.f32 %v3608, 0.001953125
        %v3685 = vmul.f32 %v3613, 0.001953125
        %v3686 = vmul.f32 %v3618, 0.001953125
        %v3687 = vmul.f32 %v3623, 0.001953125
        %v3688 = vmul.f32 %v3628, 0.001953125
        %v3689 = vmul.f32 %v3633, 0.001953125
        %v3690 = vmul.f32 %v3638, 0.001953125
        %v3691 = vmul.f32 %v3643, 0.001953125
        %v3692 = vmul.f32 %v3648, 0.001953125
        %v3693 = vmul.f32 %v3653, 0.001953125
        %v3694 = vmul.f32 %v3658, 0.001953125
        %v3695 = vmul.f32 %v3663, 0.001953125
        %v3728 = vlaneseq
        %v3729 = vshrl.u32 %v3728, 7
        %v3730 = vsub.s32 %v3486, %v3729
        %v3731 = vrot.slane %v3664, %v3730
        %v3732 = vadd.s32 %v3486, 4294967288
        %v3733 = vlaneseq
        %v3734 = vshrl.u32 %v3733, 7
        %v3735 = vsub.s32 %v3732, %v3734
        %v3736 = vrot.slane %v3665, %v3735
        %vm3737 = vcmask 130112
        %v3738 = vsel %vm3737, %v3736, %v3731
        %v3739 = vlaneseq
        %v3740 = vshrl.u32 %v3739, 7
        %v3741 = vsub.s32 %v3486, %v3740
        %v3742 = vrot.slane %v3666, %v3741
        %v3743 = vlaneseq
        %v3744 = vshrl.u32 %v3743, 7
        %v3745 = vsub.s32 %v3732, %v3744
        %v3746 = vrot.slane %v3667, %v3745
        %v3747 = vsel %vm3737, %v3746, %v3742
        %v3748 = vlaneseq
        %v3749 = vshrl.u32 %v3748, 7
        %v3750 = vsub.s32 %v3486, %v3749
        %v3751 = vrot.slane %v3668, %v3750
        %v3752 = vlaneseq
        %v3753 = vshrl.u32 %v3752, 7
        %v3754 = vsub.s32 %v3732, %v3753
        %v3755 = vrot.slane %v3669, %v3754
        %v3756 = vsel %vm3737, %v3755, %v3751
        %v3757 = vlaneseq
        %v3758 = vshrl.u32 %v3757, 7
        %v3759 = vsub.s32 %v3486, %v3758
        %v3760 = vrot.slane %v3670, %v3759
        %v3761 = vlaneseq
        %v3762 = vshrl.u32 %v3761, 7
        %v3763 = vsub.s32 %v3732, %v3762
        %v3764 = vrot.slane %v3671, %v3763
        %v3765 = vsel %vm3737, %v3764, %v3760
        %v3766 = vlaneseq
        %v3767 = vshrl.u32 %v3766, 7
        %v3768 = vsub.s32 %v3486, %v3767
        %v3769 = vrot.slane %v3672, %v3768
        %v3770 = vlaneseq
        %v3771 = vshrl.u32 %v3770, 7
        %v3772 = vsub.s32 %v3732, %v3771
        %v3773 = vrot.slane %v3673, %v3772
        %v3774 = vsel %vm3737, %v3773, %v3769
        %v3775 = vlaneseq
        %v3776 = vshrl.u32 %v3775, 7
        %v3777 = vsub.s32 %v3486, %v3776
        %v3778 = vrot.slane %v3674, %v3777
        %v3779 = vlaneseq
        %v3780 = vshrl.u32 %v3779, 7
        %v3781 = vsub.s32 %v3732, %v3780
        %v3782 = vrot.slane %v3675, %v3781
        %v3783 = vsel %vm3737, %v3782, %v3778
        %v3784 = vlaneseq
        %v3785 = vshrl.u32 %v3784, 7
        %v3786 = vsub.s32 %v3486, %v3785
        %v3787 = vrot.slane %v3676, %v3786
        %v3788 = vlaneseq
        %v3789 = vshrl.u32 %v3788, 7
        %v3790 = vsub.s32 %v3732, %v3789
        %v3791 = vrot.slane %v3677, %v3790
        %v3792 = vsel %vm3737, %v3791, %v3787
        %v3793 = vlaneseq
        %v3794 = vshrl.u32 %v3793, 7
        %v3795 = vsub.s32 %v3486, %v3794
        %v3796 = vrot.slane %v3678, %v3795
        %v3797 = vlaneseq
        %v3798 = vshrl.u32 %v3797, 7
        %v3799 = vsub.s32 %v3732, %v3798
        %v3800 = vrot.slane %v3679, %v3799
        %v3801 = vsel %vm3737, %v3800, %v3796
        %v3802 = vlaneseq
        %v3803 = vshrl.u32 %v3802, 7
        %v3804 = vsub.s32 %v3486, %v3803
        %v3805 = vrot.slane %v3680, %v3804
        %v3806 = vlaneseq
        %v3807 = vshrl.u32 %v3806, 7
        %v3808 = vsub.s32 %v3732, %v3807
        %v3809 = vrot.slane %v3681, %v3808
        %v3810 = vsel %vm3737, %v3809, %v3805
        %v3811 = vlaneseq
        %v3812 = vshrl.u32 %v3811, 7
        %v3813 = vsub.s32 %v3486, %v3812
        %v3814 = vrot.slane %v3682, %v3813
        %v3815 = vlaneseq
        %v3816 = vshrl.u32 %v3815, 7
        %v3817 = vsub.s32 %v3732, %v3816
        %v3818 = vrot.slane %v3683, %v3817
        %v3819 = vsel %vm3737, %v3818, %v3814
        %v3820 = vlaneseq
        %v3821 = vshrl.u32 %v3820, 7
        %v3822 = vsub.s32 %v3486, %v3821
        %v3823 = vrot.slane %v3684, %v3822
        %v3824 = vlaneseq
        %v3825 = vshrl.u32 %v3824, 7
        %v3826 = vsub.s32 %v3732, %v3825
        %v3827 = vrot.slane %v3685, %v3826
        %v3828 = vsel %vm3737, %v3827, %v3823
        %v3829 = vlaneseq
        %v3830 = vshrl.u32 %v3829, 7
        %v3831 = vsub.s32 %v3486, %v3830
        %v3832 = vrot.slane %v3686, %v3831
        %v3833 = vlaneseq
        %v3834 = vshrl.u32 %v3833, 7
        %v3835 = vsub.s32 %v3732, %v3834
        %v3836 = vrot.slane %v3687, %v3835
        %v3837 = vsel %vm3737, %v3836, %v3832
        %v3838 = vlaneseq
        %v3839 = vshrl.u32 %v3838, 7
        %v3840 = vsub.s32 %v3486, %v3839
        %v3841 = vrot.slane %v3688, %v3840
        %v3842 = vlaneseq
        %v3843 = vshrl.u32 %v3842, 7
        %v3844 = vsub.s32 %v3732, %v3843
        %v3845 = vrot.slane %v3689, %v3844
        %v3846 = vsel %vm3737, %v3845, %v3841
        %v3847 = vlaneseq
        %v3848 = vshrl.u32 %v3847, 7
        %v3849 = vsub.s32 %v3486, %v3848
        %v3850 = vrot.slane %v3690, %v3849
        %v3851 = vlaneseq
        %v3852 = vshrl.u32 %v3851, 7
        %v3853 = vsub.s32 %v3732, %v3852
        %v3854 = vrot.slane %v3691, %v3853
        %v3855 = vsel %vm3737, %v3854, %v3850
        %v3856 = vlaneseq
        %v3857 = vshrl.u32 %v3856, 7
        %v3858 = vsub.s32 %v3486, %v3857
        %v3859 = vrot.slane %v3692, %v3858
        %v3860 = vlaneseq
        %v3861 = vshrl.u32 %v3860, 7
        %v3862 = vsub.s32 %v3732, %v3861
        %v3863 = vrot.slane %v3693, %v3862
        %v3864 = vsel %vm3737, %v3863, %v3859
        %v3865 = vlaneseq
        %v3866 = vshrl.u32 %v3865, 7
        %v3867 = vsub.s32 %v3486, %v3866
        %v3868 = vrot.slane %v3694, %v3867
        %v3869 = vlaneseq
        %v3870 = vshrl.u32 %v3869, 7
        %v3871 = vsub.s32 %v3732, %v3870
        %v3872 = vrot.slane %v3695, %v3871
        %v3873 = vsel %vm3737, %v3872, %v3868
        %vm3874 = vcmask 1041409
        %v3875 = vsel %vm3874, %v3747, %v3738
        %vm3876 = vcmask 1042434
        %v3877 = vsel %vm3876, %v3756, %v3875
        %vm3878 = vcmask 1043459
        %v3879 = vsel %vm3878, %v3765, %v3877
        %vm3880 = vcmask 1044484
        %v3881 = vsel %vm3880, %v3774, %v3879
        %vm3882 = vcmask 1045509
        %v3883 = vsel %vm3882, %v3783, %v3881
        %vm3884 = vcmask 1046534
        %v3885 = vsel %vm3884, %v3792, %v3883
        %vm3886 = vcmask 1047559
        %v3887 = vsel %vm3886, %v3801, %v3885
        %v3888 = vsel %vm3874, %v3819, %v3810
        %v3889 = vsel %vm3876, %v3828, %v3888
        %v3890 = vsel %vm3878, %v3837, %v3889
        %v3891 = vsel %vm3880, %v3846, %v3890
        %v3892 = vsel %vm3882, %v3855, %v3891
        %v3893 = vsel %vm3884, %v3864, %v3892
        %v3894 = vsel %vm3886, %v3873, %v3893
        %vm3897 = vcmask 130048
        %v3898 = vsel %vm3897, %v3887, inf
        %3899 = vmin.xlane.f32.xlu0 %v3898
        %v3900 = vpop.xlane.xlu0 %3899
        %v3901 = vsel %vm3897, %v3894, inf
        %3902 = vmin.xlane.f32.xlu0 %v3901
        %v3903 = vpop.xlane.xlu0 %3902
        %v3904 = vmin.f32 %v3900, %v3903
        %v3905 = vrot.slane %v3904, 4
        %v3906 = vmin.f32 %v3904, %v3905
        %v3907 = vrot.slane %v3906, 2
        %v3908 = vmin.f32 %v3906, %v3907
        %v3909 = vrot.slane %v3908, 1
        %v3910 = vmin.f32 %v3908, %v3909
        %v3911 = vsel %vm3897, %v3887, -inf
        %3912 = vmax.xlane.f32.xlu0 %v3911
        %v3913 = vpop.xlane.xlu0 %3912
        %v3914 = vsel %vm3897, %v3894, -inf
        %3915 = vmax.xlane.f32.xlu0 %v3914
        %v3916 = vpop.xlane.xlu0 %3915
        %v3917 = vmax.f32 %v3913, %v3916
        %v3918 = vrot.slane %v3917, 4
        %v3919 = vmax.f32 %v3917, %v3918
        %v3920 = vrot.slane %v3919, 2
        %v3921 = vmax.f32 %v3919, %v3920
        %v3922 = vrot.slane %v3921, 1
        %v3923 = vmax.f32 %v3921, %v3922
        %v3924 = vsub.f32 %v3664, %v3910
        %v3925 = vsub.f32 %v3665, %v3910
        %v3926 = vsub.f32 %v3666, %v3910
        %v3927 = vsub.f32 %v3667, %v3910
        %v3928 = vsub.f32 %v3668, %v3910
        %v3929 = vsub.f32 %v3669, %v3910
        %v3930 = vsub.f32 %v3670, %v3910
        %v3931 = vsub.f32 %v3671, %v3910
        %v3932 = vsub.f32 %v3672, %v3910
        %v3933 = vsub.f32 %v3673, %v3910
        %v3934 = vsub.f32 %v3674, %v3910
        %v3935 = vsub.f32 %v3675, %v3910
        %v3936 = vsub.f32 %v3676, %v3910
        %v3937 = vsub.f32 %v3677, %v3910
        %v3938 = vsub.f32 %v3678, %v3910
        %v3939 = vsub.f32 %v3679, %v3910
        %v3940 = vsub.f32 %v3680, %v3910
        %v3941 = vsub.f32 %v3681, %v3910
        %v3942 = vsub.f32 %v3682, %v3910
        %v3943 = vsub.f32 %v3683, %v3910
        %v3944 = vsub.f32 %v3684, %v3910
        %v3945 = vsub.f32 %v3685, %v3910
        %v3946 = vsub.f32 %v3686, %v3910
        %v3947 = vsub.f32 %v3687, %v3910
        %v3948 = vsub.f32 %v3688, %v3910
        %v3949 = vsub.f32 %v3689, %v3910
        %v3950 = vsub.f32 %v3690, %v3910
        %v3951 = vsub.f32 %v3691, %v3910
        %v3952 = vsub.f32 %v3692, %v3910
        %v3953 = vsub.f32 %v3693, %v3910
        %v3954 = vsub.f32 %v3694, %v3910
        %v3955 = vsub.f32 %v3695, %v3910
        %v3956 = vsub.f32 %v3923, %v3910
        %v3957 = vadd.f32 %v3956, 1e-08
        %v3958 = vrcp.pop %v3957
        %v3959 = vmul.f32 %v3924, %v3958
        %v3960 = vmul.f32 %v3925, %v3958
        %v3961 = vmul.f32 %v3926, %v3958
        %v3962 = vmul.f32 %v3927, %v3958
        %v3963 = vmul.f32 %v3928, %v3958
        %v3964 = vmul.f32 %v3929, %v3958
        %v3965 = vmul.f32 %v3930, %v3958
        %v3966 = vmul.f32 %v3931, %v3958
        %v3967 = vmul.f32 %v3932, %v3958
        %v3968 = vmul.f32 %v3933, %v3958
        %v3969 = vmul.f32 %v3934, %v3958
        %v3970 = vmul.f32 %v3935, %v3958
        %v3971 = vmul.f32 %v3936, %v3958
        %v3972 = vmul.f32 %v3937, %v3958
        %v3973 = vmul.f32 %v3938, %v3958
        %v3974 = vmul.f32 %v3939, %v3958
        %v3975 = vmul.f32 %v3940, %v3958
        %v3976 = vmul.f32 %v3941, %v3958
        %v3977 = vmul.f32 %v3942, %v3958
        %v3978 = vmul.f32 %v3943, %v3958
        %v3979 = vmul.f32 %v3944, %v3958
        %v3980 = vmul.f32 %v3945, %v3958
        %v3981 = vmul.f32 %v3946, %v3958
        %v3982 = vmul.f32 %v3947, %v3958
        %v3983 = vmul.f32 %v3948, %v3958
        %v3984 = vmul.f32 %v3949, %v3958
        %v3985 = vmul.f32 %v3950, %v3958
        %v3986 = vmul.f32 %v3951, %v3958
        %v3987 = vmul.f32 %v3952, %v3958
        %v3988 = vmul.f32 %v3953, %v3958
        %v3989 = vmul.f32 %v3954, %v3958
        %v3990 = vmul.f32 %v3955, %v3958
        %v3991 = vld [vmem:[%s416] sm:$0xff]
        %v3992 = vld [vmem:[%s416 + $0x8] sm:$0xff]
        %v3993 = vsel %vm3897, %v3991, inf
        %3994 = vmin.xlane.f32.xlu0 %v3993
        %v3995 = vpop.xlane.xlu0 %3994
        %v3996 = vsel %vm3897, %v3992, inf
        %3997 = vmin.xlane.f32.xlu0 %v3996
        %v3998 = vpop.xlane.xlu0 %3997
        %v3999 = vmin.f32 %v3995, %v3998
        %v4000 = vrot.slane %v3999, 4
        %v4001 = vmin.f32 %v3999, %v4000
        %v4002 = vrot.slane %v4001, 2
        %v4003 = vmin.f32 %v4001, %v4002
        %v4004 = vrot.slane %v4003, 1
        %v4005 = vmin.f32 %v4003, %v4004
        %v4006 = vsel %vm3897, %v3991, -inf
        %4007 = vmax.xlane.f32.xlu0 %v4006
        %v4008 = vpop.xlane.xlu0 %4007
        %v4009 = vsel %vm3897, %v3992, -inf
        %4010 = vmax.xlane.f32.xlu0 %v4009
        %v4011 = vpop.xlane.xlu0 %4010
        %v4012 = vmax.f32 %v4008, %v4011
        %v4013 = vrot.slane %v4012, 4
        %v4014 = vmax.f32 %v4012, %v4013
        %v4015 = vrot.slane %v4014, 2
        %v4016 = vmax.f32 %v4014, %v4015
        %v4017 = vrot.slane %v4016, 1
        %v4018 = vmax.f32 %v4016, %v4017
        %v4019 = vsub.f32 %v3991, %v4005
        %v4020 = vsub.f32 %v3992, %v4005
        %v4021 = vsub.f32 %v4018, %v4005
        %v4022 = vadd.f32 %v4021, 1e-08
        %v4023 = vrcp.pop %v4022
        %v4024 = vmul.f32 %v4019, %v4023
        %v4025 = vmul.f32 %v4020, %v4023
        %v4026 = vld [vmem:[%s355] sm:$0xff]
        %v4027 = vld [vmem:[%s355 + $0x8] sm:$0xff]
        %v4028 = vsel %vm3897, %v4026, inf
        %4029 = vmin.xlane.f32.xlu0 %v4028
        %v4030 = vpop.xlane.xlu0 %4029
        %v4031 = vsel %vm3897, %v4027, inf
        %4032 = vmin.xlane.f32.xlu0 %v4031
        %v4033 = vpop.xlane.xlu0 %4032
        %v4034 = vmin.f32 %v4030, %v4033
        %v4035 = vrot.slane %v4034, 4
        %v4036 = vmin.f32 %v4034, %v4035
        %v4037 = vrot.slane %v4036, 2
        %v4038 = vmin.f32 %v4036, %v4037
        %v4039 = vrot.slane %v4038, 1
        %v4040 = vmin.f32 %v4038, %v4039
        %v4041 = vsel %vm3897, %v4026, -inf
        %4042 = vmax.xlane.f32.xlu0 %v4041
        %v4043 = vpop.xlane.xlu0 %4042
        %v4044 = vsel %vm3897, %v4027, -inf
        %4045 = vmax.xlane.f32.xlu0 %v4044
        %v4046 = vpop.xlane.xlu0 %4045
        %v4047 = vmax.f32 %v4043, %v4046
        %v4048 = vrot.slane %v4047, 4
        %v4049 = vmax.f32 %v4047, %v4048
        %v4050 = vrot.slane %v4049, 2
        %v4051 = vmax.f32 %v4049, %v4050
        %v4052 = vrot.slane %v4051, 1
        %v4053 = vmax.f32 %v4051, %v4052
        %v4054 = vsub.f32 %v4026, %v4040
        %v4055 = vsub.f32 %v4027, %v4040
        %v4056 = vsub.f32 %v4053, %v4040
        %v4057 = vadd.f32 %v4056, 1e-08
        %v4058 = vrcp.pop %v4057
        %v4059 = vmul.f32 %v4054, %v4058
        %v4060 = vmul.f32 %v4055, %v4058
        %v4063 = vlaneseq
        %v4064 = vshrl.u32 %v4063, 7
        %v4065 = vsub.s32 0, %v4064
        %v4066 = vrot.slane %v4024, %v4065
        %4068 = vbcast.lane.b32.xlu0 %v4066, 256
        %v4069 = vpop.permute.xlu0 %4068
        %s4071 = sor.u32 256, 8
        %4072 = vbcast.lane.b32.xlu0 %v4066, %s4071
        %v4073 = vpop.permute.xlu0 %4072
        %v4074 = vlaneseq
        %v4075 = vshrl.u32 %v4074, 7
        %v4076 = vsub.s32 1, %v4075
        %v4077 = vrot.slane %v4024, %v4076
        %4079 = vbcast.lane.b32.xlu0 %v4077, 256
        %v4080 = vpop.permute.xlu0 %4079
        %s4082 = sor.u32 256, 8
        %4083 = vbcast.lane.b32.xlu0 %v4077, %s4082
        %v4084 = vpop.permute.xlu0 %4083
        %v4085 = vlaneseq
        %v4086 = vshrl.u32 %v4085, 7
        %v4087 = vsub.s32 2, %v4086
        %v4088 = vrot.slane %v4024, %v4087
        %4090 = vbcast.lane.b32.xlu0 %v4088, 256
        %v4091 = vpop.permute.xlu0 %4090
        %s4093 = sor.u32 256, 8
        %4094 = vbcast.lane.b32.xlu0 %v4088, %s4093
        %v4095 = vpop.permute.xlu0 %4094
        %v4096 = vlaneseq
        %v4097 = vshrl.u32 %v4096, 7
        %v4098 = vsub.s32 3, %v4097
        %v4099 = vrot.slane %v4024, %v4098
        %4101 = vbcast.lane.b32.xlu0 %v4099, 256
        %v4102 = vpop.permute.xlu0 %4101
        %s4104 = sor.u32 256, 8
        %4105 = vbcast.lane.b32.xlu0 %v4099, %s4104
        %v4106 = vpop.permute.xlu0 %4105
        %v4107 = vlaneseq
        %v4108 = vshrl.u32 %v4107, 7
        %v4109 = vsub.s32 4, %v4108
        %v4110 = vrot.slane %v4024, %v4109
        %4112 = vbcast.lane.b32.xlu0 %v4110, 256
        %v4113 = vpop.permute.xlu0 %4112
        %s4115 = sor.u32 256, 8
        %4116 = vbcast.lane.b32.xlu0 %v4110, %s4115
        %v4117 = vpop.permute.xlu0 %4116
        %v4118 = vlaneseq
        %v4119 = vshrl.u32 %v4118, 7
        %v4120 = vsub.s32 5, %v4119
        %v4121 = vrot.slane %v4024, %v4120
        %4123 = vbcast.lane.b32.xlu0 %v4121, 256
        %v4124 = vpop.permute.xlu0 %4123
        %s4126 = sor.u32 256, 8
        %4127 = vbcast.lane.b32.xlu0 %v4121, %s4126
        %v4128 = vpop.permute.xlu0 %4127
        %v4129 = vlaneseq
        %v4130 = vshrl.u32 %v4129, 7
        %v4131 = vsub.s32 6, %v4130
        %v4132 = vrot.slane %v4024, %v4131
        %4134 = vbcast.lane.b32.xlu0 %v4132, 256
        %v4135 = vpop.permute.xlu0 %4134
        %s4137 = sor.u32 256, 8
        %4138 = vbcast.lane.b32.xlu0 %v4132, %s4137
        %v4139 = vpop.permute.xlu0 %4138
        %v4140 = vlaneseq
        %v4141 = vshrl.u32 %v4140, 7
        %v4142 = vsub.s32 7, %v4141
        %v4143 = vrot.slane %v4024, %v4142
        %4145 = vbcast.lane.b32.xlu0 %v4143, 256
        %v4146 = vpop.permute.xlu0 %4145
        %s4148 = sor.u32 256, 8
        %4149 = vbcast.lane.b32.xlu0 %v4143, %s4148
        %v4150 = vpop.permute.xlu0 %4149
        %v4151 = vlaneseq
        %v4152 = vshrl.u32 %v4151, 7
        %v4153 = vsub.s32 0, %v4152
        %v4154 = vrot.slane %v4025, %v4153
        %4156 = vbcast.lane.b32.xlu0 %v4154, 256
        %v4157 = vpop.permute.xlu0 %4156
        %s4159 = sor.u32 256, 8
        %4160 = vbcast.lane.b32.xlu0 %v4154, %s4159
        %v4161 = vpop.permute.xlu0 %4160
        %v4162 = vlaneseq
        %v4163 = vshrl.u32 %v4162, 7
        %v4164 = vsub.s32 1, %v4163
        %v4165 = vrot.slane %v4025, %v4164
        %4167 = vbcast.lane.b32.xlu0 %v4165, 256
        %v4168 = vpop.permute.xlu0 %4167
        %s4170 = sor.u32 256, 8
        %4171 = vbcast.lane.b32.xlu0 %v4165, %s4170
        %v4172 = vpop.permute.xlu0 %4171
        %v4173 = vlaneseq
        %v4174 = vshrl.u32 %v4173, 7
        %v4175 = vsub.s32 2, %v4174
        %v4176 = vrot.slane %v4025, %v4175
        %4178 = vbcast.lane.b32.xlu0 %v4176, 256
        %v4179 = vpop.permute.xlu0 %4178
        %s4181 = sor.u32 256, 8
        %4182 = vbcast.lane.b32.xlu0 %v4176, %s4181
        %v4183 = vpop.permute.xlu0 %4182
        %v4184 = vlaneseq
        %v4185 = vshrl.u32 %v4184, 7
        %v4186 = vsub.s32 3, %v4185
        %v4187 = vrot.slane %v4025, %v4186
        %4189 = vbcast.lane.b32.xlu0 %v4187, 256
        %v4190 = vpop.permute.xlu0 %4189
        %s4192 = sor.u32 256, 8
        %4193 = vbcast.lane.b32.xlu0 %v4187, %s4192
        %v4194 = vpop.permute.xlu0 %4193
        %v4195 = vlaneseq
        %v4196 = vshrl.u32 %v4195, 7
        %v4197 = vsub.s32 4, %v4196
        %v4198 = vrot.slane %v4025, %v4197
        %4200 = vbcast.lane.b32.xlu0 %v4198, 256
        %v4201 = vpop.permute.xlu0 %4200
        %s4203 = sor.u32 256, 8
        %4204 = vbcast.lane.b32.xlu0 %v4198, %s4203
        %v4205 = vpop.permute.xlu0 %4204
        %v4206 = vlaneseq
        %v4207 = vshrl.u32 %v4206, 7
        %v4208 = vsub.s32 5, %v4207
        %v4209 = vrot.slane %v4025, %v4208
        %4211 = vbcast.lane.b32.xlu0 %v4209, 256
        %v4212 = vpop.permute.xlu0 %4211
        %s4214 = sor.u32 256, 8
        %4215 = vbcast.lane.b32.xlu0 %v4209, %s4214
        %v4216 = vpop.permute.xlu0 %4215
        %v4217 = vlaneseq
        %v4218 = vshrl.u32 %v4217, 7
        %v4219 = vsub.s32 6, %v4218
        %v4220 = vrot.slane %v4025, %v4219
        %4222 = vbcast.lane.b32.xlu0 %v4220, 256
        %v4223 = vpop.permute.xlu0 %4222
        %s4225 = sor.u32 256, 8
        %4226 = vbcast.lane.b32.xlu0 %v4220, %s4225
        %v4227 = vpop.permute.xlu0 %4226
        %v4228 = vlaneseq
        %v4229 = vshrl.u32 %v4228, 7
        %v4230 = vsub.s32 7, %v4229
        %v4231 = vrot.slane %v4025, %v4230
        %4233 = vbcast.lane.b32.xlu0 %v4231, 256
        %v4234 = vpop.permute.xlu0 %4233
        %s4236 = sor.u32 256, 8
        %4237 = vbcast.lane.b32.xlu0 %v4231, %s4236
        %v4238 = vpop.permute.xlu0 %4237
        %v4271 = vmul.f32 %v3959, %v4069
        %v4272 = vmul.f32 %v3960, %v4073
        %v4273 = vmul.f32 %v3961, %v4080
        %v4274 = vmul.f32 %v3962, %v4084
        %v4275 = vmul.f32 %v3963, %v4091
        %v4276 = vmul.f32 %v3964, %v4095
        %v4277 = vmul.f32 %v3965, %v4102
        %v4278 = vmul.f32 %v3966, %v4106
        %v4279 = vmul.f32 %v3967, %v4113
        %v4280 = vmul.f32 %v3968, %v4117
        %v4281 = vmul.f32 %v3969, %v4124
        %v4282 = vmul.f32 %v3970, %v4128
        %v4283 = vmul.f32 %v3971, %v4135
        %v4284 = vmul.f32 %v3972, %v4139
        %v4285 = vmul.f32 %v3973, %v4146
        %v4286 = vmul.f32 %v3974, %v4150
        %v4287 = vmul.f32 %v3975, %v4157
        %v4288 = vmul.f32 %v3976, %v4161
        %v4289 = vmul.f32 %v3977, %v4168
        %v4290 = vmul.f32 %v3978, %v4172
        %v4291 = vmul.f32 %v3979, %v4179
        %v4292 = vmul.f32 %v3980, %v4183
        %v4293 = vmul.f32 %v3981, %v4190
        %v4294 = vmul.f32 %v3982, %v4194
        %v4295 = vmul.f32 %v3983, %v4201
        %v4296 = vmul.f32 %v3984, %v4205
        %v4297 = vmul.f32 %v3985, %v4212
        %v4298 = vmul.f32 %v3986, %v4216
        %v4299 = vmul.f32 %v3987, %v4223
        %v4300 = vmul.f32 %v3988, %v4227
        %v4301 = vmul.f32 %v3989, %v4234
        %v4302 = vmul.f32 %v3990, %v4238
        %4335 = vset.pattern.permute.xlu0 0
        %4336 = vperm.xlu0 %4335, %v4271
        %v4337 = vpop.permute.xlu0 %4336
        %4338 = vset.pattern.permute.xlu0 0
        %4339 = vperm.xlu0 %4338, %v4272
        %v4340 = vpop.permute.xlu0 %4339
        %4341 = vset.pattern.permute.xlu0 0
        %4342 = vperm.xlu0 %4341, %v4273
        %v4343 = vpop.permute.xlu0 %4342
        %4344 = vset.pattern.permute.xlu0 0
        %4345 = vperm.xlu0 %4344, %v4274
        %v4346 = vpop.permute.xlu0 %4345
        %4347 = vset.pattern.permute.xlu0 0
        %4348 = vperm.xlu0 %4347, %v4275
        %v4349 = vpop.permute.xlu0 %4348
        %4350 = vset.pattern.permute.xlu0 0
        %4351 = vperm.xlu0 %4350, %v4276
        %v4352 = vpop.permute.xlu0 %4351
        %4353 = vset.pattern.permute.xlu0 0
        %4354 = vperm.xlu0 %4353, %v4277
        %v4355 = vpop.permute.xlu0 %4354
        %4356 = vset.pattern.permute.xlu0 0
        %4357 = vperm.xlu0 %4356, %v4278
        %v4358 = vpop.permute.xlu0 %4357
        %4359 = vset.pattern.permute.xlu0 0
        %4360 = vperm.xlu0 %4359, %v4279
        %v4361 = vpop.permute.xlu0 %4360
        %4362 = vset.pattern.permute.xlu0 0
        %4363 = vperm.xlu0 %4362, %v4280
        %v4364 = vpop.permute.xlu0 %4363
        %4365 = vset.pattern.permute.xlu0 0
        %4366 = vperm.xlu0 %4365, %v4281
        %v4367 = vpop.permute.xlu0 %4366
        %4368 = vset.pattern.permute.xlu0 0
        %4369 = vperm.xlu0 %4368, %v4282
        %v4370 = vpop.permute.xlu0 %4369
        %4371 = vset.pattern.permute.xlu0 0
        %4372 = vperm.xlu0 %4371, %v4283
        %v4373 = vpop.permute.xlu0 %4372
        %4374 = vset.pattern.permute.xlu0 0
        %4375 = vperm.xlu0 %4374, %v4284
        %v4376 = vpop.permute.xlu0 %4375
        %4377 = vset.pattern.permute.xlu0 0
        %4378 = vperm.xlu0 %4377, %v4285
        %v4379 = vpop.permute.xlu0 %4378
        %4380 = vset.pattern.permute.xlu0 0
        %4381 = vperm.xlu0 %4380, %v4286
        %v4382 = vpop.permute.xlu0 %4381
        %4383 = vset.pattern.permute.xlu0 0
        %4384 = vperm.xlu0 %4383, %v4287
        %v4385 = vpop.permute.xlu0 %4384
        %4386 = vset.pattern.permute.xlu0 0
        %4387 = vperm.xlu0 %4386, %v4288
        %v4388 = vpop.permute.xlu0 %4387
        %4389 = vset.pattern.permute.xlu0 0
        %4390 = vperm.xlu0 %4389, %v4289
        %v4391 = vpop.permute.xlu0 %4390
        %4392 = vset.pattern.permute.xlu0 0
        %4393 = vperm.xlu0 %4392, %v4290
        %v4394 = vpop.permute.xlu0 %4393
        %4395 = vset.pattern.permute.xlu0 0
        %4396 = vperm.xlu0 %4395, %v4291
        %v4397 = vpop.permute.xlu0 %4396
        %4398 = vset.pattern.permute.xlu0 0
        %4399 = vperm.xlu0 %4398, %v4292
        %v4400 = vpop.permute.xlu0 %4399
        %4401 = vset.pattern.permute.xlu0 0
        %4402 = vperm.xlu0 %4401, %v4293
        %v4403 = vpop.permute.xlu0 %4402
        %4404 = vset.pattern.permute.xlu0 0
        %4405 = vperm.xlu0 %4404, %v4294
        %v4406 = vpop.permute.xlu0 %4405
        %4407 = vset.pattern.permute.xlu0 0
        %4408 = vperm.xlu0 %4407, %v4295
        %v4409 = vpop.permute.xlu0 %4408
        %4410 = vset.pattern.permute.xlu0 0
        %4411 = vperm.xlu0 %4410, %v4296
        %v4412 = vpop.permute.xlu0 %4411
        %4413 = vset.pattern.permute.xlu0 0
        %4414 = vperm.xlu0 %4413, %v4297
        %v4415 = vpop.permute.xlu0 %4414
        %4416 = vset.pattern.permute.xlu0 0
        %4417 = vperm.xlu0 %4416, %v4298
        %v4418 = vpop.permute.xlu0 %4417
        %4419 = vset.pattern.permute.xlu0 0
        %4420 = vperm.xlu0 %4419, %v4299
        %v4421 = vpop.permute.xlu0 %4420
        %4422 = vset.pattern.permute.xlu0 0
        %4423 = vperm.xlu0 %4422, %v4300
        %v4424 = vpop.permute.xlu0 %4423
        %4425 = vset.pattern.permute.xlu0 0
        %4426 = vperm.xlu0 %4425, %v4301
        %v4427 = vpop.permute.xlu0 %4426
        %4428 = vset.pattern.permute.xlu0 0
        %4429 = vperm.xlu0 %4428, %v4302
        %v4430 = vpop.permute.xlu0 %4429
        %v4431 = vlaneseq
        %v4432 = vshrl.u32 %v4431, 7
        %v4433 = vsub.s32 %v3486, %v4432
        %v4434 = vrot.slane %v4337, %v4433
        %v4435 = vlaneseq
        %v4436 = vshrl.u32 %v4435, 7
        %v4437 = vsub.s32 %v3732, %v4436
        %v4438 = vrot.slane %v4340, %v4437
        %v4439 = vsel %vm3737, %v4438, %v4434
        %v4440 = vlaneseq
        %v4441 = vshrl.u32 %v4440, 7
        %v4442 = vsub.s32 %v3486, %v4441
        %v4443 = vrot.slane %v4343, %v4442
        %v4444 = vlaneseq
        %v4445 = vshrl.u32 %v4444, 7
        %v4446 = vsub.s32 %v3732, %v4445
        %v4447 = vrot.slane %v4346, %v4446
        %v4448 = vsel %vm3737, %v4447, %v4443
        %v4449 = vlaneseq
        %v4450 = vshrl.u32 %v4449, 7
        %v4451 = vsub.s32 %v3486, %v4450
        %v4452 = vrot.slane %v4349, %v4451
        %v4453 = vlaneseq
        %v4454 = vshrl.u32 %v4453, 7
        %v4455 = vsub.s32 %v3732, %v4454
        %v4456 = vrot.slane %v4352, %v4455
        %v4457 = vsel %vm3737, %v4456, %v4452
        %v4458 = vlaneseq
        %v4459 = vshrl.u32 %v4458, 7
        %v4460 = vsub.s32 %v3486, %v4459
        %v4461 = vrot.slane %v4355, %v4460
        %v4462 = vlaneseq
        %v4463 = vshrl.u32 %v4462, 7
        %v4464 = vsub.s32 %v3732, %v4463
        %v4465 = vrot.slane %v4358, %v4464
        %v4466 = vsel %vm3737, %v4465, %v4461
        %v4467 = vlaneseq
        %v4468 = vshrl.u32 %v4467, 7
        %v4469 = vsub.s32 %v3486, %v4468
        %v4470 = vrot.slane %v4361, %v4469
        %v4471 = vlaneseq
        %v4472 = vshrl.u32 %v4471, 7
        %v4473 = vsub.s32 %v3732, %v4472
        %v4474 = vrot.slane %v4364, %v4473
        %v4475 = vsel %vm3737, %v4474, %v4470
        %v4476 = vlaneseq
        %v4477 = vshrl.u32 %v4476, 7
        %v4478 = vsub.s32 %v3486, %v4477
        %v4479 = vrot.slane %v4367, %v4478
        %v4480 = vlaneseq
        %v4481 = vshrl.u32 %v4480, 7
        %v4482 = vsub.s32 %v3732, %v4481
        %v4483 = vrot.slane %v4370, %v4482
        %v4484 = vsel %vm3737, %v4483, %v4479
        %v4485 = vlaneseq
        %v4486 = vshrl.u32 %v4485, 7
        %v4487 = vsub.s32 %v3486, %v4486
        %v4488 = vrot.slane %v4373, %v4487
        %v4489 = vlaneseq
        %v4490 = vshrl.u32 %v4489, 7
        %v4491 = vsub.s32 %v3732, %v4490
        %v4492 = vrot.slane %v4376, %v4491
        %v4493 = vsel %vm3737, %v4492, %v4488
        %v4494 = vlaneseq
        %v4495 = vshrl.u32 %v4494, 7
        %v4496 = vsub.s32 %v3486, %v4495
        %v4497 = vrot.slane %v4379, %v4496
        %v4498 = vlaneseq
        %v4499 = vshrl.u32 %v4498, 7
        %v4500 = vsub.s32 %v3732, %v4499
        %v4501 = vrot.slane %v4382, %v4500
        %v4502 = vsel %vm3737, %v4501, %v4497
        %v4503 = vlaneseq
        %v4504 = vshrl.u32 %v4503, 7
        %v4505 = vsub.s32 %v3486, %v4504
        %v4506 = vrot.slane %v4385, %v4505
        %v4507 = vlaneseq
        %v4508 = vshrl.u32 %v4507, 7
        %v4509 = vsub.s32 %v3732, %v4508
        %v4510 = vrot.slane %v4388, %v4509
        %v4511 = vsel %vm3737, %v4510, %v4506
        %v4512 = vlaneseq
        %v4513 = vshrl.u32 %v4512, 7
        %v4514 = vsub.s32 %v3486, %v4513
        %v4515 = vrot.slane %v4391, %v4514
        %v4516 = vlaneseq
        %v4517 = vshrl.u32 %v4516, 7
        %v4518 = vsub.s32 %v3732, %v4517
        %v4519 = vrot.slane %v4394, %v4518
        %v4520 = vsel %vm3737, %v4519, %v4515
        %v4521 = vlaneseq
        %v4522 = vshrl.u32 %v4521, 7
        %v4523 = vsub.s32 %v3486, %v4522
        %v4524 = vrot.slane %v4397, %v4523
        %v4525 = vlaneseq
        %v4526 = vshrl.u32 %v4525, 7
        %v4527 = vsub.s32 %v3732, %v4526
        %v4528 = vrot.slane %v4400, %v4527
        %v4529 = vsel %vm3737, %v4528, %v4524
        %v4530 = vlaneseq
        %v4531 = vshrl.u32 %v4530, 7
        %v4532 = vsub.s32 %v3486, %v4531
        %v4533 = vrot.slane %v4403, %v4532
        %v4534 = vlaneseq
        %v4535 = vshrl.u32 %v4534, 7
        %v4536 = vsub.s32 %v3732, %v4535
        %v4537 = vrot.slane %v4406, %v4536
        %v4538 = vsel %vm3737, %v4537, %v4533
        %v4539 = vlaneseq
        %v4540 = vshrl.u32 %v4539, 7
        %v4541 = vsub.s32 %v3486, %v4540
        %v4542 = vrot.slane %v4409, %v4541
        %v4543 = vlaneseq
        %v4544 = vshrl.u32 %v4543, 7
        %v4545 = vsub.s32 %v3732, %v4544
        %v4546 = vrot.slane %v4412, %v4545
        %v4547 = vsel %vm3737, %v4546, %v4542
        %v4548 = vlaneseq
        %v4549 = vshrl.u32 %v4548, 7
        %v4550 = vsub.s32 %v3486, %v4549
        %v4551 = vrot.slane %v4415, %v4550
        %v4552 = vlaneseq
        %v4553 = vshrl.u32 %v4552, 7
        %v4554 = vsub.s32 %v3732, %v4553
        %v4555 = vrot.slane %v4418, %v4554
        %v4556 = vsel %vm3737, %v4555, %v4551
        %v4557 = vlaneseq
        %v4558 = vshrl.u32 %v4557, 7
        %v4559 = vsub.s32 %v3486, %v4558
        %v4560 = vrot.slane %v4421, %v4559
        %v4561 = vlaneseq
        %v4562 = vshrl.u32 %v4561, 7
        %v4563 = vsub.s32 %v3732, %v4562
        %v4564 = vrot.slane %v4424, %v4563
        %v4565 = vsel %vm3737, %v4564, %v4560
        %v4566 = vlaneseq
        %v4567 = vshrl.u32 %v4566, 7
        %v4568 = vsub.s32 %v3486, %v4567
        %v4569 = vrot.slane %v4427, %v4568
        %v4570 = vlaneseq
        %v4571 = vshrl.u32 %v4570, 7
        %v4572 = vsub.s32 %v3732, %v4571
        %v4573 = vrot.slane %v4430, %v4572
        %v4574 = vsel %vm3737, %v4573, %v4569
        %v4575 = vsel %vm3874, %v4448, %v4439
        %v4576 = vsel %vm3876, %v4457, %v4575
        %v4577 = vsel %vm3878, %v4466, %v4576
        %v4578 = vsel %vm3880, %v4475, %v4577
        %v4579 = vsel %vm3882, %v4484, %v4578
        %v4580 = vsel %vm3884, %v4493, %v4579
        %v4581 = vsel %vm3886, %v4502, %v4580
        %v4582 = vsel %vm3874, %v4520, %v4511
        %v4583 = vsel %vm3876, %v4529, %v4582
        %v4584 = vsel %vm3878, %v4538, %v4583
        %v4585 = vsel %vm3880, %v4547, %v4584
        %v4586 = vsel %vm3882, %v4556, %v4585
        %v4587 = vsel %vm3884, %v4565, %v4586
        %v4588 = vsel %vm3886, %v4574, %v4587
        %v4591 = vsel %vm3897, %v4581, 0.0
        %4592 = vadd.xlane.f32.xlu0 %v4591
        %v4593 = vpop.xlane.xlu0 %4592
        %v4594 = vsel %vm3897, %v4588, 0.0
        %4595 = vadd.xlane.f32.xlu0 %v4594
        %v4596 = vpop.xlane.xlu0 %4595
        %v4597 = vmul.f32 %v3959, %v3959
        %v4598 = vmul.f32 %v3960, %v3960
        %v4599 = vmul.f32 %v3961, %v3961
        %v4600 = vmul.f32 %v3962, %v3962
        %v4601 = vmul.f32 %v3963, %v3963
        %v4602 = vmul.f32 %v3964, %v3964
        %v4603 = vmul.f32 %v3965, %v3965
        %v4604 = vmul.f32 %v3966, %v3966
        %v4605 = vmul.f32 %v3967, %v3967
        %v4606 = vmul.f32 %v3968, %v3968
        %v4607 = vmul.f32 %v3969, %v3969
        %v4608 = vmul.f32 %v3970, %v3970
        %v4609 = vmul.f32 %v3971, %v3971
        %v4610 = vmul.f32 %v3972, %v3972
        %v4611 = vmul.f32 %v3973, %v3973
        %v4612 = vmul.f32 %v3974, %v3974
        %v4613 = vmul.f32 %v3975, %v3975
        %v4614 = vmul.f32 %v3976, %v3976
        %v4615 = vmul.f32 %v3977, %v3977
        %v4616 = vmul.f32 %v3978, %v3978
        %v4617 = vmul.f32 %v3979, %v3979
        %v4618 = vmul.f32 %v3980, %v3980
        %v4619 = vmul.f32 %v3981, %v3981
        %v4620 = vmul.f32 %v3982, %v3982
        %v4621 = vmul.f32 %v3983, %v3983
        %v4622 = vmul.f32 %v3984, %v3984
        %v4623 = vmul.f32 %v3985, %v3985
        %v4624 = vmul.f32 %v3986, %v3986
        %v4625 = vmul.f32 %v3987, %v3987
        %v4626 = vmul.f32 %v3988, %v3988
        %v4627 = vmul.f32 %v3989, %v3989
        %v4628 = vmul.f32 %v3990, %v3990
        %v4661 = vlaneseq
        %v4662 = vshrl.u32 %v4661, 7
        %v4663 = vsub.s32 %v3486, %v4662
        %v4664 = vrot.slane %v4597, %v4663
        %v4665 = vlaneseq
        %v4666 = vshrl.u32 %v4665, 7
        %v4667 = vsub.s32 %v3732, %v4666
        %v4668 = vrot.slane %v4598, %v4667
        %v4669 = vsel %vm3737, %v4668, %v4664
        %v4670 = vlaneseq
        %v4671 = vshrl.u32 %v4670, 7
        %v4672 = vsub.s32 %v3486, %v4671
        %v4673 = vrot.slane %v4599, %v4672
        %v4674 = vlaneseq
        %v4675 = vshrl.u32 %v4674, 7
        %v4676 = vsub.s32 %v3732, %v4675
        %v4677 = vrot.slane %v4600, %v4676
        %v4678 = vsel %vm3737, %v4677, %v4673
        %v4679 = vlaneseq
        %v4680 = vshrl.u32 %v4679, 7
        %v4681 = vsub.s32 %v3486, %v4680
        %v4682 = vrot.slane %v4601, %v4681
        %v4683 = vlaneseq
        %v4684 = vshrl.u32 %v4683, 7
        %v4685 = vsub.s32 %v3732, %v4684
        %v4686 = vrot.slane %v4602, %v4685
        %v4687 = vsel %vm3737, %v4686, %v4682
        %v4688 = vlaneseq
        %v4689 = vshrl.u32 %v4688, 7
        %v4690 = vsub.s32 %v3486, %v4689
        %v4691 = vrot.slane %v4603, %v4690
        %v4692 = vlaneseq
        %v4693 = vshrl.u32 %v4692, 7
        %v4694 = vsub.s32 %v3732, %v4693
        %v4695 = vrot.slane %v4604, %v4694
        %v4696 = vsel %vm3737, %v4695, %v4691
        %v4697 = vlaneseq
        %v4698 = vshrl.u32 %v4697, 7
        %v4699 = vsub.s32 %v3486, %v4698
        %v4700 = vrot.slane %v4605, %v4699
        %v4701 = vlaneseq
        %v4702 = vshrl.u32 %v4701, 7
        %v4703 = vsub.s32 %v3732, %v4702
        %v4704 = vrot.slane %v4606, %v4703
        %v4705 = vsel %vm3737, %v4704, %v4700
        %v4706 = vlaneseq
        %v4707 = vshrl.u32 %v4706, 7
        %v4708 = vsub.s32 %v3486, %v4707
        %v4709 = vrot.slane %v4607, %v4708
        %v4710 = vlaneseq
        %v4711 = vshrl.u32 %v4710, 7
        %v4712 = vsub.s32 %v3732, %v4711
        %v4713 = vrot.slane %v4608, %v4712
        %v4714 = vsel %vm3737, %v4713, %v4709
        %v4715 = vlaneseq
        %v4716 = vshrl.u32 %v4715, 7
        %v4717 = vsub.s32 %v3486, %v4716
        %v4718 = vrot.slane %v4609, %v4717
        %v4719 = vlaneseq
        %v4720 = vshrl.u32 %v4719, 7
        %v4721 = vsub.s32 %v3732, %v4720
        %v4722 = vrot.slane %v4610, %v4721
        %v4723 = vsel %vm3737, %v4722, %v4718
        %v4724 = vlaneseq
        %v4725 = vshrl.u32 %v4724, 7
        %v4726 = vsub.s32 %v3486, %v4725
        %v4727 = vrot.slane %v4611, %v4726
        %v4728 = vlaneseq
        %v4729 = vshrl.u32 %v4728, 7
        %v4730 = vsub.s32 %v3732, %v4729
        %v4731 = vrot.slane %v4612, %v4730
        %v4732 = vsel %vm3737, %v4731, %v4727
        %v4733 = vlaneseq
        %v4734 = vshrl.u32 %v4733, 7
        %v4735 = vsub.s32 %v3486, %v4734
        %v4736 = vrot.slane %v4613, %v4735
        %v4737 = vlaneseq
        %v4738 = vshrl.u32 %v4737, 7
        %v4739 = vsub.s32 %v3732, %v4738
        %v4740 = vrot.slane %v4614, %v4739
        %v4741 = vsel %vm3737, %v4740, %v4736
        %v4742 = vlaneseq
        %v4743 = vshrl.u32 %v4742, 7
        %v4744 = vsub.s32 %v3486, %v4743
        %v4745 = vrot.slane %v4615, %v4744
        %v4746 = vlaneseq
        %v4747 = vshrl.u32 %v4746, 7
        %v4748 = vsub.s32 %v3732, %v4747
        %v4749 = vrot.slane %v4616, %v4748
        %v4750 = vsel %vm3737, %v4749, %v4745
        %v4751 = vlaneseq
        %v4752 = vshrl.u32 %v4751, 7
        %v4753 = vsub.s32 %v3486, %v4752
        %v4754 = vrot.slane %v4617, %v4753
        %v4755 = vlaneseq
        %v4756 = vshrl.u32 %v4755, 7
        %v4757 = vsub.s32 %v3732, %v4756
        %v4758 = vrot.slane %v4618, %v4757
        %v4759 = vsel %vm3737, %v4758, %v4754
        %v4760 = vlaneseq
        %v4761 = vshrl.u32 %v4760, 7
        %v4762 = vsub.s32 %v3486, %v4761
        %v4763 = vrot.slane %v4619, %v4762
        %v4764 = vlaneseq
        %v4765 = vshrl.u32 %v4764, 7
        %v4766 = vsub.s32 %v3732, %v4765
        %v4767 = vrot.slane %v4620, %v4766
        %v4768 = vsel %vm3737, %v4767, %v4763
        %v4769 = vlaneseq
        %v4770 = vshrl.u32 %v4769, 7
        %v4771 = vsub.s32 %v3486, %v4770
        %v4772 = vrot.slane %v4621, %v4771
        %v4773 = vlaneseq
        %v4774 = vshrl.u32 %v4773, 7
        %v4775 = vsub.s32 %v3732, %v4774
        %v4776 = vrot.slane %v4622, %v4775
        %v4777 = vsel %vm3737, %v4776, %v4772
        %v4778 = vlaneseq
        %v4779 = vshrl.u32 %v4778, 7
        %v4780 = vsub.s32 %v3486, %v4779
        %v4781 = vrot.slane %v4623, %v4780
        %v4782 = vlaneseq
        %v4783 = vshrl.u32 %v4782, 7
        %v4784 = vsub.s32 %v3732, %v4783
        %v4785 = vrot.slane %v4624, %v4784
        %v4786 = vsel %vm3737, %v4785, %v4781
        %v4787 = vlaneseq
        %v4788 = vshrl.u32 %v4787, 7
        %v4789 = vsub.s32 %v3486, %v4788
        %v4790 = vrot.slane %v4625, %v4789
        %v4791 = vlaneseq
        %v4792 = vshrl.u32 %v4791, 7
        %v4793 = vsub.s32 %v3732, %v4792
        %v4794 = vrot.slane %v4626, %v4793
        %v4795 = vsel %vm3737, %v4794, %v4790
        %v4796 = vlaneseq
        %v4797 = vshrl.u32 %v4796, 7
        %v4798 = vsub.s32 %v3486, %v4797
        %v4799 = vrot.slane %v4627, %v4798
        %v4800 = vlaneseq
        %v4801 = vshrl.u32 %v4800, 7
        %v4802 = vsub.s32 %v3732, %v4801
        %v4803 = vrot.slane %v4628, %v4802
        %v4804 = vsel %vm3737, %v4803, %v4799
        %v4805 = vsel %vm3874, %v4678, %v4669
        %v4806 = vsel %vm3876, %v4687, %v4805
        %v4807 = vsel %vm3878, %v4696, %v4806
        %v4808 = vsel %vm3880, %v4705, %v4807
        %v4809 = vsel %vm3882, %v4714, %v4808
        %v4810 = vsel %vm3884, %v4723, %v4809
        %v4811 = vsel %vm3886, %v4732, %v4810
        %v4812 = vsel %vm3874, %v4750, %v4741
        %v4813 = vsel %vm3876, %v4759, %v4812
        %v4814 = vsel %vm3878, %v4768, %v4813
        %v4815 = vsel %vm3880, %v4777, %v4814
        %v4816 = vsel %vm3882, %v4786, %v4815
        %v4817 = vsel %vm3884, %v4795, %v4816
        %v4818 = vsel %vm3886, %v4804, %v4817
        %v4821 = vsel %vm3897, %v4811, 0.0
        %4822 = vadd.xlane.f32.xlu0 %v4821
        %v4823 = vpop.xlane.xlu0 %4822
        %v4824 = vsel %vm3897, %v4818, 0.0
        %4825 = vadd.xlane.f32.xlu0 %v4824
        %v4826 = vpop.xlane.xlu0 %4825
        %v4827 = vrsqrt.pop %v4823
        %v4828 = vmul.f32 %v4823, %v4827
        %vm4829 = vcmp.eq.f32.partialorder %v4823, inf
        %v4830 = vsel %vm4829, %v4823, %v4828
        %vm4831 = vcmp.eq.f32.partialorder %v4823, 0.0
        %v4832 = vand.u32 %v4823, 2147483648
        %v4833 = vsel %vm4831, %v4832, %v4830
        %v4834 = vrsqrt.pop %v4826
        %v4835 = vmul.f32 %v4826, %v4834
        %vm4836 = vcmp.eq.f32.partialorder %v4826, inf
        %v4837 = vsel %vm4836, %v4826, %v4835
        %vm4838 = vcmp.eq.f32.partialorder %v4826, 0.0
        %v4839 = vand.u32 %v4826, 2147483648
        %v4840 = vsel %vm4838, %v4839, %v4837
        %v4841 = vmul.f32 %v4024, %v4024
        %v4842 = vmul.f32 %v4025, %v4025
        %v4843 = vsel %vm3897, %v4841, 0.0
        %4844 = vadd.xlane.f32.xlu0 %v4843
        %v4845 = vpop.xlane.xlu0 %4844
        %v4846 = vsel %vm3897, %v4842, 0.0
        %4847 = vadd.xlane.f32.xlu0 %v4846
        %v4848 = vpop.xlane.xlu0 %4847
        %v4849 = vrsqrt.pop %v4845
        %v4850 = vmul.f32 %v4845, %v4849
        %vm4851 = vcmp.eq.f32.partialorder %v4845, inf
        %v4852 = vsel %vm4851, %v4845, %v4850
        %vm4853 = vcmp.eq.f32.partialorder %v4845, 0.0
        %v4854 = vand.u32 %v4845, 2147483648
        %v4855 = vsel %vm4853, %v4854, %v4852
        %v4856 = vrsqrt.pop %v4848
        %v4857 = vmul.f32 %v4848, %v4856
        %vm4858 = vcmp.eq.f32.partialorder %v4848, inf
        %v4859 = vsel %vm4858, %v4848, %v4857
        %vm4860 = vcmp.eq.f32.partialorder %v4848, 0.0
        %v4861 = vand.u32 %v4848, 2147483648
        %v4862 = vsel %vm4860, %v4861, %v4859
        %v4863 = vmul.f32 %v4833, %v4855
        %v4864 = vmul.f32 %v4840, %v4862
        %v4865 = vmax.f32 %v4863, 1e-08
        %v4866 = vmax.f32 %v4864, 1e-08
        %v4867 = vrcp.pop %v4865
        %v4868 = vmul.f32 %v4593, %v4867
        %v4869 = vrcp.pop %v4866
        %v4870 = vmul.f32 %v4596, %v4869
        %v4871 = vadd.f32 %v4868, %v4870
        %v4872 = vrot.slane %v4871, 4
        %v4873 = vadd.f32 %v4871, %v4872
        %v4874 = vrot.slane %v4873, 2
        %v4875 = vadd.f32 %v4873, %v4874
        %v4876 = vrot.slane %v4875, 1
        %v4877 = vadd.f32 %v4875, %v4876
        %v4878 = vmul.f32 %v4877, 0.0625
        %v4881 = vlaneseq
        %v4882 = vshrl.u32 %v4881, 7
        %v4883 = vsub.s32 0, %v4882
        %v4884 = vrot.slane %v4059, %v4883
        %4886 = vbcast.lane.b32.xlu0 %v4884, 256
        %v4887 = vpop.permute.xlu0 %4886
        %s4889 = sor.u32 256, 8
        %4890 = vbcast.lane.b32.xlu0 %v4884, %s4889
        %v4891 = vpop.permute.xlu0 %4890
        %v4892 = vlaneseq
        %v4893 = vshrl.u32 %v4892, 7
        %v4894 = vsub.s32 1, %v4893
        %v4895 = vrot.slane %v4059, %v4894
        %4897 = vbcast.lane.b32.xlu0 %v4895, 256
        %v4898 = vpop.permute.xlu0 %4897
        %s4900 = sor.u32 256, 8
        %4901 = vbcast.lane.b32.xlu0 %v4895, %s4900
        %v4902 = vpop.permute.xlu0 %4901
        %v4903 = vlaneseq
        %v4904 = vshrl.u32 %v4903, 7
        %v4905 = vsub.s32 2, %v4904
        %v4906 = vrot.slane %v4059, %v4905
        %4908 = vbcast.lane.b32.xlu0 %v4906, 256
        %v4909 = vpop.permute.xlu0 %4908
        %s4911 = sor.u32 256, 8
        %4912 = vbcast.lane.b32.xlu0 %v4906, %s4911
        %v4913 = vpop.permute.xlu0 %4912
        %v4914 = vlaneseq
        %v4915 = vshrl.u32 %v4914, 7
        %v4916 = vsub.s32 3, %v4915
        %v4917 = vrot.slane %v4059, %v4916
        %4919 = vbcast.lane.b32.xlu0 %v4917, 256
        %v4920 = vpop.permute.xlu0 %4919
        %s4922 = sor.u32 256, 8
        %4923 = vbcast.lane.b32.xlu0 %v4917, %s4922
        %v4924 = vpop.permute.xlu0 %4923
        %v4925 = vlaneseq
        %v4926 = vshrl.u32 %v4925, 7
        %v4927 = vsub.s32 4, %v4926
        %v4928 = vrot.slane %v4059, %v4927
        %4930 = vbcast.lane.b32.xlu0 %v4928, 256
        %v4931 = vpop.permute.xlu0 %4930
        %s4933 = sor.u32 256, 8
        %4934 = vbcast.lane.b32.xlu0 %v4928, %s4933
        %v4935 = vpop.permute.xlu0 %4934
        %v4936 = vlaneseq
        %v4937 = vshrl.u32 %v4936, 7
        %v4938 = vsub.s32 5, %v4937
        %v4939 = vrot.slane %v4059, %v4938
        %4941 = vbcast.lane.b32.xlu0 %v4939, 256
        %v4942 = vpop.permute.xlu0 %4941
        %s4944 = sor.u32 256, 8
        %4945 = vbcast.lane.b32.xlu0 %v4939, %s4944
        %v4946 = vpop.permute.xlu0 %4945
        %v4947 = vlaneseq
        %v4948 = vshrl.u32 %v4947, 7
        %v4949 = vsub.s32 6, %v4948
        %v4950 = vrot.slane %v4059, %v4949
        %4952 = vbcast.lane.b32.xlu0 %v4950, 256
        %v4953 = vpop.permute.xlu0 %4952
        %s4955 = sor.u32 256, 8
        %4956 = vbcast.lane.b32.xlu0 %v4950, %s4955
        %v4957 = vpop.permute.xlu0 %4956
        %v4958 = vlaneseq
        %v4959 = vshrl.u32 %v4958, 7
        %v4960 = vsub.s32 7, %v4959
        %v4961 = vrot.slane %v4059, %v4960
        %4963 = vbcast.lane.b32.xlu0 %v4961, 256
        %v4964 = vpop.permute.xlu0 %4963
        %s4966 = sor.u32 256, 8
        %4967 = vbcast.lane.b32.xlu0 %v4961, %s4966
        %v4968 = vpop.permute.xlu0 %4967
        %v4969 = vlaneseq
        %v4970 = vshrl.u32 %v4969, 7
        %v4971 = vsub.s32 0, %v4970
        %v4972 = vrot.slane %v4060, %v4971
        %4974 = vbcast.lane.b32.xlu0 %v4972, 256
        %v4975 = vpop.permute.xlu0 %4974
        %s4977 = sor.u32 256, 8
        %4978 = vbcast.lane.b32.xlu0 %v4972, %s4977
        %v4979 = vpop.permute.xlu0 %4978
        %v4980 = vlaneseq
        %v4981 = vshrl.u32 %v4980, 7
        %v4982 = vsub.s32 1, %v4981
        %v4983 = vrot.slane %v4060, %v4982
        %4985 = vbcast.lane.b32.xlu0 %v4983, 256
        %v4986 = vpop.permute.xlu0 %4985
        %s4988 = sor.u32 256, 8
        %4989 = vbcast.lane.b32.xlu0 %v4983, %s4988
        %v4990 = vpop.permute.xlu0 %4989
        %v4991 = vlaneseq
        %v4992 = vshrl.u32 %v4991, 7
        %v4993 = vsub.s32 2, %v4992
        %v4994 = vrot.slane %v4060, %v4993
        %4996 = vbcast.lane.b32.xlu0 %v4994, 256
        %v4997 = vpop.permute.xlu0 %4996
        %s4999 = sor.u32 256, 8
        %5000 = vbcast.lane.b32.xlu0 %v4994, %s4999
        %v5001 = vpop.permute.xlu0 %5000
        %v5002 = vlaneseq
        %v5003 = vshrl.u32 %v5002, 7
        %v5004 = vsub.s32 3, %v5003
        %v5005 = vrot.slane %v4060, %v5004
        %5007 = vbcast.lane.b32.xlu0 %v5005, 256
        %v5008 = vpop.permute.xlu0 %5007
        %s5010 = sor.u32 256, 8
        %5011 = vbcast.lane.b32.xlu0 %v5005, %s5010
        %v5012 = vpop.permute.xlu0 %5011
        %v5013 = vlaneseq
        %v5014 = vshrl.u32 %v5013, 7
        %v5015 = vsub.s32 4, %v5014
        %v5016 = vrot.slane %v4060, %v5015
        %5018 = vbcast.lane.b32.xlu0 %v5016, 256
        %v5019 = vpop.permute.xlu0 %5018
        %s5021 = sor.u32 256, 8
        %5022 = vbcast.lane.b32.xlu0 %v5016, %s5021
        %v5023 = vpop.permute.xlu0 %5022
        %v5024 = vlaneseq
        %v5025 = vshrl.u32 %v5024, 7
        %v5026 = vsub.s32 5, %v5025
        %v5027 = vrot.slane %v4060, %v5026
        %5029 = vbcast.lane.b32.xlu0 %v5027, 256
        %v5030 = vpop.permute.xlu0 %5029
        %s5032 = sor.u32 256, 8
        %5033 = vbcast.lane.b32.xlu0 %v5027, %s5032
        %v5034 = vpop.permute.xlu0 %5033
        %v5035 = vlaneseq
        %v5036 = vshrl.u32 %v5035, 7
        %v5037 = vsub.s32 6, %v5036
        %v5038 = vrot.slane %v4060, %v5037
        %5040 = vbcast.lane.b32.xlu0 %v5038, 256
        %v5041 = vpop.permute.xlu0 %5040
        %s5043 = sor.u32 256, 8
        %5044 = vbcast.lane.b32.xlu0 %v5038, %s5043
        %v5045 = vpop.permute.xlu0 %5044
        %v5046 = vlaneseq
        %v5047 = vshrl.u32 %v5046, 7
        %v5048 = vsub.s32 7, %v5047
        %v5049 = vrot.slane %v4060, %v5048
        %5051 = vbcast.lane.b32.xlu0 %v5049, 256
        %v5052 = vpop.permute.xlu0 %5051
        %s5054 = sor.u32 256, 8
        %5055 = vbcast.lane.b32.xlu0 %v5049, %s5054
        %v5056 = vpop.permute.xlu0 %5055
        %v5089 = vmul.f32 %v3959, %v4887
        %v5090 = vmul.f32 %v3960, %v4891
        %v5091 = vmul.f32 %v3961, %v4898
        %v5092 = vmul.f32 %v3962, %v4902
        %v5093 = vmul.f32 %v3963, %v4909
        %v5094 = vmul.f32 %v3964, %v4913
        %v5095 = vmul.f32 %v3965, %v4920
        %v5096 = vmul.f32 %v3966, %v4924
        %v5097 = vmul.f32 %v3967, %v4931
        %v5098 = vmul.f32 %v3968, %v4935
        %v5099 = vmul.f32 %v3969, %v4942
        %v5100 = vmul.f32 %v3970, %v4946
        %v5101 = vmul.f32 %v3971, %v4953
        %v5102 = vmul.f32 %v3972, %v4957
        %v5103 = vmul.f32 %v3973, %v4964
        %v5104 = vmul.f32 %v3974, %v4968
        %v5105 = vmul.f32 %v3975, %v4975
        %v5106 = vmul.f32 %v3976, %v4979
        %v5107 = vmul.f32 %v3977, %v4986
        %v5108 = vmul.f32 %v3978, %v4990
        %v5109 = vmul.f32 %v3979, %v4997
        %v5110 = vmul.f32 %v3980, %v5001
        %v5111 = vmul.f32 %v3981, %v5008
        %v5112 = vmul.f32 %v3982, %v5012
        %v5113 = vmul.f32 %v3983, %v5019
        %v5114 = vmul.f32 %v3984, %v5023
        %v5115 = vmul.f32 %v3985, %v5030
        %v5116 = vmul.f32 %v3986, %v5034
        %v5117 = vmul.f32 %v3987, %v5041
        %v5118 = vmul.f32 %v3988, %v5045
        %v5119 = vmul.f32 %v3989, %v5052
        %v5120 = vmul.f32 %v3990, %v5056
        %5153 = vset.pattern.permute.xlu0 0
        %5154 = vperm.xlu0 %5153, %v5089
        %v5155 = vpop.permute.xlu0 %5154
        %5156 = vset.pattern.permute.xlu0 0
        %5157 = vperm.xlu0 %5156, %v5090
        %v5158 = vpop.permute.xlu0 %5157
        %5159 = vset.pattern.permute.xlu0 0
        %5160 = vperm.xlu0 %5159, %v5091
        %v5161 = vpop.permute.xlu0 %5160
        %5162 = vset.pattern.permute.xlu0 0
        %5163 = vperm.xlu0 %5162, %v5092
        %v5164 = vpop.permute.xlu0 %5163
        %5165 = vset.pattern.permute.xlu0 0
        %5166 = vperm.xlu0 %5165, %v5093
        %v5167 = vpop.permute.xlu0 %5166
        %5168 = vset.pattern.permute.xlu0 0
        %5169 = vperm.xlu0 %5168, %v5094
        %v5170 = vpop.permute.xlu0 %5169
        %5171 = vset.pattern.permute.xlu0 0
        %5172 = vperm.xlu0 %5171, %v5095
        %v5173 = vpop.permute.xlu0 %5172
        %5174 = vset.pattern.permute.xlu0 0
        %5175 = vperm.xlu0 %5174, %v5096
        %v5176 = vpop.permute.xlu0 %5175
        %5177 = vset.pattern.permute.xlu0 0
        %5178 = vperm.xlu0 %5177, %v5097
        %v5179 = vpop.permute.xlu0 %5178
        %5180 = vset.pattern.permute.xlu0 0
        %5181 = vperm.xlu0 %5180, %v5098
        %v5182 = vpop.permute.xlu0 %5181
        %5183 = vset.pattern.permute.xlu0 0
        %5184 = vperm.xlu0 %5183, %v5099
        %v5185 = vpop.permute.xlu0 %5184
        %5186 = vset.pattern.permute.xlu0 0
        %5187 = vperm.xlu0 %5186, %v5100
        %v5188 = vpop.permute.xlu0 %5187
        %5189 = vset.pattern.permute.xlu0 0
        %5190 = vperm.xlu0 %5189, %v5101
        %v5191 = vpop.permute.xlu0 %5190
        %5192 = vset.pattern.permute.xlu0 0
        %5193 = vperm.xlu0 %5192, %v5102
        %v5194 = vpop.permute.xlu0 %5193
        %5195 = vset.pattern.permute.xlu0 0
        %5196 = vperm.xlu0 %5195, %v5103
        %v5197 = vpop.permute.xlu0 %5196
        %5198 = vset.pattern.permute.xlu0 0
        %5199 = vperm.xlu0 %5198, %v5104
        %v5200 = vpop.permute.xlu0 %5199
        %5201 = vset.pattern.permute.xlu0 0
        %5202 = vperm.xlu0 %5201, %v5105
        %v5203 = vpop.permute.xlu0 %5202
        %5204 = vset.pattern.permute.xlu0 0
        %5205 = vperm.xlu0 %5204, %v5106
        %v5206 = vpop.permute.xlu0 %5205
        %5207 = vset.pattern.permute.xlu0 0
        %5208 = vperm.xlu0 %5207, %v5107
        %v5209 = vpop.permute.xlu0 %5208
        %5210 = vset.pattern.permute.xlu0 0
        %5211 = vperm.xlu0 %5210, %v5108
        %v5212 = vpop.permute.xlu0 %5211
        %5213 = vset.pattern.permute.xlu0 0
        %5214 = vperm.xlu0 %5213, %v5109
        %v5215 = vpop.permute.xlu0 %5214
        %5216 = vset.pattern.permute.xlu0 0
        %5217 = vperm.xlu0 %5216, %v5110
        %v5218 = vpop.permute.xlu0 %5217
        %5219 = vset.pattern.permute.xlu0 0
        %5220 = vperm.xlu0 %5219, %v5111
        %v5221 = vpop.permute.xlu0 %5220
        %5222 = vset.pattern.permute.xlu0 0
        %5223 = vperm.xlu0 %5222, %v5112
        %v5224 = vpop.permute.xlu0 %5223
        %5225 = vset.pattern.permute.xlu0 0
        %5226 = vperm.xlu0 %5225, %v5113
        %v5227 = vpop.permute.xlu0 %5226
        %5228 = vset.pattern.permute.xlu0 0
        %5229 = vperm.xlu0 %5228, %v5114
        %v5230 = vpop.permute.xlu0 %5229
        %5231 = vset.pattern.permute.xlu0 0
        %5232 = vperm.xlu0 %5231, %v5115
        %v5233 = vpop.permute.xlu0 %5232
        %5234 = vset.pattern.permute.xlu0 0
        %5235 = vperm.xlu0 %5234, %v5116
        %v5236 = vpop.permute.xlu0 %5235
        %5237 = vset.pattern.permute.xlu0 0
        %5238 = vperm.xlu0 %5237, %v5117
        %v5239 = vpop.permute.xlu0 %5238
        %5240 = vset.pattern.permute.xlu0 0
        %5241 = vperm.xlu0 %5240, %v5118
        %v5242 = vpop.permute.xlu0 %5241
        %5243 = vset.pattern.permute.xlu0 0
        %5244 = vperm.xlu0 %5243, %v5119
        %v5245 = vpop.permute.xlu0 %5244
        %5246 = vset.pattern.permute.xlu0 0
        %5247 = vperm.xlu0 %5246, %v5120
        %v5248 = vpop.permute.xlu0 %5247
        %v5249 = vlaneseq
        %v5250 = vshrl.u32 %v5249, 7
        %v5251 = vsub.s32 %v3486, %v5250
        %v5252 = vrot.slane %v5155, %v5251
        %v5253 = vlaneseq
        %v5254 = vshrl.u32 %v5253, 7
        %v5255 = vsub.s32 %v3732, %v5254
        %v5256 = vrot.slane %v5158, %v5255
        %v5257 = vsel %vm3737, %v5256, %v5252
        %v5258 = vlaneseq
        %v5259 = vshrl.u32 %v5258, 7
        %v5260 = vsub.s32 %v3486, %v5259
        %v5261 = vrot.slane %v5161, %v5260
        %v5262 = vlaneseq
        %v5263 = vshrl.u32 %v5262, 7
        %v5264 = vsub.s32 %v3732, %v5263
        %v5265 = vrot.slane %v5164, %v5264
        %v5266 = vsel %vm3737, %v5265, %v5261
        %v5267 = vlaneseq
        %v5268 = vshrl.u32 %v5267, 7
        %v5269 = vsub.s32 %v3486, %v5268
        %v5270 = vrot.slane %v5167, %v5269
        %v5271 = vlaneseq
        %v5272 = vshrl.u32 %v5271, 7
        %v5273 = vsub.s32 %v3732, %v5272
        %v5274 = vrot.slane %v5170, %v5273
        %v5275 = vsel %vm3737, %v5274, %v5270
        %v5276 = vlaneseq
        %v5277 = vshrl.u32 %v5276, 7
        %v5278 = vsub.s32 %v3486, %v5277
        %v5279 = vrot.slane %v5173, %v5278
        %v5280 = vlaneseq
        %v5281 = vshrl.u32 %v5280, 7
        %v5282 = vsub.s32 %v3732, %v5281
        %v5283 = vrot.slane %v5176, %v5282
        %v5284 = vsel %vm3737, %v5283, %v5279
        %v5285 = vlaneseq
        %v5286 = vshrl.u32 %v5285, 7
        %v5287 = vsub.s32 %v3486, %v5286
        %v5288 = vrot.slane %v5179, %v5287
        %v5289 = vlaneseq
        %v5290 = vshrl.u32 %v5289, 7
        %v5291 = vsub.s32 %v3732, %v5290
        %v5292 = vrot.slane %v5182, %v5291
        %v5293 = vsel %vm3737, %v5292, %v5288
        %v5294 = vlaneseq
        %v5295 = vshrl.u32 %v5294, 7
        %v5296 = vsub.s32 %v3486, %v5295
        %v5297 = vrot.slane %v5185, %v5296
        %v5298 = vlaneseq
        %v5299 = vshrl.u32 %v5298, 7
        %v5300 = vsub.s32 %v3732, %v5299
        %v5301 = vrot.slane %v5188, %v5300
        %v5302 = vsel %vm3737, %v5301, %v5297
        %v5303 = vlaneseq
        %v5304 = vshrl.u32 %v5303, 7
        %v5305 = vsub.s32 %v3486, %v5304
        %v5306 = vrot.slane %v5191, %v5305
        %v5307 = vlaneseq
        %v5308 = vshrl.u32 %v5307, 7
        %v5309 = vsub.s32 %v3732, %v5308
        %v5310 = vrot.slane %v5194, %v5309
        %v5311 = vsel %vm3737, %v5310, %v5306
        %v5312 = vlaneseq
        %v5313 = vshrl.u32 %v5312, 7
        %v5314 = vsub.s32 %v3486, %v5313
        %v5315 = vrot.slane %v5197, %v5314
        %v5316 = vlaneseq
        %v5317 = vshrl.u32 %v5316, 7
        %v5318 = vsub.s32 %v3732, %v5317
        %v5319 = vrot.slane %v5200, %v5318
        %v5320 = vsel %vm3737, %v5319, %v5315
        %v5321 = vlaneseq
        %v5322 = vshrl.u32 %v5321, 7
        %v5323 = vsub.s32 %v3486, %v5322
        %v5324 = vrot.slane %v5203, %v5323
        %v5325 = vlaneseq
        %v5326 = vshrl.u32 %v5325, 7
        %v5327 = vsub.s32 %v3732, %v5326
        %v5328 = vrot.slane %v5206, %v5327
        %v5329 = vsel %vm3737, %v5328, %v5324
        %v5330 = vlaneseq
        %v5331 = vshrl.u32 %v5330, 7
        %v5332 = vsub.s32 %v3486, %v5331
        %v5333 = vrot.slane %v5209, %v5332
        %v5334 = vlaneseq
        %v5335 = vshrl.u32 %v5334, 7
        %v5336 = vsub.s32 %v3732, %v5335
        %v5337 = vrot.slane %v5212, %v5336
        %v5338 = vsel %vm3737, %v5337, %v5333
        %v5339 = vlaneseq
        %v5340 = vshrl.u32 %v5339, 7
        %v5341 = vsub.s32 %v3486, %v5340
        %v5342 = vrot.slane %v5215, %v5341
        %v5343 = vlaneseq
        %v5344 = vshrl.u32 %v5343, 7
        %v5345 = vsub.s32 %v3732, %v5344
        %v5346 = vrot.slane %v5218, %v5345
        %v5347 = vsel %vm3737, %v5346, %v5342
        %v5348 = vlaneseq
        %v5349 = vshrl.u32 %v5348, 7
        %v5350 = vsub.s32 %v3486, %v5349
        %v5351 = vrot.slane %v5221, %v5350
        %v5352 = vlaneseq
        %v5353 = vshrl.u32 %v5352, 7
        %v5354 = vsub.s32 %v3732, %v5353
        %v5355 = vrot.slane %v5224, %v5354
        %v5356 = vsel %vm3737, %v5355, %v5351
        %v5357 = vlaneseq
        %v5358 = vshrl.u32 %v5357, 7
        %v5359 = vsub.s32 %v3486, %v5358
        %v5360 = vrot.slane %v5227, %v5359
        %v5361 = vlaneseq
        %v5362 = vshrl.u32 %v5361, 7
        %v5363 = vsub.s32 %v3732, %v5362
        %v5364 = vrot.slane %v5230, %v5363
        %v5365 = vsel %vm3737, %v5364, %v5360
        %v5366 = vlaneseq
        %v5367 = vshrl.u32 %v5366, 7
        %v5368 = vsub.s32 %v3486, %v5367
        %v5369 = vrot.slane %v5233, %v5368
        %v5370 = vlaneseq
        %v5371 = vshrl.u32 %v5370, 7
        %v5372 = vsub.s32 %v3732, %v5371
        %v5373 = vrot.slane %v5236, %v5372
        %v5374 = vsel %vm3737, %v5373, %v5369
        %v5375 = vlaneseq
        %v5376 = vshrl.u32 %v5375, 7
        %v5377 = vsub.s32 %v3486, %v5376
        %v5378 = vrot.slane %v5239, %v5377
        %v5379 = vlaneseq
        %v5380 = vshrl.u32 %v5379, 7
        %v5381 = vsub.s32 %v3732, %v5380
        %v5382 = vrot.slane %v5242, %v5381
        %v5383 = vsel %vm3737, %v5382, %v5378
        %v5384 = vlaneseq
        %v5385 = vshrl.u32 %v5384, 7
        %v5386 = vsub.s32 %v3486, %v5385
        %v5387 = vrot.slane %v5245, %v5386
        %v5388 = vlaneseq
        %v5389 = vshrl.u32 %v5388, 7
        %v5390 = vsub.s32 %v3732, %v5389
        %v5391 = vrot.slane %v5248, %v5390
        %v5392 = vsel %vm3737, %v5391, %v5387
        %v5393 = vsel %vm3874, %v5266, %v5257
        %v5394 = vsel %vm3876, %v5275, %v5393
        %v5395 = vsel %vm3878, %v5284, %v5394
        %v5396 = vsel %vm3880, %v5293, %v5395
        %v5397 = vsel %vm3882, %v5302, %v5396
        %v5398 = vsel %vm3884, %v5311, %v5397
        %v5399 = vsel %vm3886, %v5320, %v5398
        %v5400 = vsel %vm3874, %v5338, %v5329
        %v5401 = vsel %vm3876, %v5347, %v5400
        %v5402 = vsel %vm3878, %v5356, %v5401
        %v5403 = vsel %vm3880, %v5365, %v5402
        %v5404 = vsel %vm3882, %v5374, %v5403
        %v5405 = vsel %vm3884, %v5383, %v5404
        %v5406 = vsel %vm3886, %v5392, %v5405
        %v5409 = vsel %vm3897, %v5399, 0.0
        %5410 = vadd.xlane.f32.xlu0 %v5409
        %v5411 = vpop.xlane.xlu0 %5410
        %v5412 = vsel %vm3897, %v5406, 0.0
        %5413 = vadd.xlane.f32.xlu0 %v5412
        %v5414 = vpop.xlane.xlu0 %5413
        %v5415 = vmul.f32 %v4059, %v4059
        %v5416 = vmul.f32 %v4060, %v4060
        %v5417 = vsel %vm3897, %v5415, 0.0
        %5418 = vadd.xlane.f32.xlu0 %v5417
        %v5419 = vpop.xlane.xlu0 %5418
        %v5420 = vsel %vm3897, %v5416, 0.0
        %5421 = vadd.xlane.f32.xlu0 %v5420
        %v5422 = vpop.xlane.xlu0 %5421
        %v5423 = vrsqrt.pop %v5419
        %v5424 = vmul.f32 %v5419, %v5423
        %vm5425 = vcmp.eq.f32.partialorder %v5419, inf
        %v5426 = vsel %vm5425, %v5419, %v5424
        %vm5427 = vcmp.eq.f32.partialorder %v5419, 0.0
        %v5428 = vand.u32 %v5419, 2147483648
        %v5429 = vsel %vm5427, %v5428, %v5426
        %v5430 = vrsqrt.pop %v5422
        %v5431 = vmul.f32 %v5422, %v5430
        %vm5432 = vcmp.eq.f32.partialorder %v5422, inf
        %v5433 = vsel %vm5432, %v5422, %v5431
        %vm5434 = vcmp.eq.f32.partialorder %v5422, 0.0
        %v5435 = vand.u32 %v5422, 2147483648
        %v5436 = vsel %vm5434, %v5435, %v5433
        %v5437 = vmul.f32 %v4833, %v5429
        %v5438 = vmul.f32 %v4840, %v5436
        %v5439 = vmax.f32 %v5437, 1e-08
        %v5440 = vmax.f32 %v5438, 1e-08
        %v5441 = vrcp.pop %v5439
        %v5442 = vmul.f32 %v5411, %v5441
        %v5443 = vrcp.pop %v5440
        %v5444 = vmul.f32 %v5414, %v5443
        %v5445 = vadd.f32 %v5442, %v5444
        %v5446 = vrot.slane %v5445, 4
        %v5447 = vadd.f32 %v5445, %v5446
        %v5448 = vrot.slane %v5447, 2
        %v5449 = vadd.f32 %v5447, %v5448
        %v5450 = vrot.slane %v5449, 1
        %v5451 = vadd.f32 %v5449, %v5450
        %v5452 = vmul.f32 %v5451, 0.0625
        %v5453 = vsub.f32 %v4878, %v5452
        %vm5454 = vcmp.lt.f32.partialorder %v5453, 0.0
        %v5455 = vsel %vm5454, 0.0, 1.0
        %vm5456 = vcmp.eq.s32.totalorder %v3486, 2
        %v5457 = vsel %vm5456, %v5455, 0.0
        %v5458 = vsel %vm3493, %v5453, %v5457
        %v5459 = vsel %vm3487, %v3503, %v5458
        %5460 = vst [vmem:[%s406] sm:$0x1] %v5459
        %s5461 = sand.u32 %s239, 1
        %s5462 = scalar_lea.sflag [#allocation6], %s5461
        %s5463 = sand.u32 %s239, 1
        %s5464 = scalar_lea.vmem [#allocation10], %s5463
        // Predicated region
        $region69: #{tpu_custom_call.1} parent=55 // pred_check
          %p5465 = pneg %p249
        $region70: #{tpu_custom_call.1} parent=55 // pred_check_branch
          %5467 = sbr.rel (%p5465) target = $region72
        $region71: #{tpu_custom_call.1} parent=55 // pred_region
          %s5469 = ssub.s32 16, 16
          %5470 = vsyncadd %s5462, %s5469
          %s5471 = smul.addr %s27, 16
          %s5472 = scalar_lea.hbm %s9, %s5471
          %s5474 = sshll.u32 %s5464, 4
          %s5475 = int_to_ptr.vmem [resolvable:$true] %s5474
          %5477 = dma.vmem_to_hbm [thread:$0]  %s5475, 16, %s5472, %s5462
        $region72: #{tpu_custom_call.1} parent=55 // pred_fallthru
          _
      $region56: #{tpu_custom_call.1} parent=5 // pred_fallthru
        _
      %p5478 = scmp.le.s32.totalorder 2, %s22
      // Predicated region
      $region73: #{tpu_custom_call.1} parent=5 // pred_check
        %p5479 = pneg %p5478
      $region74: #{tpu_custom_call.1} parent=5 // pred_check_branch
        %5481 = sbr.rel (%p5479) target = $region76
      $region75: #{tpu_custom_call.1} parent=5 // pred_region
        %s5482 = ssub.s32 %s22, 2
        // Predicated region
        $region77: #{tpu_custom_call.1} parent=75 // pred_check
          %p5483 = pneg %p255
        $region78: #{tpu_custom_call.1} parent=75 // pred_check_branch
          %5485 = sbr.rel (%p5483) target = $region80
        $region79: #{tpu_custom_call.1} parent=75 // pred_region
          %s5486 = sand.u32 %s240, 1
          %s5487 = scalar_lea.sflag [#allocation6], %s5486
          %s5488 = sand.u32 %s240, 1
          %s5489 = scalar_lea.vmem [#allocation10], %s5488
          %5490 = dma.done %s5487, 16
        $region80: #{tpu_custom_call.1} parent=75 // pred_fallthru
          _
      $region76: #{tpu_custom_call.1} parent=5 // pred_fallthru
        _
    $region6: #{tpu_custom_call.1} parent=1 // loop_footer
      %s26 = sadd.s32 1, %s22
    $region7: #{tpu_custom_call.1} parent=1 // loop_footer_branch
      %21 = sbr.rel target = $region3
    $region8: #{tpu_custom_call.1} parent=1 // loop_exit
      _
    %5491 = vsyncpa [#allocation5], 1
    %s5492 = scalar_lea.sflag [#allocation5], 1
    %5493 = vsyncpa %s5492, 1
    %5494 = vsyncpa [#allocation8], 1
    %5495 = vsyncpa [#allocation6], 1
    %s5496 = scalar_lea.sflag [#allocation6], 1
    %5497 = vsyncpa %s5496, 1

</llo_original>
